<compile_context>
chip_gen: v7x
topology: tpu7x:2x2x1
jax: 0.10.0
libtpu: 0.0.40
codegen_flags: <defaults>
</compile_context>

<pallas_src>
import math
import numpy as np
import jax
import jax.numpy as jnp
from jax import lax
from jax.experimental import pallas as pl
from jax.experimental.pallas import tpu as pltpu

# ---- model hyper-parameters (consistent with the PyTorch module) ----
d_model = 32
d_k = 8
d_v = 8
n_heads = 4
d_ff = 64

LN_EPS = 1e-5
MASK_FILL = -1e9
_BF16 = jnp.bfloat16


def _layer_norm(x, g, b):
    mu = jnp.mean(x, axis=-1, keepdims=True)
    var = jnp.mean((x - mu) ** 2, axis=-1, keepdims=True)
    return (x - mu) * lax.rsqrt(var + LN_EPS) * g + b


# --------------------------- Pallas kernel ---------------------------
def _make_decoder_kernel(B, Sq, Sk):
    H = n_heads
    N = H * B
    HK = H * d_k          # 32 (== d_model for this model)
    HV = H * d_v          # 32
    inv_sqrt_dk = 1.0 / math.sqrt(d_k)

    def kernel(x_ref, mask_ref, wmha_ref, wffn_ref, vec_ref,
               out_ref, attn1_ref, attn2_ref):
        x_all = x_ref[...]                      # (B, Sq+Sk, d_model) f32
        dec = x_all[:, :Sq, :]                  # (B, Sq, d_model)
        enc = x_all[:, Sq:, :]                  # (B, Sk, d_model)
        masks = mask_ref[...]                   # (B, Sq, Sq+Sk) int32
        smask = masks[:, :, :Sq] > 0            # (B, Sq, Sq) bool
        emask = masks[:, :, Sq:] > 0            # (B, Sq, Sk) bool
        wmha = wmha_ref[...]                    # (2, d_model, 4*HK) bf16
        wffn = wffn_ref[...]                    # (2, d_ff, d_ff)    bf16
        vec = vec_ref[...]                      # (8, 128)           f32

        def split_heads(t):
            # (B, S, H*dh) -> (H*B, S, dh), n = h*B + b (leading-dim stack)
            dh = t.shape[-1] // H
            return jnp.concatenate(
                [t[:, :, h * dh:(h + 1) * dh] for h in range(H)], axis=0)

        def merge_heads(t):
            # (H*B, S, dh) -> (B, S, H*dh) (lane concat, head-major)
            return jnp.concatenate(
                [t[h * B:(h + 1) * B] for h in range(H)], axis=-1)

        def mha(q3, kv3, w_slab, bias_qkv, bo, gamma, beta, mask, attn_ref,
                shared_qkv):
            Sq_ = q3.shape[1]
            Skv = kv3.shape[1]
            q2 = q3.reshape(B * Sq_, d_model).astype(_BF16)
            if shared_qkv:
                # self-attn: one (B*Sq, d_model) @ (d_model, 3*HK) matmul
                qkv = jnp.dot(q2, w_slab[:, :3 * HK],
                              preferred_element_type=jnp.float32) + bias_qkv
                q_s = qkv[:, :HK]
                k_s = qkv[:, HK:2 * HK]
                v_s = qkv[:, 2 * HK:3 * HK]
            else:
                kv2 = kv3.reshape(B * Skv, d_model).astype(_BF16)
                q_s = jnp.dot(q2, w_slab[:, :HK],
                              preferred_element_type=jnp.float32) \
                    + bias_qkv[:, :HK]
                kv_s = jnp.dot(kv2, w_slab[:, HK:3 * HK],
                               preferred_element_type=jnp.float32) \
                    + bias_qkv[:, HK:]
                k_s = kv_s[:, :HK]
                v_s = kv_s[:, HK:]

            qh = split_heads(q_s.reshape(B, Sq_, HK))        # (N, Sq_, d_k)
            kh = split_heads(k_s.reshape(B, Skv, HK))        # (N, Skv, d_k)
            vh = split_heads(v_s.reshape(B, Skv, HV))        # (N, Skv, d_v)

            scores = jnp.einsum('nqd,nkd->nqk',
                                qh.astype(_BF16), kh.astype(_BF16),
                                preferred_element_type=jnp.float32) * inv_sqrt_dk
            # broadcast mask over heads on the leading dim (no lane work)
            mask_n = jnp.broadcast_to(mask[None], (H, B, Sq_, Skv)
                                      ).reshape(N, Sq_, Skv)
            scores = jnp.where(mask_n, MASK_FILL, scores)
            scores = scores - jnp.max(scores, axis=-1, keepdims=True)
            e = jnp.exp(scores)
            attn = e * pl.reciprocal(jnp.sum(e, axis=-1, keepdims=True),
                                     approx=True)
            attn_ref[...] = attn.astype(attn_ref.dtype)      # bf16 store

            ctx = jnp.einsum('nqk,nkd->nqd',
                             attn.astype(_BF16), vh.astype(_BF16),
                             preferred_element_type=jnp.float32)  # (N, Sq_, d_v)
            # fold heads into lanes -> one output-projection matmul
            ctx_cat = merge_heads(ctx).reshape(B * Sq_, HV)
            o = jnp.dot(ctx_cat.astype(_BF16), w_slab[:, 3 * HK:],
                        preferred_element_type=jnp.float32)       # (B*Sq_, d_model)
            o = o.reshape(B, Sq_, d_model) + bo + q3
            return _layer_norm(o, gamma, beta)

        # 1) decoder self-attention
        d1 = mha(dec, dec, wmha[0], vec[0:1, :3 * HK],
                 vec[1:2, 0:32], vec[1:2, 32:64], vec[1:2, 64:96],
                 smask, attn1_ref, shared_qkv=True)
        # 2) decoder-encoder cross-attention
        d2 = mha(d1, enc, wmha[1], vec[2:3, :3 * HK],
                 vec[3:4, 0:32], vec[3:4, 32:64], vec[3:4, 64:96],
                 emask, attn2_ref, shared_qkv=False)
        # 3) position-wise FFN (Conv1d k=1 == per-position Linear), flattened
        wf1 = wffn[0, :d_model, :]                  # (d_model, d_ff)
        wf2 = wffn[1, :, :d_model]                  # (d_ff, d_model)
        d2_rows = d2.reshape(B * Sq, d_model).astype(_BF16)
        h1 = jnp.dot(d2_rows, wf1, preferred_element_type=jnp.float32) \
            + vec[4:5, :d_ff]
        h1 = jnp.maximum(h1, 0.0)
        f = jnp.dot(h1.astype(_BF16), wf2, preferred_element_type=jnp.float32) \
            + vec[4:5, d_ff:d_ff + d_model]
        f = f.reshape(B, Sq, d_model) + d2
        out_ref[...] = _layer_norm(f, vec[5:6, 0:32], vec[5:6, 32:64])

    return kernel


# ----------------------- host-side param packing -----------------------
def _pad128(v):
    v = v.reshape(-1).astype(jnp.float32)
    return jnp.pad(v, (0, 128 - v.shape[0]))


def _pack_params(p_self, p_cross, p_ffn):
    """Pack the 26 original tensors into 3 buffers (bf16 weight slabs + f32 vec).

    Relies on H*d_k == H*d_v == d_model (true here), so [Wq|Wk|Wv|Wo] lane-
    concatenate into a single (d_model, 128) slab per MHA.
    """
    def mha_pack(p):
        wq, bq, wk, bk, wv, bv, wo, bo, g, be = p
        w = jnp.concatenate([wq, wk, wv, wo], axis=1).astype(_BF16)   # (32, 128)
        b_qkv = jnp.concatenate([bq.reshape(-1), bk.reshape(-1), bv.reshape(-1)])
        b_out = jnp.concatenate([bo.reshape(-1), g.reshape(-1), be.reshape(-1)])
        return w, b_qkv, b_out

    w1, bqkv1, bout1 = mha_pack(p_self)
    w2, bqkv2, bout2 = mha_pack(p_cross)
    wmha = jnp.stack([w1, w2], axis=0)                                # (2, 32, 128) bf16

    wf1, bf1, wf2, bf2, g3, be3 = p_ffn
    wf1_p = jnp.pad(wf1, ((0, d_ff - d_model), (0, 0)))               # (64, 64)
    wf2_p = jnp.pad(wf2, ((0, 0), (0, d_ff - d_model)))               # (64, 64)
    wffn = jnp.stack([wf1_p, wf2_p], axis=0).astype(_BF16)            # (2, 64, 64) bf16

    vec = jnp.stack([
        _pad128(bqkv1), _pad128(bout1),
        _pad128(bqkv2), _pad128(bout2),
        _pad128(jnp.concatenate([bf1.reshape(-1), bf2.reshape(-1)])),
        _pad128(jnp.concatenate([g3.reshape(-1), be3.reshape(-1)])),
        jnp.zeros((128,), jnp.float32),
        jnp.zeros((128,), jnp.float32),
    ], axis=0)                                                        # (8, 128) f32
    return wmha, wffn, vec


# ------------------------------ wrapper ------------------------------
@jax.jit
def decoder_layer(dec_inputs, enc_outputs, dec_self_attn_mask, dec_enc_attn_mask,
                  p_self, p_cross, p_ffn):
    B, Sq, _ = dec_inputs.shape
    Sk = enc_outputs.shape[1]
    H = n_heads
    N = H * B

    # 5 DMA inputs total: activations, masks, 2 weight slabs, vec buffer
    x_cat = jnp.concatenate([dec_inputs.astype(jnp.float32),
                             enc_outputs.astype(jnp.float32)], axis=1)
    mask_cat = jnp.concatenate([dec_self_attn_mask.astype(jnp.int32),
                                dec_enc_attn_mask.astype(jnp.int32)], axis=-1)
    wmha, wffn, vec = _pack_params(p_self, p_cross, p_ffn)

    inputs = (x_cat, mask_cat, wmha, wffn, vec)

    def full_spec(a):
        nd = a.ndim
        return pl.BlockSpec(a.shape, lambda i, _nd=nd: (0,) * _nd)

    out_shape = (
        jax.ShapeDtypeStruct((B, Sq, d_model), jnp.float32),
        jax.ShapeDtypeStruct((N, Sq, Sq), _BF16),
        jax.ShapeDtypeStruct((N, Sq, Sk), _BF16),
    )
    out_specs = [
        pl.BlockSpec((B, Sq, d_model), lambda i: (0, 0, 0)),
        pl.BlockSpec((N, Sq, Sq), lambda i: (0, 0, 0)),
        pl.BlockSpec((N, Sq, Sk), lambda i: (0, 0, 0)),
    ]

    out, attn1_n, attn2_n = pl.pallas_call(
        _make_decoder_kernel(B, Sq, Sk),
        out_shape=out_shape,
        grid_spec=pltpu.PrefetchScalarGridSpec(
            num_scalar_prefetch=0,
            grid=(1,),                      # whole problem resident in VMEM
            in_specs=[full_spec(a) for a in inputs],
            out_specs=out_specs,
        ),
        compiler_params=pltpu.CompilerParams(
            dimension_semantics=("arbitrary",)),
    )(*inputs)

    # fused (jit) reorder/upcast of the attention maps
    attn_self = attn1_n.astype(jnp.float32).reshape(H, B, Sq, Sq).transpose(1, 0, 2, 3)
    attn_enc = attn2_n.astype(jnp.float32).reshape(H, B, Sq, Sk).transpose(1, 0, 2, 3)
    return out, attn_self, attn_enc


# ------------------------- pure-JAX reference -------------------------
def _mha_ref(Q, K, V, mask, p):
    wq, bq, wk, bk, wv, bv, wo, bo, g, be = p
    B, Sq, _ = Q.shape
    Sk = K.shape[1]
    q = (Q @ wq + bq).reshape(B, Sq, n_heads, d_k).transpose(0, 2, 1, 3)
    k = (K @ wk + bk).reshape(B, Sk, n_heads, d_k).transpose(0, 2, 1, 3)
    v = (V @ wv + bv).reshape(B, Sk, n_heads, d_v).transpose(0, 2, 1, 3)
    scores = jnp.einsum('bhqd,bhkd->bhqk', q, k) / np.sqrt(d_k)
    scores = jnp.where(mask[:, None, :, :], MASK_FILL, scores)
    attn = jax.nn.softmax(scores, axis=-1)
    ctx = jnp.einsum('bhqk,bhkd->bhqd', attn, v).transpose(0, 2, 1, 3)
    ctx = ctx.reshape(B, Sq, n_heads * d_v)
    out = ctx @ wo + bo
    return _layer_norm(out + Q, g, be), attn


def _decoder_layer_ref(dec, enc, smask, emask, p1, p2, pf):
    with jax.default_matmul_precision("highest"):
        d1, a1 = _mha_ref(dec, dec, dec, smask, p1)
        d2, a2 = _mha_ref(d1, enc, enc, emask, p2)
        wf1, bf1, wf2, bf2, g3, be3 = pf
        h = jnp.maximum(d2 @ wf1 + bf1, 0.0)
        f = h @ wf2 + bf2
        out = _layer_norm(f + d2, g3, be3)
    return out, a1, a2


# ------------------------- parameter init -------------------------
def _init_mha_params(key):
    ks = jax.random.split(key, 8)
    wq = 0.1 * jax.random.normal(ks[0], (d_model, n_heads * d_k), jnp.float32)
    bq = 0.1 * jax.random.normal(ks[1], (1, n_heads * d_k), jnp.float32)
    wk = 0.1 * jax.random.normal(ks[2], (d_model, n_heads * d_k), jnp.float32)
    bk = 0.1 * jax.random.normal(ks[3], (1, n_heads * d_k), jnp.float32)
    wv = 0.1 * jax.random.normal(ks[4], (d_model, n_heads * d_v), jnp.float32)
    bv = 0.1 * jax.random.normal(ks[5], (1, n_heads * d_v), jnp.float32)
    wo = 0.1 * jax.random.normal(ks[6], (n_heads * d_v, d_model), jnp.float32)
    bo = 0.1 * jax.random.normal(ks[7], (1, d_model), jnp.float32)
    g = jnp.ones((1, d_model), jnp.float32)
    be = jnp.zeros((1, d_model), jnp.float32)
    return (wq, bq, wk, bk, wv, bv, wo, bo, g, be)


def _init_ffn_params(key):
    ks = jax.random.split(key, 4)
    wf1 = 0.1 * jax.random.normal(ks[0], (d_model, d_ff), jnp.float32)
    bf1 = 0.1 * jax.random.normal(ks[1], (1, d_ff), jnp.float32)
    wf2 = 0.1 * jax.random.normal(ks[2], (d_ff, d_model), jnp.float32)
    bf2 = 0.1 * jax.random.normal(ks[3], (1, d_model), jnp.float32)
    g = jnp.ones((1, d_model), jnp.float32)
    be = jnp.zeros((1, d_model), jnp.float32)
    return (wf1, bf1, wf2, bf2, g, be)


if __name__ == "__main__":
    B, S_dec, S_enc = 2, 8, 16
    root = jax.random.PRNGKey(0)
    k_dec, k_enc, k_sm, k_em, k_p1, k_p2, k_pf = jax.random.split(root, 7)

    dec_inputs = jax.random.normal(k_dec, (B, S_dec, d_model), jnp.float32)
    enc_outputs = jax.random.normal(k_enc, (B, S_enc, d_model), jnp.float32)
    # boolean masks: True == masked (as in torch masked_fill_)
    dec_self_mask = jax.random.bernoulli(k_sm, 0.3, (B, S_dec, S_dec))
    dec_enc_mask = jax.random.bernoulli(k_em, 0.3, (B, S_dec, S_enc))

    p_self = _init_mha_params(k_p1)
    p_cross = _init_mha_params(k_p2)
    p_ffn = _init_ffn_params(k_pf)

    out, attn_self, attn_enc = decoder_layer(
        dec_inputs, enc_outputs, dec_self_mask, dec_enc_mask,
        p_self, p_cross, p_ffn)
    jax.block_until_ready((out, attn_self, attn_enc))

    # correctness check against pure-JAX (f32) reference
    ref_out, ref_a1, ref_a2 = _decoder_layer_ref(
        dec_inputs, enc_outputs, dec_self_mask, dec_enc_mask,
        p_self, p_cross, p_ffn)
    np.testing.assert_allclose(np.asarray(out), np.asarray(ref_out),
                               atol=3e-2, rtol=3e-2)
    np.testing.assert_allclose(np.asarray(attn_self), np.asarray(ref_a1),
                               atol=2.5e-2, rtol=2.5e-2)
    np.testing.assert_allclose(np.asarray(attn_enc), np.asarray(ref_a2),
                               atol=2.5e-2, rtol=2.5e-2)

    print("KERNEL_OK")
</pallas_src>

<mosaic_0001>
module attributes {stable_mosaic.version = 11 : i64} {
  func.func @kernel(%arg0: i32, %arg1: memref<2x24x32xf32, #tpu.memory_space<vmem>>, %arg2: memref<2x8x24xi32, #tpu.memory_space<vmem>>, %arg3: memref<2x32x128xbf16, #tpu.memory_space<vmem>>, %arg4: memref<2x64x64xbf16, #tpu.memory_space<vmem>>, %arg5: memref<8x128xf32, #tpu.memory_space<vmem>>, %arg6: memref<2x8x32xf32, #tpu.memory_space<vmem>>, %arg7: memref<8x8x8xbf16, #tpu.memory_space<vmem>>, %arg8: memref<8x8x16xbf16, #tpu.memory_space<vmem>>) attributes {dimension_semantics = [#tpu.dimension_semantics<arbitrary>], iteration_bounds = array<i64: 1>, scalar_prefetch = 0 : i64, scratch_operands = 0 : i64, tpu.core_type = #tpu.core_type<tc>, window_params = [{pipeline_mode = #tpu.pipeline_mode<synchronous>, transform_indices = @transform_0, window_bounds = array<i64: 2, 24, 32>}, {pipeline_mode = #tpu.pipeline_mode<synchronous>, transform_indices = @transform_1, window_bounds = array<i64: 2, 8, 24>}, {pipeline_mode = #tpu.pipeline_mode<synchronous>, transform_indices = @transform_2, window_bounds = array<i64: 2, 32, 128>}, {pipeline_mode = #tpu.pipeline_mode<synchronous>, transform_indices = @transform_3, window_bounds = array<i64: 2, 64, 64>}, {pipeline_mode = #tpu.pipeline_mode<synchronous>, transform_indices = @transform_4, window_bounds = array<i64: 8, 128>}, {pipeline_mode = #tpu.pipeline_mode<synchronous>, transform_indices = @transform_5, window_bounds = array<i64: 2, 8, 32>}, {pipeline_mode = #tpu.pipeline_mode<synchronous>, transform_indices = @transform_6, window_bounds = array<i64: 8, 8, 8>}, {pipeline_mode = #tpu.pipeline_mode<synchronous>, transform_indices = @transform_7, window_bounds = array<i64: 8, 8, 16>}]} {
    %c0 = arith.constant 0 : index
    %c0_0 = arith.constant 0 : index
    %c0_1 = arith.constant 0 : index
    %0 = vector.load %arg1[%c0, %c0_0, %c0_1] : memref<2x24x32xf32, #tpu.memory_space<vmem>>, vector<2x24x32xf32>
    %1 = vector.extract_strided_slice %0 {offsets = [0, 0, 0], sizes = [2, 8, 32], strides = [1, 1, 1]} : vector<2x24x32xf32> to vector<2x8x32xf32>
    %2 = vector.extract_strided_slice %0 {offsets = [0, 8, 0], sizes = [2, 16, 32], strides = [1, 1, 1]} : vector<2x24x32xf32> to vector<2x16x32xf32>
    %c0_2 = arith.constant 0 : index
    %c0_3 = arith.constant 0 : index
    %c0_4 = arith.constant 0 : index
    %3 = vector.load %arg2[%c0_2, %c0_3, %c0_4] : memref<2x8x24xi32, #tpu.memory_space<vmem>>, vector<2x8x24xi32>
    %4 = vector.extract_strided_slice %3 {offsets = [0, 0, 0], sizes = [2, 8, 8], strides = [1, 1, 1]} : vector<2x8x24xi32> to vector<2x8x8xi32>
    %c0_i32 = arith.constant 0 : i32
    %5 = vector.broadcast %c0_i32 : i32 to vector<2x8x8xi32>
    %6 = arith.cmpi sgt, %4, %5 : vector<2x8x8xi32>
    %7 = vector.extract_strided_slice %3 {offsets = [0, 0, 8], sizes = [2, 8, 16], strides = [1, 1, 1]} : vector<2x8x24xi32> to vector<2x8x16xi32>
    %c0_i32_5 = arith.constant 0 : i32
    %8 = vector.broadcast %c0_i32_5 : i32 to vector<2x8x16xi32>
    %9 = arith.cmpi sgt, %7, %8 : vector<2x8x16xi32>
    %c0_6 = arith.constant 0 : index
    %c0_7 = arith.constant 0 : index
    %c0_8 = arith.constant 0 : index
    %10 = vector.load %arg3[%c0_6, %c0_7, %c0_8] : memref<2x32x128xbf16, #tpu.memory_space<vmem>>, vector<2x32x128xbf16>
    %c0_9 = arith.constant 0 : index
    %c0_10 = arith.constant 0 : index
    %c0_11 = arith.constant 0 : index
    %11 = vector.load %arg4[%c0_9, %c0_10, %c0_11] : memref<2x64x64xbf16, #tpu.memory_space<vmem>>, vector<2x64x64xbf16>
    %c0_12 = arith.constant 0 : index
    %c0_13 = arith.constant 0 : index
    %12 = vector.load %arg5[%c0_12, %c0_13] : memref<8x128xf32, #tpu.memory_space<vmem>>, vector<8x128xf32>
    %13 = vector.extract_strided_slice %10 {offsets = [0, 0, 0], sizes = [1, 32, 128], strides = [1, 1, 1]} : vector<2x32x128xbf16> to vector<1x32x128xbf16>
    %14 = vector.shape_cast %13 : vector<1x32x128xbf16> to vector<32x128xbf16>
    %15 = vector.extract_strided_slice %12 {offsets = [0, 0], sizes = [1, 96], strides = [1, 1]} : vector<8x128xf32> to vector<1x96xf32>
    %16 = vector.extract_strided_slice %12 {offsets = [1, 0], sizes = [1, 32], strides = [1, 1]} : vector<8x128xf32> to vector<1x32xf32>
    %17 = vector.extract_strided_slice %12 {offsets = [1, 32], sizes = [1, 32], strides = [1, 1]} : vector<8x128xf32> to vector<1x32xf32>
    %18 = vector.extract_strided_slice %12 {offsets = [1, 64], sizes = [1, 32], strides = [1, 1]} : vector<8x128xf32> to vector<1x32xf32>
    %19 = vector.shape_cast %1 : vector<2x8x32xf32> to vector<16x32xf32>
    %20 = arith.truncf %19 : vector<16x32xf32> to vector<16x32xbf16>
    %21 = vector.extract_strided_slice %14 {offsets = [0, 0], sizes = [32, 96], strides = [1, 1]} : vector<32x128xbf16> to vector<32x96xbf16>
    %cst = arith.constant dense<0.000000e+00> : vector<16x96xf32>
    %22 = tpu.matmul %20, %21, %cst {dimension_numbers = #tpu.dot_dimension_numbers<[1], [0], [0], [1], [0, 0, 1, 1], [], []>} : vector<16x32xbf16>, vector<32x96xbf16>, vector<16x96xf32> -> vector<16x96xf32>
    %23 = vector.broadcast %15 : vector<1x96xf32> to vector<16x96xf32>
    %24 = arith.addf %22, %23 : vector<16x96xf32>
    %25 = vector.extract_strided_slice %24 {offsets = [0, 0], sizes = [16, 32], strides = [1, 1]} : vector<16x96xf32> to vector<16x32xf32>
    %26 = vector.extract_strided_slice %24 {offsets = [0, 32], sizes = [16, 32], strides = [1, 1]} : vector<16x96xf32> to vector<16x32xf32>
    %27 = vector.extract_strided_slice %24 {offsets = [0, 64], sizes = [16, 32], strides = [1, 1]} : vector<16x96xf32> to vector<16x32xf32>
    %28 = vector.shape_cast %25 : vector<16x32xf32> to vector<2x8x32xf32>
    %29 = vector.extract_strided_slice %28 {offsets = [0, 0, 0], sizes = [2, 8, 8], strides = [1, 1, 1]} : vector<2x8x32xf32> to vector<2x8x8xf32>
    %30 = vector.extract_strided_slice %28 {offsets = [0, 0, 8], sizes = [2, 8, 8], strides = [1, 1, 1]} : vector<2x8x32xf32> to vector<2x8x8xf32>
    %31 = vector.extract_strided_slice %28 {offsets = [0, 0, 16], sizes = [2, 8, 8], strides = [1, 1, 1]} : vector<2x8x32xf32> to vector<2x8x8xf32>
    %32 = vector.extract_strided_slice %28 {offsets = [0, 0, 24], sizes = [2, 8, 8], strides = [1, 1, 1]} : vector<2x8x32xf32> to vector<2x8x8xf32>
    %33 = tpu.concatenate %29, %30, %31, %32 in 0 : vector<2x8x8xf32>, vector<2x8x8xf32>, vector<2x8x8xf32>, vector<2x8x8xf32> -> vector<8x8x8xf32>
    %34 = vector.shape_cast %26 : vector<16x32xf32> to vector<2x8x32xf32>
    %35 = vector.extract_strided_slice %34 {offsets = [0, 0, 0], sizes = [2, 8, 8], strides = [1, 1, 1]} : vector<2x8x32xf32> to vector<2x8x8xf32>
    %36 = vector.extract_strided_slice %34 {offsets = [0, 0, 8], sizes = [2, 8, 8], strides = [1, 1, 1]} : vector<2x8x32xf32> to vector<2x8x8xf32>
    %37 = vector.extract_strided_slice %34 {offsets = [0, 0, 16], sizes = [2, 8, 8], strides = [1, 1, 1]} : vector<2x8x32xf32> to vector<2x8x8xf32>
    %38 = vector.extract_strided_slice %34 {offsets = [0, 0, 24], sizes = [2, 8, 8], strides = [1, 1, 1]} : vector<2x8x32xf32> to vector<2x8x8xf32>
    %39 = tpu.concatenate %35, %36, %37, %38 in 0 : vector<2x8x8xf32>, vector<2x8x8xf32>, vector<2x8x8xf32>, vector<2x8x8xf32> -> vector<8x8x8xf32>
    %40 = vector.shape_cast %27 : vector<16x32xf32> to vector<2x8x32xf32>
    %41 = vector.extract_strided_slice %40 {offsets = [0, 0, 0], sizes = [2, 8, 8], strides = [1, 1, 1]} : vector<2x8x32xf32> to vector<2x8x8xf32>
    %42 = vector.extract_strided_slice %40 {offsets = [0, 0, 8], sizes = [2, 8, 8], strides = [1, 1, 1]} : vector<2x8x32xf32> to vector<2x8x8xf32>
    %43 = vector.extract_strided_slice %40 {offsets = [0, 0, 16], sizes = [2, 8, 8], strides = [1, 1, 1]} : vector<2x8x32xf32> to vector<2x8x8xf32>
    %44 = vector.extract_strided_slice %40 {offsets = [0, 0, 24], sizes = [2, 8, 8], strides = [1, 1, 1]} : vector<2x8x32xf32> to vector<2x8x8xf32>
    %45 = tpu.concatenate %41, %42, %43, %44 in 0 : vector<2x8x8xf32>, vector<2x8x8xf32>, vector<2x8x8xf32>, vector<2x8x8xf32> -> vector<8x8x8xf32>
    %46 = arith.truncf %33 : vector<8x8x8xf32> to vector<8x8x8xbf16>
    %47 = arith.truncf %39 : vector<8x8x8xf32> to vector<8x8x8xbf16>
    "tpu.trace_start"() <{level = 10 : i32, message = "nqd,nkd->nqk"}> : () -> ()
    %cst_14 = arith.constant dense<0.000000e+00> : vector<8x8x8xf32>
    %48 = tpu.matmul %46, %47, %cst_14 {dimension_numbers = #tpu.dot_dimension_numbers<[2], [2], [1], [1], [0, 0, 0, 1, 1, 1], [0], [0]>} : vector<8x8x8xbf16>, vector<8x8x8xbf16>, vector<8x8x8xf32> -> vector<8x8x8xf32>
    "tpu.trace_stop"() : () -> ()
    %cst_15 = arith.constant 0.353553385 : f32
    %49 = vector.broadcast %cst_15 : f32 to vector<8x8x8xf32>
    %50 = arith.mulf %48, %49 : vector<8x8x8xf32>
    %51 = vector.shape_cast %6 : vector<2x8x8xi1> to vector<1x2x8x8xi1>
    %52 = vector.shape_cast %51 : vector<1x2x8x8xi1> to vector<1x2x8x8xi1>
    %53 = vector.broadcast %52 : vector<1x2x8x8xi1> to vector<4x2x8x8xi1>
    %54 = vector.shape_cast %53 : vector<4x2x8x8xi1> to vector<8x8x8xi1>
    %cst_16 = arith.constant -1.000000e+09 : f32
    %55 = vector.broadcast %cst_16 : f32 to vector<8x8x8xf32>
    %56 = arith.select %54, %55, %50 : vector<8x8x8xi1>, vector<8x8x8xf32>
    %cst_17 = arith.constant dense<0xFF800000> : vector<8x8xf32>
    %57 = vector.multi_reduction <maximumf>, %56, %cst_17 [2] : vector<8x8x8xf32> to vector<8x8xf32>
    %58 = vector.shape_cast %57 : vector<8x8xf32> to vector<8x8x1xf32>
    %59 = vector.broadcast %58 : vector<8x8x1xf32> to vector<8x8x8xf32>
    %60 = arith.subf %56, %59 : vector<8x8x8xf32>
    %61 = math.exp %60 : vector<8x8x8xf32>
    %cst_18 = arith.constant dense<0.000000e+00> : vector<8x8xf32>
    %62 = vector.multi_reduction <add>, %61, %cst_18 [2] : vector<8x8x8xf32> to vector<8x8xf32>
    %63 = vector.shape_cast %62 : vector<8x8xf32> to vector<8x8x1xf32>
    %64 = tpu.reciprocal %63 {approx = true} : vector<8x8x1xf32> -> vector<8x8x1xf32>
    %65 = vector.broadcast %64 : vector<8x8x1xf32> to vector<8x8x8xf32>
    %66 = arith.mulf %61, %65 : vector<8x8x8xf32>
    %67 = arith.truncf %66 : vector<8x8x8xf32> to vector<8x8x8xbf16>
    %c0_19 = arith.constant 0 : index
    %c0_20 = arith.constant 0 : index
    %c0_21 = arith.constant 0 : index
    %68 = vector.load %arg7[%c0_19, %c0_20, %c0_21] : memref<8x8x8xbf16, #tpu.memory_space<vmem>>, vector<8x8x8xbf16>
    tpu.vector_store %arg7[%c0_19, %c0_20, %c0_21], %67 {strides = array<i32>} : memref<8x8x8xbf16, #tpu.memory_space<vmem>>, vector<8x8x8xbf16>,
    %69 = arith.truncf %66 : vector<8x8x8xf32> to vector<8x8x8xbf16>
    %70 = arith.truncf %45 : vector<8x8x8xf32> to vector<8x8x8xbf16>
    "tpu.trace_start"() <{level = 10 : i32, message = "nqk,nkd->nqd"}> : () -> ()
    %cst_22 = arith.constant dense<0.000000e+00> : vector<8x8x8xf32>
    %71 = tpu.matmul %69, %70, %cst_22 {dimension_numbers = #tpu.dot_dimension_numbers<[2], [1], [1], [2], [0, 0, 0, 1, 1, 2], [0], [0]>} : vector<8x8x8xbf16>, vector<8x8x8xbf16>, vector<8x8x8xf32> -> vector<8x8x8xf32>
    "tpu.trace_stop"() : () -> ()
    %72 = vector.extract_strided_slice %71 {offsets = [0, 0, 0], sizes = [2, 8, 8], strides = [1, 1, 1]} : vector<8x8x8xf32> to vector<2x8x8xf32>
    %73 = vector.extract_strided_slice %71 {offsets = [2, 0, 0], sizes = [2, 8, 8], strides = [1, 1, 1]} : vector<8x8x8xf32> to vector<2x8x8xf32>
    %74 = vector.extract_strided_slice %71 {offsets = [4, 0, 0], sizes = [2, 8, 8], strides = [1, 1, 1]} : vector<8x8x8xf32> to vector<2x8x8xf32>
    %75 = vector.extract_strided_slice %71 {offsets = [6, 0, 0], sizes = [2, 8, 8], strides = [1, 1, 1]} : vector<8x8x8xf32> to vector<2x8x8xf32>
    %76 = tpu.concatenate %72, %73, %74, %75 in 2 : vector<2x8x8xf32>, vector<2x8x8xf32>, vector<2x8x8xf32>, vector<2x8x8xf32> -> vector<2x8x32xf32>
    %77 = vector.shape_cast %76 : vector<2x8x32xf32> to vector<16x32xf32>
    %78 = arith.truncf %77 : vector<16x32xf32> to vector<16x32xbf16>
    %79 = vector.extract_strided_slice %14 {offsets = [0, 96], sizes = [32, 32], strides = [1, 1]} : vector<32x128xbf16> to vector<32x32xbf16>
    %cst_23 = arith.constant dense<0.000000e+00> : vector<16x32xf32>
    %80 = tpu.matmul %78, %79, %cst_23 {dimension_numbers = #tpu.dot_dimension_numbers<[1], [0], [0], [1], [0, 0, 1, 1], [], []>} : vector<16x32xbf16>, vector<32x32xbf16>, vector<16x32xf32> -> vector<16x32xf32>
    %81 = vector.shape_cast %80 : vector<16x32xf32> to vector<2x8x32xf32>
    %82 = vector.shape_cast %16 : vector<1x32xf32> to vector<1x1x32xf32>
    %83 = vector.broadcast %82 : vector<1x1x32xf32> to vector<2x8x32xf32>
    %84 = arith.addf %81, %83 : vector<2x8x32xf32>
    %85 = arith.addf %84, %1 : vector<2x8x32xf32>
    %cst_24 = arith.constant dense<0.000000e+00> : vector<2x8xf32>
    %86 = vector.multi_reduction <add>, %85, %cst_24 [2] : vector<2x8x32xf32> to vector<2x8xf32>
    %87 = vector.shape_cast %86 : vector<2x8xf32> to vector<2x8x1xf32>
    %cst_25 = arith.constant 3.200000e+01 : f32
    %88 = vector.broadcast %cst_25 : f32 to vector<2x8x1xf32>
    %89 = arith.divf %87, %88 : vector<2x8x1xf32>
    %90 = vector.broadcast %89 : vector<2x8x1xf32> to vector<2x8x32xf32>
    %91 = arith.subf %85, %90 : vector<2x8x32xf32>
    %92 = arith.mulf %91, %91 : vector<2x8x32xf32>
    %cst_26 = arith.constant dense<0.000000e+00> : vector<2x8xf32>
    %93 = vector.multi_reduction <add>, %92, %cst_26 [2] : vector<2x8x32xf32> to vector<2x8xf32>
    %94 = vector.shape_cast %93 : vector<2x8xf32> to vector<2x8x1xf32>
    %cst_27 = arith.constant 3.200000e+01 : f32
    %95 = vector.broadcast %cst_27 : f32 to vector<2x8x1xf32>
    %96 = arith.divf %94, %95 : vector<2x8x1xf32>
    %97 = vector.broadcast %89 : vector<2x8x1xf32> to vector<2x8x32xf32>
    %98 = arith.subf %85, %97 : vector<2x8x32xf32>
    %cst_28 = arith.constant 9.99999974E-6 : f32
    %99 = vector.broadcast %cst_28 : f32 to vector<2x8x1xf32>
    %100 = arith.addf %96, %99 : vector<2x8x1xf32>
    %101 = math.rsqrt %100 : vector<2x8x1xf32>
    %102 = vector.broadcast %101 : vector<2x8x1xf32> to vector<2x8x32xf32>
    %103 = arith.mulf %98, %102 : vector<2x8x32xf32>
    %104 = vector.shape_cast %17 : vector<1x32xf32> to vector<1x1x32xf32>
    %105 = vector.broadcast %104 : vector<1x1x32xf32> to vector<2x8x32xf32>
    %106 = arith.mulf %103, %105 : vector<2x8x32xf32>
    %107 = vector.shape_cast %18 : vector<1x32xf32> to vector<1x1x32xf32>
    %108 = vector.broadcast %107 : vector<1x1x32xf32> to vector<2x8x32xf32>
    %109 = arith.addf %106, %108 : vector<2x8x32xf32>
    %110 = vector.extract_strided_slice %10 {offsets = [1, 0, 0], sizes = [1, 32, 128], strides = [1, 1, 1]} : vector<2x32x128xbf16> to vector<1x32x128xbf16>
    %111 = vector.shape_cast %110 : vector<1x32x128xbf16> to vector<32x128xbf16>
    %112 = vector.extract_strided_slice %12 {offsets = [2, 0], sizes = [1, 96], strides = [1, 1]} : vector<8x128xf32> to vector<1x96xf32>
    %113 = vector.extract_strided_slice %12 {offsets = [3, 0], sizes = [1, 32], strides = [1, 1]} : vector<8x128xf32> to vector<1x32xf32>
    %114 = vector.extract_strided_slice %12 {offsets = [3, 32], sizes = [1, 32], strides = [1, 1]} : vector<8x128xf32> to vector<1x32xf32>
    %115 = vector.extract_strided_slice %12 {offsets = [3, 64], sizes = [1, 32], strides = [1, 1]} : vector<8x128xf32> to vector<1x32xf32>
    %116 = vector.shape_cast %109 : vector<2x8x32xf32> to vector<16x32xf32>
    %117 = arith.truncf %116 : vector<16x32xf32> to vector<16x32xbf16>
    %118 = vector.shape_cast %2 : vector<2x16x32xf32> to vector<32x32xf32>
    %119 = arith.truncf %118 : vector<32x32xf32> to vector<32x32xbf16>
    %120 = vector.extract_strided_slice %111 {offsets = [0, 0], sizes = [32, 32], strides = [1, 1]} : vector<32x128xbf16> to vector<32x32xbf16>
    %cst_29 = arith.constant dense<0.000000e+00> : vector<16x32xf32>
    %121 = tpu.matmul %117, %120, %cst_29 {dimension_numbers = #tpu.dot_dimension_numbers<[1], [0], [0], [1], [0, 0, 1, 1], [], []>} : vector<16x32xbf16>, vector<32x32xbf16>, vector<16x32xf32> -> vector<16x32xf32>
    %122 = vector.extract_strided_slice %112 {offsets = [0, 0], sizes = [1, 32], strides = [1, 1]} : vector<1x96xf32> to vector<1x32xf32>
    %123 = vector.broadcast %122 : vector<1x32xf32> to vector<16x32xf32>
    %124 = arith.addf %121, %123 : vector<16x32xf32>
    %125 = vector.extract_strided_slice %111 {offsets = [0, 32], sizes = [32, 64], strides = [1, 1]} : vector<32x128xbf16> to vector<32x64xbf16>
    %cst_30 = arith.constant dense<0.000000e+00> : vector<32x64xf32>
    %126 = tpu.matmul %119, %125, %cst_30 {dimension_numbers = #tpu.dot_dimension_numbers<[1], [0], [0], [1], [0, 0, 1, 1], [], []>} : vector<32x32xbf16>, vector<32x64xbf16>, vector<32x64xf32> -> vector<32x64xf32>
    %127 = vector.extract_strided_slice %112 {offsets = [0, 32], sizes = [1, 64], strides = [1, 1]} : vector<1x96xf32> to vector<1x64xf32>
    %128 = vector.broadcast %127 : vector<1x64xf32> to vector<32x64xf32>
    %129 = arith.addf %126, %128 : vector<32x64xf32>
    %130 = vector.extract_strided_slice %129 {offsets = [0, 0], sizes = [32, 32], strides = [1, 1]} : vector<32x64xf32> to vector<32x32xf32>
    %131 = vector.extract_strided_slice %129 {offsets = [0, 32], sizes = [32, 32], strides = [1, 1]} : vector<32x64xf32> to vector<32x32xf32>
    %132 = vector.shape_cast %124 : vector<16x32xf32> to vector<2x8x32xf32>
    %133 = vector.extract_strided_slice %132 {offsets = [0, 0, 0], sizes = [2, 8, 8], strides = [1, 1, 1]} : vector<2x8x32xf32> to vector<2x8x8xf32>
    %134 = vector.extract_strided_slice %132 {offsets = [0, 0, 8], sizes = [2, 8, 8], strides = [1, 1, 1]} : vector<2x8x32xf32> to vector<2x8x8xf32>
    %135 = vector.extract_strided_slice %132 {offsets = [0, 0, 16], sizes = [2, 8, 8], strides = [1, 1, 1]} : vector<2x8x32xf32> to vector<2x8x8xf32>
    %136 = vector.extract_strided_slice %132 {offsets = [0, 0, 24], sizes = [2, 8, 8], strides = [1, 1, 1]} : vector<2x8x32xf32> to vector<2x8x8xf32>
    %137 = tpu.concatenate %133, %134, %135, %136 in 0 : vector<2x8x8xf32>, vector<2x8x8xf32>, vector<2x8x8xf32>, vector<2x8x8xf32> -> vector<8x8x8xf32>
    %138 = vector.shape_cast %130 : vector<32x32xf32> to vector<2x16x32xf32>
    %139 = vector.extract_strided_slice %138 {offsets = [0, 0, 0], sizes = [2, 16, 8], strides = [1, 1, 1]} : vector<2x16x32xf32> to vector<2x16x8xf32>
    %140 = vector.extract_strided_slice %138 {offsets = [0, 0, 8], sizes = [2, 16, 8], strides = [1, 1, 1]} : vector<2x16x32xf32> to vector<2x16x8xf32>
    %141 = vector.extract_strided_slice %138 {offsets = [0, 0, 16], sizes = [2, 16, 8], strides = [1, 1, 1]} : vector<2x16x32xf32> to vector<2x16x8xf32>
    %142 = vector.extract_strided_slice %138 {offsets = [0, 0, 24], sizes = [2, 16, 8], strides = [1, 1, 1]} : vector<2x16x32xf32> to vector<2x16x8xf32>
    %143 = tpu.concatenate %139, %140, %141, %142 in 0 : vector<2x16x8xf32>, vector<2x16x8xf32>, vector<2x16x8xf32>, vector<2x16x8xf32> -> vector<8x16x8xf32>
    %144 = vector.shape_cast %131 : vector<32x32xf32> to vector<2x16x32xf32>
    %145 = vector.extract_strided_slice %144 {offsets = [0, 0, 0], sizes = [2, 16, 8], strides = [1, 1, 1]} : vector<2x16x32xf32> to vector<2x16x8xf32>
    %146 = vector.extract_strided_slice %144 {offsets = [0, 0, 8], sizes = [2, 16, 8], strides = [1, 1, 1]} : vector<2x16x32xf32> to vector<2x16x8xf32>
    %147 = vector.extract_strided_slice %144 {offsets = [0, 0, 16], sizes = [2, 16, 8], strides = [1, 1, 1]} : vector<2x16x32xf32> to vector<2x16x8xf32>
    %148 = vector.extract_strided_slice %144 {offsets = [0, 0, 24], sizes = [2, 16, 8], strides = [1, 1, 1]} : vector<2x16x32xf32> to vector<2x16x8xf32>
    %149 = tpu.concatenate %145, %146, %147, %148 in 0 : vector<2x16x8xf32>, vector<2x16x8xf32>, vector<2x16x8xf32>, vector<2x16x8xf32> -> vector<8x16x8xf32>
    %150 = arith.truncf %137 : vector<8x8x8xf32> to vector<8x8x8xbf16>
    %151 = arith.truncf %143 : vector<8x16x8xf32> to vector<8x16x8xbf16>
    "tpu.trace_start"() <{level = 10 : i32, message = "nqd,nkd->nqk"}> : () -> ()
    %cst_31 = arith.constant dense<0.000000e+00> : vector<8x8x16xf32>
    %152 = tpu.matmul %150, %151, %cst_31 {dimension_numbers = #tpu.dot_dimension_numbers<[2], [2], [1], [1], [0, 0, 0, 1, 1, 1], [0], [0]>} : vector<8x8x8xbf16>, vector<8x16x8xbf16>, vector<8x8x16xf32> -> vector<8x8x16xf32>
    "tpu.trace_stop"() : () -> ()
    %cst_32 = arith.constant 0.353553385 : f32
    %153 = vector.broadcast %cst_32 : f32 to vector<8x8x16xf32>
    %154 = arith.mulf %152, %153 : vector<8x8x16xf32>
    %155 = vector.shape_cast %9 : vector<2x8x16xi1> to vector<1x2x8x16xi1>
    %156 = vector.shape_cast %155 : vector<1x2x8x16xi1> to vector<1x2x8x16xi1>
    %157 = vector.broadcast %156 : vector<1x2x8x16xi1> to vector<4x2x8x16xi1>
    %158 = vector.shape_cast %157 : vector<4x2x8x16xi1> to vector<8x8x16xi1>
    %cst_33 = arith.constant -1.000000e+09 : f32
    %159 = vector.broadcast %cst_33 : f32 to vector<8x8x16xf32>
    %160 = arith.select %158, %159, %154 : vector<8x8x16xi1>, vector<8x8x16xf32>
    %cst_34 = arith.constant dense<0xFF800000> : vector<8x8xf32>
    %161 = vector.multi_reduction <maximumf>, %160, %cst_34 [2] : vector<8x8x16xf32> to vector<8x8xf32>
    %162 = vector.shape_cast %161 : vector<8x8xf32> to vector<8x8x1xf32>
    %163 = vector.broadcast %162 : vector<8x8x1xf32> to vector<8x8x16xf32>
    %164 = arith.subf %160, %163 : vector<8x8x16xf32>
    %165 = math.exp %164 : vector<8x8x16xf32>
    %cst_35 = arith.constant dense<0.000000e+00> : vector<8x8xf32>
    %166 = vector.multi_reduction <add>, %165, %cst_35 [2] : vector<8x8x16xf32> to vector<8x8xf32>
    %167 = vector.shape_cast %166 : vector<8x8xf32> to vector<8x8x1xf32>
    %168 = tpu.reciprocal %167 {approx = true} : vector<8x8x1xf32> -> vector<8x8x1xf32>
    %169 = vector.broadcast %168 : vector<8x8x1xf32> to vector<8x8x16xf32>
    %170 = arith.mulf %165, %169 : vector<8x8x16xf32>
    %171 = arith.truncf %170 : vector<8x8x16xf32> to vector<8x8x16xbf16>
    %c0_36 = arith.constant 0 : index
    %c0_37 = arith.constant 0 : index
    %c0_38 = arith.constant 0 : index
    %172 = vector.load %arg8[%c0_36, %c0_37, %c0_38] : memref<8x8x16xbf16, #tpu.memory_space<vmem>>, vector<8x8x16xbf16>
    tpu.vector_store %arg8[%c0_36, %c0_37, %c0_38], %171 {strides = array<i32>} : memref<8x8x16xbf16, #tpu.memory_space<vmem>>, vector<8x8x16xbf16>,
    %173 = arith.truncf %170 : vector<8x8x16xf32> to vector<8x8x16xbf16>
    %174 = arith.truncf %149 : vector<8x16x8xf32> to vector<8x16x8xbf16>
    "tpu.trace_start"() <{level = 10 : i32, message = "nqk,nkd->nqd"}> : () -> ()
    %cst_39 = arith.constant dense<0.000000e+00> : vector<8x8x8xf32>
    %175 = tpu.matmul %173, %174, %cst_39 {dimension_numbers = #tpu.dot_dimension_numbers<[2], [1], [1], [2], [0, 0, 0, 1, 1, 2], [0], [0]>} : vector<8x8x16xbf16>, vector<8x16x8xbf16>, vector<8x8x8xf32> -> vector<8x8x8xf32>
    "tpu.trace_stop"() : () -> ()
    %176 = vector.extract_strided_slice %175 {offsets = [0, 0, 0], sizes = [2, 8, 8], strides = [1, 1, 1]} : vector<8x8x8xf32> to vector<2x8x8xf32>
    %177 = vector.extract_strided_slice %175 {offsets = [2, 0, 0], sizes = [2, 8, 8], strides = [1, 1, 1]} : vector<8x8x8xf32> to vector<2x8x8xf32>
    %178 = vector.extract_strided_slice %175 {offsets = [4, 0, 0], sizes = [2, 8, 8], strides = [1, 1, 1]} : vector<8x8x8xf32> to vector<2x8x8xf32>
    %179 = vector.extract_strided_slice %175 {offsets = [6, 0, 0], sizes = [2, 8, 8], strides = [1, 1, 1]} : vector<8x8x8xf32> to vector<2x8x8xf32>
    %180 = tpu.concatenate %176, %177, %178, %179 in 2 : vector<2x8x8xf32>, vector<2x8x8xf32>, vector<2x8x8xf32>, vector<2x8x8xf32> -> vector<2x8x32xf32>
    %181 = vector.shape_cast %180 : vector<2x8x32xf32> to vector<16x32xf32>
    %182 = arith.truncf %181 : vector<16x32xf32> to vector<16x32xbf16>
    %183 = vector.extract_strided_slice %111 {offsets = [0, 96], sizes = [32, 32], strides = [1, 1]} : vector<32x128xbf16> to vector<32x32xbf16>
    %cst_40 = arith.constant dense<0.000000e+00> : vector<16x32xf32>
    %184 = tpu.matmul %182, %183, %cst_40 {dimension_numbers = #tpu.dot_dimension_numbers<[1], [0], [0], [1], [0, 0, 1, 1], [], []>} : vector<16x32xbf16>, vector<32x32xbf16>, vector<16x32xf32> -> vector<16x32xf32>
    %185 = vector.shape_cast %184 : vector<16x32xf32> to vector<2x8x32xf32>
    %186 = vector.shape_cast %113 : vector<1x32xf32> to vector<1x1x32xf32>
    %187 = vector.broadcast %186 : vector<1x1x32xf32> to vector<2x8x32xf32>
    %188 = arith.addf %185, %187 : vector<2x8x32xf32>
    %189 = arith.addf %188, %109 : vector<2x8x32xf32>
    %cst_41 = arith.constant dense<0.000000e+00> : vector<2x8xf32>
    %190 = vector.multi_reduction <add>, %189, %cst_41 [2] : vector<2x8x32xf32> to vector<2x8xf32>
    %191 = vector.shape_cast %190 : vector<2x8xf32> to vector<2x8x1xf32>
    %cst_42 = arith.constant 3.200000e+01 : f32
    %192 = vector.broadcast %cst_42 : f32 to vector<2x8x1xf32>
    %193 = arith.divf %191, %192 : vector<2x8x1xf32>
    %194 = vector.broadcast %193 : vector<2x8x1xf32> to vector<2x8x32xf32>
    %195 = arith.subf %189, %194 : vector<2x8x32xf32>
    %196 = arith.mulf %195, %195 : vector<2x8x32xf32>
    %cst_43 = arith.constant dense<0.000000e+00> : vector<2x8xf32>
    %197 = vector.multi_reduction <add>, %196, %cst_43 [2] : vector<2x8x32xf32> to vector<2x8xf32>
    %198 = vector.shape_cast %197 : vector<2x8xf32> to vector<2x8x1xf32>
    %cst_44 = arith.constant 3.200000e+01 : f32
    %199 = vector.broadcast %cst_44 : f32 to vector<2x8x1xf32>
    %200 = arith.divf %198, %199 : vector<2x8x1xf32>
    %201 = vector.broadcast %193 : vector<2x8x1xf32> to vector<2x8x32xf32>
    %202 = arith.subf %189, %201 : vector<2x8x32xf32>
    %cst_45 = arith.constant 9.99999974E-6 : f32
    %203 = vector.broadcast %cst_45 : f32 to vector<2x8x1xf32>
    %204 = arith.addf %200, %203 : vector<2x8x1xf32>
    %205 = math.rsqrt %204 : vector<2x8x1xf32>
    %206 = vector.broadcast %205 : vector<2x8x1xf32> to vector<2x8x32xf32>
    %207 = arith.mulf %202, %206 : vector<2x8x32xf32>
    %208 = vector.shape_cast %114 : vector<1x32xf32> to vector<1x1x32xf32>
    %209 = vector.broadcast %208 : vector<1x1x32xf32> to vector<2x8x32xf32>
    %210 = arith.mulf %207, %209 : vector<2x8x32xf32>
    %211 = vector.shape_cast %115 : vector<1x32xf32> to vector<1x1x32xf32>
    %212 = vector.broadcast %211 : vector<1x1x32xf32> to vector<2x8x32xf32>
    %213 = arith.addf %210, %212 : vector<2x8x32xf32>
    %214 = vector.extract_strided_slice %11 {offsets = [0, 0, 0], sizes = [1, 32, 64], strides = [1, 1, 1]} : vector<2x64x64xbf16> to vector<1x32x64xbf16>
    %215 = vector.shape_cast %214 : vector<1x32x64xbf16> to vector<32x64xbf16>
    %216 = vector.extract_strided_slice %11 {offsets = [1, 0, 0], sizes = [1, 64, 32], strides = [1, 1, 1]} : vector<2x64x64xbf16> to vector<1x64x32xbf16>
    %217 = vector.shape_cast %216 : vector<1x64x32xbf16> to vector<64x32xbf16>
    %218 = vector.shape_cast %213 : vector<2x8x32xf32> to vector<16x32xf32>
    %219 = arith.truncf %218 : vector<16x32xf32> to vector<16x32xbf16>
    %cst_46 = arith.constant dense<0.000000e+00> : vector<16x64xf32>
    %220 = tpu.matmul %219, %215, %cst_46 {dimension_numbers = #tpu.dot_dimension_numbers<[1], [0], [0], [1], [0, 0, 1, 1], [], []>} : vector<16x32xbf16>, vector<32x64xbf16>, vector<16x64xf32> -> vector<16x64xf32>
    %221 = vector.extract_strided_slice %12 {offsets = [4, 0], sizes = [1, 64], strides = [1, 1]} : vector<8x128xf32> to vector<1x64xf32>
    %222 = vector.broadcast %221 : vector<1x64xf32> to vector<16x64xf32>
    %223 = arith.addf %220, %222 : vector<16x64xf32>
    %cst_47 = arith.constant 0.000000e+00 : f32
    %224 = vector.broadcast %cst_47 : f32 to vector<16x64xf32>
    %225 = arith.maximumf %223, %224 : vector<16x64xf32>
    %226 = arith.truncf %225 : vector<16x64xf32> to vector<16x64xbf16>
    %cst_48 = arith.constant dense<0.000000e+00> : vector<16x32xf32>
    %227 = tpu.matmul %226, %217, %cst_48 {dimension_numbers = #tpu.dot_dimension_numbers<[1], [0], [0], [1], [0, 0, 1, 1], [], []>} : vector<16x64xbf16>, vector<64x32xbf16>, vector<16x32xf32> -> vector<16x32xf32>
    %228 = vector.extract_strided_slice %12 {offsets = [4, 64], sizes = [1, 32], strides = [1, 1]} : vector<8x128xf32> to vector<1x32xf32>
    %229 = vector.broadcast %228 : vector<1x32xf32> to vector<16x32xf32>
    %230 = arith.addf %227, %229 : vector<16x32xf32>
    %231 = vector.shape_cast %230 : vector<16x32xf32> to vector<2x8x32xf32>
    %232 = arith.addf %231, %213 : vector<2x8x32xf32>
    %233 = vector.extract_strided_slice %12 {offsets = [5, 0], sizes = [1, 32], strides = [1, 1]} : vector<8x128xf32> to vector<1x32xf32>
    %234 = vector.extract_strided_slice %12 {offsets = [5, 32], sizes = [1, 32], strides = [1, 1]} : vector<8x128xf32> to vector<1x32xf32>
    %cst_49 = arith.constant dense<0.000000e+00> : vector<2x8xf32>
    %235 = vector.multi_reduction <add>, %232, %cst_49 [2] : vector<2x8x32xf32> to vector<2x8xf32>
    %236 = vector.shape_cast %235 : vector<2x8xf32> to vector<2x8x1xf32>
    %cst_50 = arith.constant 3.200000e+01 : f32
    %237 = vector.broadcast %cst_50 : f32 to vector<2x8x1xf32>
    %238 = arith.divf %236, %237 : vector<2x8x1xf32>
    %239 = vector.broadcast %238 : vector<2x8x1xf32> to vector<2x8x32xf32>
    %240 = arith.subf %232, %239 : vector<2x8x32xf32>
    %241 = arith.mulf %240, %240 : vector<2x8x32xf32>
    %cst_51 = arith.constant dense<0.000000e+00> : vector<2x8xf32>
    %242 = vector.multi_reduction <add>, %241, %cst_51 [2] : vector<2x8x32xf32> to vector<2x8xf32>
    %243 = vector.shape_cast %242 : vector<2x8xf32> to vector<2x8x1xf32>
    %cst_52 = arith.constant 3.200000e+01 : f32
    %244 = vector.broadcast %cst_52 : f32 to vector<2x8x1xf32>
    %245 = arith.divf %243, %244 : vector<2x8x1xf32>
    %246 = vector.broadcast %238 : vector<2x8x1xf32> to vector<2x8x32xf32>
    %247 = arith.subf %232, %246 : vector<2x8x32xf32>
    %cst_53 = arith.constant 9.99999974E-6 : f32
    %248 = vector.broadcast %cst_53 : f32 to vector<2x8x1xf32>
    %249 = arith.addf %245, %248 : vector<2x8x1xf32>
    %250 = math.rsqrt %249 : vector<2x8x1xf32>
    %251 = vector.broadcast %250 : vector<2x8x1xf32> to vector<2x8x32xf32>
    %252 = arith.mulf %247, %251 : vector<2x8x32xf32>
    %253 = vector.shape_cast %233 : vector<1x32xf32> to vector<1x1x32xf32>
    %254 = vector.broadcast %253 : vector<1x1x32xf32> to vector<2x8x32xf32>
    %255 = arith.mulf %252, %254 : vector<2x8x32xf32>
    %256 = vector.shape_cast %234 : vector<1x32xf32> to vector<1x1x32xf32>
    %257 = vector.broadcast %256 : vector<1x1x32xf32> to vector<2x8x32xf32>
    %258 = arith.addf %255, %257 : vector<2x8x32xf32>
    %c0_54 = arith.constant 0 : index
    %c0_55 = arith.constant 0 : index
    %c0_56 = arith.constant 0 : index
    %259 = vector.load %arg6[%c0_54, %c0_55, %c0_56] : memref<2x8x32xf32, #tpu.memory_space<vmem>>, vector<2x8x32xf32>
    tpu.vector_store %arg6[%c0_54, %c0_55, %c0_56], %258 {strides = array<i32>} : memref<2x8x32xf32, #tpu.memory_space<vmem>>, vector<2x8x32xf32>,
    return
  }
  func.func @transform_0(%arg0: i32) -> (i32, i32, i32) {
    %c0_i32 = arith.constant 0 : i32
    %c0_i32_0 = arith.constant 0 : i32
    %c0_i32_1 = arith.constant 0 : i32
    %c0_i32_2 = arith.constant 0 : i32
    return %c0_i32, %c0_i32_0, %c0_i32_1 : i32, i32, i32
  }
  func.func @transform_1(%arg0: i32) -> (i32, i32, i32) {
    %c0_i32 = arith.constant 0 : i32
    %c0_i32_0 = arith.constant 0 : i32
    %c0_i32_1 = arith.constant 0 : i32
    %c0_i32_2 = arith.constant 0 : i32
    return %c0_i32, %c0_i32_0, %c0_i32_1 : i32, i32, i32
  }
  func.func @transform_2(%arg0: i32) -> (i32, i32, i32) {
    %c0_i32 = arith.constant 0 : i32
    %c0_i32_0 = arith.constant 0 : i32
    %c0_i32_1 = arith.constant 0 : i32
    %c0_i32_2 = arith.constant 0 : i32
    return %c0_i32, %c0_i32_0, %c0_i32_1 : i32, i32, i32
  }
  func.func @transform_3(%arg0: i32) -> (i32, i32, i32) {
    %c0_i32 = arith.constant 0 : i32
    %c0_i32_0 = arith.constant 0 : i32
    %c0_i32_1 = arith.constant 0 : i32
    %c0_i32_2 = arith.constant 0 : i32
    return %c0_i32, %c0_i32_0, %c0_i32_1 : i32, i32, i32
  }
  func.func @transform_4(%arg0: i32) -> (i32, i32) {
    %c0_i32 = arith.constant 0 : i32
    %c0_i32_0 = arith.constant 0 : i32
    %c0_i32_1 = arith.constant 0 : i32
    return %c0_i32, %c0_i32_0 : i32, i32
  }
  func.func @transform_5(%arg0: i32) -> (i32, i32, i32) {
    %c0_i32 = arith.constant 0 : i32
    %c0_i32_0 = arith.constant 0 : i32
    %c0_i32_1 = arith.constant 0 : i32
    %c0_i32_2 = arith.constant 0 : i32
    return %c0_i32, %c0_i32_0, %c0_i32_1 : i32, i32, i32
  }
  func.func @transform_6(%arg0: i32) -> (i32, i32, i32) {
    %c0_i32 = arith.constant 0 : i32
    %c0_i32_0 = arith.constant 0 : i32
    %c0_i32_1 = arith.constant 0 : i32
    %c0_i32_2 = arith.constant 0 : i32
    return %c0_i32, %c0_i32_0, %c0_i32_1 : i32, i32, i32
  }
  func.func @transform_7(%arg0: i32) -> (i32, i32, i32) {
    %c0_i32 = arith.constant 0 : i32
    %c0_i32_0 = arith.constant 0 : i32
    %c0_i32_1 = arith.constant 0 : i32
    %c0_i32_2 = arith.constant 0 : i32
    return %c0_i32, %c0_i32_0, %c0_i32_1 : i32, i32, i32
  }
}

</mosaic_0001>

<llo_original>
// kernel: decoder_layer.1
$region0: #{decoder_layer.1}
  #allocation0 [shape = 'u32[]', space=smem, size = 0x4, offset = 0x4, fixed_abs, tag = 'smem constant byte address 0x4 - core index']
  #allocation1 [shape = 'u32[144,128]{1,0:T(1,128)}', space=vmem, size = 0x12000, scoped, tag = 'internal scratch']
  %s0 = inlined_call_operand.vmem [shape: f32[2,24,32], index: 0, kind: input, shape index: {}]
  %s1 = inlined_call_operand.vmem [shape: s32[2,8,24], index: 1, kind: input, shape index: {}]
  %s2 = inlined_call_operand.vmem [shape: bf16[2,32,128], index: 2, kind: input, shape index: {}]
  %s3 = inlined_call_operand.vmem [shape: bf16[2,64,64], index: 3, kind: input, shape index: {}]
  %s4 = inlined_call_operand.vmem [shape: f32[8,128], index: 4, kind: input, shape index: {}]
  %s5 = inlined_call_operand.hbm [shape: f32[2,8,32], index: 5, kind: output, shape index: {0}]
  %s6 = inlined_call_operand.vmem [shape: bf16[8,8,8], index: 6, kind: output, shape index: {1}]
  %s7 = inlined_call_operand.vmem [shape: bf16[8,8,16], index: 7, kind: output, shape index: {2}]
  %8 = xla_tuple %s5, %s6, %s7
  %s9 = sld [smem:[#allocation0]]
  $region46: #{decoder_layer.1} parent=0
    _
  %s11 = ssub.s32 1, %s9
  %s12 = scalar_select 0, %s11, %s9
  $region1: #{decoder_layer.1} parent=0
    #allocation2 [shape = 'u8[8192]{0}', space=vmem, size = 0x2000, scoped, tag = 'output window, operand 0, single buffered']
    #allocation3 [shape = 's32[1]{0}', space=sflag, size = 0x4, scoped, tag = 'scoped memory for decoder_layer.1']
    %13 = vsyncpa [#allocation3], 0
    // Predicated region
    $region2: #{decoder_layer.1} parent=1 // pred_check
      _
    $region3: #{decoder_layer.1} parent=1 // pred_check_branch
      %15 = sbr.rel (0) target = $region5
    $region4: #{decoder_layer.1} parent=1 // pred_region
      _
    $region5: #{decoder_layer.1} parent=1 // pred_fallthru
      _
    // Predicated region
    $region6: #{decoder_layer.1} parent=1 // pred_check
      _
    $region7: #{decoder_layer.1} parent=1 // pred_check_branch
      %17 = sbr.rel (0) target = $region9
    $region8: #{decoder_layer.1} parent=1 // pred_region
      _
    $region9: #{decoder_layer.1} parent=1 // pred_fallthru
      _
    // Predicated region
    $region10: #{decoder_layer.1} parent=1 // pred_check
      _
    $region11: #{decoder_layer.1} parent=1 // pred_check_branch
      %19 = sbr.rel (0) target = $region13
    $region12: #{decoder_layer.1} parent=1 // pred_region
      _
    $region13: #{decoder_layer.1} parent=1 // pred_fallthru
      _
    // Predicated region
    $region14: #{decoder_layer.1} parent=1 // pred_check
      _
    $region15: #{decoder_layer.1} parent=1 // pred_check_branch
      %21 = sbr.rel (0) target = $region17
    $region16: #{decoder_layer.1} parent=1 // pred_region
      _
    $region17: #{decoder_layer.1} parent=1 // pred_fallthru
      _
    // Predicated region
    $region18: #{decoder_layer.1} parent=1 // pred_check
      _
    $region19: #{decoder_layer.1} parent=1 // pred_check_branch
      %23 = sbr.rel (0) target = $region21
    $region20: #{decoder_layer.1} parent=1 // pred_region
      _
    $region21: #{decoder_layer.1} parent=1 // pred_fallthru
      _
    %v25 = vld [vmem:[%s0] sm:$0xff]
    %v26 = vld [vmem:[%s0 + $0x8] sm:$0xff]
    %v27 = vld [vmem:[%s0 + $0x10] sm:$0xff]
    %v28 = vld [vmem:[%s0 + $0x18] sm:$0xff]
    %v29 = vld [vmem:[%s0 + $0x20] sm:$0xff]
    %v30 = vld [vmem:[%s0 + $0x28] sm:$0xff]
    %v31 = vld [vmem:[%s1] sm:$0xff]
    %v32 = vld [vmem:[%s1 + $0x8] sm:$0xff]
    %vm33 = vcmp.gt.s32.totalorder %v31, 0
    %vm34 = vcmp.gt.s32.totalorder %v32, 0
    %v35 = vld [vmem:[%s2] sm:$0xf]
    %v36 = vld [vmem:[%s2 + $0x4] sm:$0xf]
    %v37 = vld [vmem:[%s2 + $0x8] sm:$0xf]
    %v38 = vld [vmem:[%s2 + $0xc] sm:$0xf]
    %v39 = vld [vmem:[%s2 + $0x10] sm:$0xf]
    %v40 = vld [vmem:[%s2 + $0x14] sm:$0xf]
    %v41 = vld [vmem:[%s2 + $0x18] sm:$0xf]
    %v42 = vld [vmem:[%s2 + $0x1c] sm:$0xf]
    %v43 = vld [vmem:[%s3] sm:$0xf]
    %v44 = vld [vmem:[%s3 + $0x4] sm:$0xf]
    %v45 = vld [vmem:[%s3 + $0x8] sm:$0xf]
    %v46 = vld [vmem:[%s3 + $0xc] sm:$0xf]
    %v47 = vld [vmem:[%s3 + $0x20] sm:$0xf]
    %v48 = vld [vmem:[%s3 + $0x24] sm:$0xf]
    %v49 = vld [vmem:[%s3 + $0x28] sm:$0xf]
    %v50 = vld [vmem:[%s3 + $0x2c] sm:$0xf]
    %v51 = vld [vmem:[%s3 + $0x30] sm:$0xf]
    %v52 = vld [vmem:[%s3 + $0x34] sm:$0xf]
    %v53 = vld [vmem:[%s3 + $0x38] sm:$0xf]
    %v54 = vld [vmem:[%s3 + $0x3c] sm:$0xf]
    %v55 = vld [vmem:[%s4] sm:$0xff]
    %v56 = vpack.c.bf16 %v28, %v25
    %v57 = vlaneseq
    %v58 = vshrl.u32 %v57, 7
    %v59 = vsub.s32 0, %v58
    %v60 = vrot.slane %v55, %v59
    %v65 = vunpack.c.l.b16 %v35
    %v66 = vunpack.c.l.b16 %v36
    %v67 = vunpack.c.l.b16 %v37
    %v68 = vunpack.c.l.b16 %v38
    %v69 = vpack.c.b16 %v66, %v65
    %v70 = vpack.c.b16 %v68, %v67
    %vm73 = vcmask 261120
    %v75 = vsel %vm73, %v56, 0
    %77 = vmatprep.subr.bf16.mxu0 0
    %78 = vmatpush1.bf16.msra.mxu0 %v69
    %79 = vmatprep.subr.bf16.mxu0 0
    %80 = vmatpush1.bf16.msra.mxu0 %v70
    %81 = vmatprep.subr.bf16.mxu0 0
    %82 = vmatpush1.bf16.msra.mxu0 0
    %83 = vmatprep.subr.bf16.mxu0 0
    %84 = vmatpush1.bf16.msra.mxu0 0
    %85 = vmatprep.subr.bf16.mxu0 0
    %86 = vmatpush1.bf16.msra.mxu0 0
    %87 = vmatprep.subr.bf16.mxu0 0
    %88 = vmatpush1.bf16.msra.mxu0 0
    %89 = vmatprep.subr.bf16.mxu0 0
    %90 = vmatpush1.bf16.msra.mxu0 0
    %91 = vmatprep.subr.bf16.mxu0 0
    %92 = vmatpush1.bf16.msra.mxu0 0
    %93 = vmatprep.subr.bf16.mxu0 0
    %94 = vmatpush1.bf16.msra.mxu0 0
    %95 = vmatprep.subr.bf16.mxu0 0
    %96 = vmatpush1.bf16.msra.mxu0 0
    %97 = vmatprep.subr.bf16.mxu0 0
    %98 = vmatpush1.bf16.msra.mxu0 0
    %99 = vmatprep.subr.bf16.mxu0 0
    %100 = vmatpush1.bf16.msra.mxu0 0
    %101 = vmatprep.subr.bf16.mxu0 0
    %102 = vmatpush1.bf16.msra.mxu0 0
    %103 = vmatprep.subr.bf16.mxu0 0
    %104 = vmatpush1.bf16.msra.mxu0 0
    %105 = vmatprep.subr.bf16.mxu0 0
    %106 = vmatpush1.bf16.msra.mxu0 0
    %107 = vmatprep.subr.bf16.mxu0 0
    %108 = vmatpush1.bf16.msra.mxu0 0
    %109 = vmatprep.mubr.bf16.mxu0 0
    %110 = vmatmul.mubr.bf16.gmra.mrb[0].mxu0 %v75
    %v111 = vpop.f32.mrb[0].mxu0
    %v112 = vadd.f32 %v60, %v111
    %v113 = vpop.f32.mrb[0].mxu0
    %v114 = vpop.f32.mrb[0].mxu0
    %v115 = vadd.f32 %v60, %v114
    %v116 = vpop.f32.mrb[0].mxu0
    %117 = vdwg.mxu0
    %120 = vrot.lane.b32.xlu0 %v112, 120
    %v121 = vpop.permute.xlu0 %120
    %122 = vrot.lane.b32.xlu0 %v115, 120
    %v123 = vpop.permute.xlu0 %122
    %126 = vrot.lane.b32.xlu0 %v112, 112
    %v127 = vpop.permute.xlu0 %126
    %128 = vrot.lane.b32.xlu0 %v115, 112
    %v129 = vpop.permute.xlu0 %128
    %132 = vrot.lane.b32.xlu0 %v112, 104
    %v133 = vpop.permute.xlu0 %132
    %134 = vrot.lane.b32.xlu0 %v115, 104
    %v135 = vpop.permute.xlu0 %134
    %v138 = vpack.c.bf16 %v112, %v112
    %v139 = vpack.c.bf16 %v115, %v115
    %v140 = vpack.c.bf16 %v121, %v121
    %v141 = vpack.c.bf16 %v123, %v123
    %v142 = vpack.c.bf16 %v127, %v127
    %v143 = vpack.c.bf16 %v129, %v129
    %v144 = vpack.c.bf16 %v133, %v133
    %v145 = vpack.c.bf16 %v135, %v135
    %147 = vrot.lane.b32.xlu0 %v138, 96
    %v148 = vpop.permute.xlu0 %147
    %vm149 = vcmask 64512
    %v151 = vsel %vm149, %v138, 0
    %v154 = vsel %vm149, %v148, 0
    %156 = vmatprep.subr.bf16.mxu0 0
    %157 = vmatpush1.bf16.xpose.msra.mxu0 %v154
    %158 = vmatprep.subr.bf16.mxu0 0
    %159 = vmatpush1.bf16.xpose.msra.mxu0 0
    %160 = vmatprep.subr.bf16.mxu0 0
    %161 = vmatpush1.bf16.xpose.msra.mxu0 0
    %162 = vmatprep.subr.bf16.mxu0 0
    %163 = vmatpush1.bf16.xpose.msra.mxu0 0
    %164 = vmatprep.subr.bf16.mxu0 0
    %165 = vmatpush1.bf16.xpose.msra.mxu0 0
    %166 = vmatprep.subr.bf16.mxu0 0
    %167 = vmatpush1.bf16.xpose.msra.mxu0 0
    %168 = vmatprep.subr.bf16.mxu0 0
    %169 = vmatpush1.bf16.xpose.msra.mxu0 0
    %170 = vmatprep.subr.bf16.mxu0 0
    %171 = vmatpush1.bf16.xpose.msra.mxu0 0
    %172 = vmatprep.subr.bf16.mxu0 0
    %173 = vmatpush1.bf16.xpose.msra.mxu0 0
    %174 = vmatprep.subr.bf16.mxu0 0
    %175 = vmatpush1.bf16.xpose.msra.mxu0 0
    %176 = vmatprep.subr.bf16.mxu0 0
    %177 = vmatpush1.bf16.xpose.msra.mxu0 0
    %178 = vmatprep.subr.bf16.mxu0 0
    %179 = vmatpush1.bf16.xpose.msra.mxu0 0
    %180 = vmatprep.subr.bf16.mxu0 0
    %181 = vmatpush1.bf16.xpose.msra.mxu0 0
    %182 = vmatprep.subr.bf16.mxu0 0
    %183 = vmatpush1.bf16.xpose.msra.mxu0 0
    %184 = vmatprep.subr.bf16.mxu0 0
    %185 = vmatpush1.bf16.xpose.msra.mxu0 0
    %186 = vmatprep.subr.bf16.mxu0 0
    %187 = vmatpush1.bf16.xpose.msra.mxu0 0
    %188 = vmatprep.mubr.bf16.mxu0 0
    %189 = vmatmul.mubr.bf16.gmra.mrb[0].mxu0 %v151
    %v190 = vpop.f32.mrb[0].mxu0
    %v191 = vadd.f32 0.0, %v190
    %v192 = vpop.f32.mrb[0].mxu0
    %v193 = vpop.f32.mrb[0].mxu0
    %v194 = vpop.f32.mrb[0].mxu0
    %195 = vdwg.mxu0
    %197 = vrot.lane.b32.xlu0 %v139, 96
    %v198 = vpop.permute.xlu0 %197
    %v200 = vsel %vm149, %v139, 0
    %v203 = vsel %vm149, %v198, 0
    %205 = vmatprep.subr.bf16.mxu0 0
    %206 = vmatpush1.bf16.xpose.msra.mxu0 %v203
    %207 = vmatprep.subr.bf16.mxu0 0
    %208 = vmatpush1.bf16.xpose.msra.mxu0 0
    %209 = vmatprep.subr.bf16.mxu0 0
    %210 = vmatpush1.bf16.xpose.msra.mxu0 0
    %211 = vmatprep.subr.bf16.mxu0 0
    %212 = vmatpush1.bf16.xpose.msra.mxu0 0
    %213 = vmatprep.subr.bf16.mxu0 0
    %214 = vmatpush1.bf16.xpose.msra.mxu0 0
    %215 = vmatprep.subr.bf16.mxu0 0
    %216 = vmatpush1.bf16.xpose.msra.mxu0 0
    %217 = vmatprep.subr.bf16.mxu0 0
    %218 = vmatpush1.bf16.xpose.msra.mxu0 0
    %219 = vmatprep.subr.bf16.mxu0 0
    %220 = vmatpush1.bf16.xpose.msra.mxu0 0
    %221 = vmatprep.subr.bf16.mxu0 0
    %222 = vmatpush1.bf16.xpose.msra.mxu0 0
    %223 = vmatprep.subr.bf16.mxu0 0
    %224 = vmatpush1.bf16.xpose.msra.mxu0 0
    %225 = vmatprep.subr.bf16.mxu0 0
    %226 = vmatpush1.bf16.xpose.msra.mxu0 0
    %227 = vmatprep.subr.bf16.mxu0 0
    %228 = vmatpush1.bf16.xpose.msra.mxu0 0
    %229 = vmatprep.subr.bf16.mxu0 0
    %230 = vmatpush1.bf16.xpose.msra.mxu0 0
    %231 = vmatprep.subr.bf16.mxu0 0
    %232 = vmatpush1.bf16.xpose.msra.mxu0 0
    %233 = vmatprep.subr.bf16.mxu0 0
    %234 = vmatpush1.bf16.xpose.msra.mxu0 0
    %235 = vmatprep.subr.bf16.mxu0 0
    %236 = vmatpush1.bf16.xpose.msra.mxu0 0
    %237 = vmatprep.mubr.bf16.mxu0 0
    %238 = vmatmul.mubr.bf16.gmra.mrb[0].mxu0 %v200
    %v239 = vpop.f32.mrb[0].mxu0
    %v240 = vadd.f32 0.0, %v239
    %v241 = vpop.f32.mrb[0].mxu0
    %v242 = vpop.f32.mrb[0].mxu0
    %v243 = vpop.f32.mrb[0].mxu0
    %244 = vdwg.mxu0
    %246 = vrot.lane.b32.xlu0 %v140, 96
    %v247 = vpop.permute.xlu0 %246
    %v249 = vsel %vm149, %v140, 0
    %v252 = vsel %vm149, %v247, 0
    %254 = vmatprep.subr.bf16.mxu0 0
    %255 = vmatpush1.bf16.xpose.msra.mxu0 %v252
    %256 = vmatprep.subr.bf16.mxu0 0
    %257 = vmatpush1.bf16.xpose.msra.mxu0 0
    %258 = vmatprep.subr.bf16.mxu0 0
    %259 = vmatpush1.bf16.xpose.msra.mxu0 0
    %260 = vmatprep.subr.bf16.mxu0 0
    %261 = vmatpush1.bf16.xpose.msra.mxu0 0
    %262 = vmatprep.subr.bf16.mxu0 0
    %263 = vmatpush1.bf16.xpose.msra.mxu0 0
    %264 = vmatprep.subr.bf16.mxu0 0
    %265 = vmatpush1.bf16.xpose.msra.mxu0 0
    %266 = vmatprep.subr.bf16.mxu0 0
    %267 = vmatpush1.bf16.xpose.msra.mxu0 0
    %268 = vmatprep.subr.bf16.mxu0 0
    %269 = vmatpush1.bf16.xpose.msra.mxu0 0
    %270 = vmatprep.subr.bf16.mxu0 0
    %271 = vmatpush1.bf16.xpose.msra.mxu0 0
    %272 = vmatprep.subr.bf16.mxu0 0
    %273 = vmatpush1.bf16.xpose.msra.mxu0 0
    %274 = vmatprep.subr.bf16.mxu0 0
    %275 = vmatpush1.bf16.xpose.msra.mxu0 0
    %276 = vmatprep.subr.bf16.mxu0 0
    %277 = vmatpush1.bf16.xpose.msra.mxu0 0
    %278 = vmatprep.subr.bf16.mxu0 0
    %279 = vmatpush1.bf16.xpose.msra.mxu0 0
    %280 = vmatprep.subr.bf16.mxu0 0
    %281 = vmatpush1.bf16.xpose.msra.mxu0 0
    %282 = vmatprep.subr.bf16.mxu0 0
    %283 = vmatpush1.bf16.xpose.msra.mxu0 0
    %284 = vmatprep.subr.bf16.mxu0 0
    %285 = vmatpush1.bf16.xpose.msra.mxu0 0
    %286 = vmatprep.mubr.bf16.mxu0 0
    %287 = vmatmul.mubr.bf16.gmra.mrb[0].mxu0 %v249
    %v288 = vpop.f32.mrb[0].mxu0
    %v289 = vadd.f32 0.0, %v288
    %v290 = vpop.f32.mrb[0].mxu0
    %v291 = vpop.f32.mrb[0].mxu0
    %v292 = vpop.f32.mrb[0].mxu0
    %293 = vdwg.mxu0
    %295 = vrot.lane.b32.xlu0 %v141, 96
    %v296 = vpop.permute.xlu0 %295
    %v298 = vsel %vm149, %v141, 0
    %v301 = vsel %vm149, %v296, 0
    %303 = vmatprep.subr.bf16.mxu0 0
    %304 = vmatpush1.bf16.xpose.msra.mxu0 %v301
    %305 = vmatprep.subr.bf16.mxu0 0
    %306 = vmatpush1.bf16.xpose.msra.mxu0 0
    %307 = vmatprep.subr.bf16.mxu0 0
    %308 = vmatpush1.bf16.xpose.msra.mxu0 0
    %309 = vmatprep.subr.bf16.mxu0 0
    %310 = vmatpush1.bf16.xpose.msra.mxu0 0
    %311 = vmatprep.subr.bf16.mxu0 0
    %312 = vmatpush1.bf16.xpose.msra.mxu0 0
    %313 = vmatprep.subr.bf16.mxu0 0
    %314 = vmatpush1.bf16.xpose.msra.mxu0 0
    %315 = vmatprep.subr.bf16.mxu0 0
    %316 = vmatpush1.bf16.xpose.msra.mxu0 0
    %317 = vmatprep.subr.bf16.mxu0 0
    %318 = vmatpush1.bf16.xpose.msra.mxu0 0
    %319 = vmatprep.subr.bf16.mxu0 0
    %320 = vmatpush1.bf16.xpose.msra.mxu0 0
    %321 = vmatprep.subr.bf16.mxu0 0
    %322 = vmatpush1.bf16.xpose.msra.mxu0 0
    %323 = vmatprep.subr.bf16.mxu0 0
    %324 = vmatpush1.bf16.xpose.msra.mxu0 0
    %325 = vmatprep.subr.bf16.mxu0 0
    %326 = vmatpush1.bf16.xpose.msra.mxu0 0
    %327 = vmatprep.subr.bf16.mxu0 0
    %328 = vmatpush1.bf16.xpose.msra.mxu0 0
    %329 = vmatprep.subr.bf16.mxu0 0
    %330 = vmatpush1.bf16.xpose.msra.mxu0 0
    %331 = vmatprep.subr.bf16.mxu0 0
    %332 = vmatpush1.bf16.xpose.msra.mxu0 0
    %333 = vmatprep.subr.bf16.mxu0 0
    %334 = vmatpush1.bf16.xpose.msra.mxu0 0
    %335 = vmatprep.mubr.bf16.mxu0 0
    %336 = vmatmul.mubr.bf16.gmra.mrb[0].mxu0 %v298
    %v337 = vpop.f32.mrb[0].mxu0
    %v338 = vadd.f32 0.0, %v337
    %v339 = vpop.f32.mrb[0].mxu0
    %v340 = vpop.f32.mrb[0].mxu0
    %v341 = vpop.f32.mrb[0].mxu0
    %342 = vdwg.mxu0
    %344 = vrot.lane.b32.xlu0 %v142, 96
    %v345 = vpop.permute.xlu0 %344
    %v347 = vsel %vm149, %v142, 0
    %v350 = vsel %vm149, %v345, 0
    %352 = vmatprep.subr.bf16.mxu0 0
    %353 = vmatpush1.bf16.xpose.msra.mxu0 %v350
    %354 = vmatprep.subr.bf16.mxu0 0
    %355 = vmatpush1.bf16.xpose.msra.mxu0 0
    %356 = vmatprep.subr.bf16.mxu0 0
    %357 = vmatpush1.bf16.xpose.msra.mxu0 0
    %358 = vmatprep.subr.bf16.mxu0 0
    %359 = vmatpush1.bf16.xpose.msra.mxu0 0
    %360 = vmatprep.subr.bf16.mxu0 0
    %361 = vmatpush1.bf16.xpose.msra.mxu0 0
    %362 = vmatprep.subr.bf16.mxu0 0
    %363 = vmatpush1.bf16.xpose.msra.mxu0 0
    %364 = vmatprep.subr.bf16.mxu0 0
    %365 = vmatpush1.bf16.xpose.msra.mxu0 0
    %366 = vmatprep.subr.bf16.mxu0 0
    %367 = vmatpush1.bf16.xpose.msra.mxu0 0
    %368 = vmatprep.subr.bf16.mxu0 0
    %369 = vmatpush1.bf16.xpose.msra.mxu0 0
    %370 = vmatprep.subr.bf16.mxu0 0
    %371 = vmatpush1.bf16.xpose.msra.mxu0 0
    %372 = vmatprep.subr.bf16.mxu0 0
    %373 = vmatpush1.bf16.xpose.msra.mxu0 0
    %374 = vmatprep.subr.bf16.mxu0 0
    %375 = vmatpush1.bf16.xpose.msra.mxu0 0
    %376 = vmatprep.subr.bf16.mxu0 0
    %377 = vmatpush1.bf16.xpose.msra.mxu0 0
    %378 = vmatprep.subr.bf16.mxu0 0
    %379 = vmatpush1.bf16.xpose.msra.mxu0 0
    %380 = vmatprep.subr.bf16.mxu0 0
    %381 = vmatpush1.bf16.xpose.msra.mxu0 0
    %382 = vmatprep.subr.bf16.mxu0 0
    %383 = vmatpush1.bf16.xpose.msra.mxu0 0
    %384 = vmatprep.mubr.bf16.mxu0 0
    %385 = vmatmul.mubr.bf16.gmra.mrb[0].mxu0 %v347
    %v386 = vpop.f32.mrb[0].mxu0
    %v387 = vadd.f32 0.0, %v386
    %v388 = vpop.f32.mrb[0].mxu0
    %v389 = vpop.f32.mrb[0].mxu0
    %v390 = vpop.f32.mrb[0].mxu0
    %391 = vdwg.mxu0
    %393 = vrot.lane.b32.xlu0 %v143, 96
    %v394 = vpop.permute.xlu0 %393
    %v396 = vsel %vm149, %v143, 0
    %v399 = vsel %vm149, %v394, 0
    %401 = vmatprep.subr.bf16.mxu0 0
    %402 = vmatpush1.bf16.xpose.msra.mxu0 %v399
    %403 = vmatprep.subr.bf16.mxu0 0
    %404 = vmatpush1.bf16.xpose.msra.mxu0 0
    %405 = vmatprep.subr.bf16.mxu0 0
    %406 = vmatpush1.bf16.xpose.msra.mxu0 0
    %407 = vmatprep.subr.bf16.mxu0 0
    %408 = vmatpush1.bf16.xpose.msra.mxu0 0
    %409 = vmatprep.subr.bf16.mxu0 0
    %410 = vmatpush1.bf16.xpose.msra.mxu0 0
    %411 = vmatprep.subr.bf16.mxu0 0
    %412 = vmatpush1.bf16.xpose.msra.mxu0 0
    %413 = vmatprep.subr.bf16.mxu0 0
    %414 = vmatpush1.bf16.xpose.msra.mxu0 0
    %415 = vmatprep.subr.bf16.mxu0 0
    %416 = vmatpush1.bf16.xpose.msra.mxu0 0
    %417 = vmatprep.subr.bf16.mxu0 0
    %418 = vmatpush1.bf16.xpose.msra.mxu0 0
    %419 = vmatprep.subr.bf16.mxu0 0
    %420 = vmatpush1.bf16.xpose.msra.mxu0 0
    %421 = vmatprep.subr.bf16.mxu0 0
    %422 = vmatpush1.bf16.xpose.msra.mxu0 0
    %423 = vmatprep.subr.bf16.mxu0 0
    %424 = vmatpush1.bf16.xpose.msra.mxu0 0
    %425 = vmatprep.subr.bf16.mxu0 0
    %426 = vmatpush1.bf16.xpose.msra.mxu0 0
    %427 = vmatprep.subr.bf16.mxu0 0
    %428 = vmatpush1.bf16.xpose.msra.mxu0 0
    %429 = vmatprep.subr.bf16.mxu0 0
    %430 = vmatpush1.bf16.xpose.msra.mxu0 0
    %431 = vmatprep.subr.bf16.mxu0 0
    %432 = vmatpush1.bf16.xpose.msra.mxu0 0
    %433 = vmatprep.mubr.bf16.mxu0 0
    %434 = vmatmul.mubr.bf16.gmra.mrb[0].mxu0 %v396
    %v435 = vpop.f32.mrb[0].mxu0
    %v436 = vadd.f32 0.0, %v435
    %v437 = vpop.f32.mrb[0].mxu0
    %v438 = vpop.f32.mrb[0].mxu0
    %v439 = vpop.f32.mrb[0].mxu0
    %440 = vdwg.mxu0
    %442 = vrot.lane.b32.xlu0 %v144, 96
    %v443 = vpop.permute.xlu0 %442
    %v445 = vsel %vm149, %v144, 0
    %v448 = vsel %vm149, %v443, 0
    %450 = vmatprep.subr.bf16.mxu0 0
    %451 = vmatpush1.bf16.xpose.msra.mxu0 %v448
    %452 = vmatprep.subr.bf16.mxu0 0
    %453 = vmatpush1.bf16.xpose.msra.mxu0 0
    %454 = vmatprep.subr.bf16.mxu0 0
    %455 = vmatpush1.bf16.xpose.msra.mxu0 0
    %456 = vmatprep.subr.bf16.mxu0 0
    %457 = vmatpush1.bf16.xpose.msra.mxu0 0
    %458 = vmatprep.subr.bf16.mxu0 0
    %459 = vmatpush1.bf16.xpose.msra.mxu0 0
    %460 = vmatprep.subr.bf16.mxu0 0
    %461 = vmatpush1.bf16.xpose.msra.mxu0 0
    %462 = vmatprep.subr.bf16.mxu0 0
    %463 = vmatpush1.bf16.xpose.msra.mxu0 0
    %464 = vmatprep.subr.bf16.mxu0 0
    %465 = vmatpush1.bf16.xpose.msra.mxu0 0
    %466 = vmatprep.subr.bf16.mxu0 0
    %467 = vmatpush1.bf16.xpose.msra.mxu0 0
    %468 = vmatprep.subr.bf16.mxu0 0
    %469 = vmatpush1.bf16.xpose.msra.mxu0 0
    %470 = vmatprep.subr.bf16.mxu0 0
    %471 = vmatpush1.bf16.xpose.msra.mxu0 0
    %472 = vmatprep.subr.bf16.mxu0 0
    %473 = vmatpush1.bf16.xpose.msra.mxu0 0
    %474 = vmatprep.subr.bf16.mxu0 0
    %475 = vmatpush1.bf16.xpose.msra.mxu0 0
    %476 = vmatprep.subr.bf16.mxu0 0
    %477 = vmatpush1.bf16.xpose.msra.mxu0 0
    %478 = vmatprep.subr.bf16.mxu0 0
    %479 = vmatpush1.bf16.xpose.msra.mxu0 0
    %480 = vmatprep.subr.bf16.mxu0 0
    %481 = vmatpush1.bf16.xpose.msra.mxu0 0
    %482 = vmatprep.mubr.bf16.mxu0 0
    %483 = vmatmul.mubr.bf16.gmra.mrb[0].mxu0 %v445
    %v484 = vpop.f32.mrb[0].mxu0
    %v485 = vadd.f32 0.0, %v484
    %v486 = vpop.f32.mrb[0].mxu0
    %v487 = vpop.f32.mrb[0].mxu0
    %v488 = vpop.f32.mrb[0].mxu0
    %489 = vdwg.mxu0
    %491 = vrot.lane.b32.xlu0 %v145, 96
    %v492 = vpop.permute.xlu0 %491
    %v494 = vsel %vm149, %v145, 0
    %v497 = vsel %vm149, %v492, 0
    %499 = vmatprep.subr.bf16.mxu0 0
    %500 = vmatpush1.bf16.xpose.msra.mxu0 %v497
    %501 = vmatprep.subr.bf16.mxu0 0
    %502 = vmatpush1.bf16.xpose.msra.mxu0 0
    %503 = vmatprep.subr.bf16.mxu0 0
    %504 = vmatpush1.bf16.xpose.msra.mxu0 0
    %505 = vmatprep.subr.bf16.mxu0 0
    %506 = vmatpush1.bf16.xpose.msra.mxu0 0
    %507 = vmatprep.subr.bf16.mxu0 0
    %508 = vmatpush1.bf16.xpose.msra.mxu0 0
    %509 = vmatprep.subr.bf16.mxu0 0
    %510 = vmatpush1.bf16.xpose.msra.mxu0 0
    %511 = vmatprep.subr.bf16.mxu0 0
    %512 = vmatpush1.bf16.xpose.msra.mxu0 0
    %513 = vmatprep.subr.bf16.mxu0 0
    %514 = vmatpush1.bf16.xpose.msra.mxu0 0
    %515 = vmatprep.subr.bf16.mxu0 0
    %516 = vmatpush1.bf16.xpose.msra.mxu0 0
    %517 = vmatprep.subr.bf16.mxu0 0
    %518 = vmatpush1.bf16.xpose.msra.mxu0 0
    %519 = vmatprep.subr.bf16.mxu0 0
    %520 = vmatpush1.bf16.xpose.msra.mxu0 0
    %521 = vmatprep.subr.bf16.mxu0 0
    %522 = vmatpush1.bf16.xpose.msra.mxu0 0
    %523 = vmatprep.subr.bf16.mxu0 0
    %524 = vmatpush1.bf16.xpose.msra.mxu0 0
    %525 = vmatprep.subr.bf16.mxu0 0
    %526 = vmatpush1.bf16.xpose.msra.mxu0 0
    %527 = vmatprep.subr.bf16.mxu0 0
    %528 = vmatpush1.bf16.xpose.msra.mxu0 0
    %529 = vmatprep.subr.bf16.mxu0 0
    %530 = vmatpush1.bf16.xpose.msra.mxu0 0
    %531 = vmatprep.mubr.bf16.mxu0 0
    %532 = vmatmul.mubr.bf16.gmra.mrb[0].mxu0 %v494
    %v533 = vpop.f32.mrb[0].mxu0
    %v534 = vadd.f32 0.0, %v533
    %v535 = vpop.f32.mrb[0].mxu0
    %v536 = vpop.f32.mrb[0].mxu0
    %v537 = vpop.f32.mrb[0].mxu0
    %538 = vdwg.mxu0
    %v539 = vmul.f32 %v191, 0.35355338
    %v540 = vmul.f32 %v240, 0.35355338
    %v541 = vmul.f32 %v289, 0.35355338
    %v542 = vmul.f32 %v338, 0.35355338
    %v543 = vmul.f32 %v387, 0.35355338
    %v544 = vmul.f32 %v436, 0.35355338
    %v545 = vmul.f32 %v485, 0.35355338
    %v546 = vmul.f32 %v534, 0.35355338
    %v547 = vsel %vm33, 1, 0
    %v548 = vsel %vm34, 1, 0
    %vm549 = vcmp.eq.s32.totalorder %v547, 1
    %vm550 = vcmp.eq.s32.totalorder %v548, 1
    %v551 = vsel %vm549, -1e+09, %v539
    %v552 = vsel %vm550, -1e+09, %v540
    %v553 = vsel %vm549, -1e+09, %v541
    %v554 = vsel %vm550, -1e+09, %v542
    %v555 = vsel %vm549, -1e+09, %v543
    %v556 = vsel %vm550, -1e+09, %v544
    %v557 = vsel %vm549, -1e+09, %v545
    %v558 = vsel %vm550, -1e+09, %v546
    %v559 = vsel %vm149, %v551, -inf
    %560 = vmax.xlane.f32.xlu0 %v559
    %v561 = vpop.xlane.xlu0 %560
    %v562 = vsel %vm149, %v552, -inf
    %563 = vmax.xlane.f32.xlu0 %v562
    %v564 = vpop.xlane.xlu0 %563
    %v565 = vsel %vm149, %v553, -inf
    %566 = vmax.xlane.f32.xlu0 %v565
    %v567 = vpop.xlane.xlu0 %566
    %v568 = vsel %vm149, %v554, -inf
    %569 = vmax.xlane.f32.xlu0 %v568
    %v570 = vpop.xlane.xlu0 %569
    %v571 = vsel %vm149, %v555, -inf
    %572 = vmax.xlane.f32.xlu0 %v571
    %v573 = vpop.xlane.xlu0 %572
    %v574 = vsel %vm149, %v556, -inf
    %575 = vmax.xlane.f32.xlu0 %v574
    %v576 = vpop.xlane.xlu0 %575
    %v577 = vsel %vm149, %v557, -inf
    %578 = vmax.xlane.f32.xlu0 %v577
    %v579 = vpop.xlane.xlu0 %578
    %v580 = vsel %vm149, %v558, -inf
    %581 = vmax.xlane.f32.xlu0 %v580
    %v582 = vpop.xlane.xlu0 %581
    %v583 = vsub.f32 %v551, %v561
    %v584 = vsub.f32 %v552, %v564
    %v585 = vsub.f32 %v553, %v567
    %v586 = vsub.f32 %v554, %v570
    %v587 = vsub.f32 %v555, %v573
    %v588 = vsub.f32 %v556, %v576
    %v589 = vsub.f32 %v557, %v579
    %v590 = vsub.f32 %v558, %v582
    %v591 = vmul.f32 %v583, 1.442695
    %v592 = vpow.pop %v591
    %v593 = vmul.f32 %v584, 1.442695
    %v594 = vpow.pop %v593
    %v595 = vmul.f32 %v585, 1.442695
    %v596 = vpow.pop %v595
    %v597 = vmul.f32 %v586, 1.442695
    %v598 = vpow.pop %v597
    %v599 = vmul.f32 %v587, 1.442695
    %v600 = vpow.pop %v599
    %v601 = vmul.f32 %v588, 1.442695
    %v602 = vpow.pop %v601
    %v603 = vmul.f32 %v589, 1.442695
    %v604 = vpow.pop %v603
    %v605 = vmul.f32 %v590, 1.442695
    %v606 = vpow.pop %v605
    %v607 = vsel %vm149, %v592, 0.0
    %608 = vadd.xlane.f32.xlu0 %v607
    %v609 = vpop.xlane.xlu0 %608
    %v610 = vsel %vm149, %v594, 0.0
    %611 = vadd.xlane.f32.xlu0 %v610
    %v612 = vpop.xlane.xlu0 %611
    %v613 = vsel %vm149, %v596, 0.0
    %614 = vadd.xlane.f32.xlu0 %v613
    %v615 = vpop.xlane.xlu0 %614
    %v616 = vsel %vm149, %v598, 0.0
    %617 = vadd.xlane.f32.xlu0 %v616
    %v618 = vpop.xlane.xlu0 %617
    %v619 = vsel %vm149, %v600, 0.0
    %620 = vadd.xlane.f32.xlu0 %v619
    %v621 = vpop.xlane.xlu0 %620
    %v622 = vsel %vm149, %v602, 0.0
    %623 = vadd.xlane.f32.xlu0 %v622
    %v624 = vpop.xlane.xlu0 %623
    %v625 = vsel %vm149, %v604, 0.0
    %626 = vadd.xlane.f32.xlu0 %v625
    %v627 = vpop.xlane.xlu0 %626
    %v628 = vsel %vm149, %v606, 0.0
    %629 = vadd.xlane.f32.xlu0 %v628
    %v630 = vpop.xlane.xlu0 %629
    %v631 = vrcp.pop %v609
    %v632 = vrcp.pop %v612
    %v633 = vrcp.pop %v615
    %v634 = vrcp.pop %v618
    %v635 = vrcp.pop %v621
    %v636 = vrcp.pop %v624
    %v637 = vrcp.pop %v627
    %v638 = vrcp.pop %v630
    %v639 = vmul.f32 %v592, %v631
    %v640 = vmul.f32 %v594, %v632
    %v641 = vmul.f32 %v596, %v633
    %v642 = vmul.f32 %v598, %v634
    %v643 = vmul.f32 %v600, %v635
    %v644 = vmul.f32 %v602, %v636
    %v645 = vmul.f32 %v604, %v637
    %v646 = vmul.f32 %v606, %v638
    %v647 = vpack.c.bf16 %v639, %v639
    %v648 = vpack.c.bf16 %v640, %v640
    %v649 = vpack.c.bf16 %v641, %v641
    %v650 = vpack.c.bf16 %v642, %v642
    %v651 = vpack.c.bf16 %v643, %v643
    %v652 = vpack.c.bf16 %v644, %v644
    %v653 = vpack.c.bf16 %v645, %v645
    %v654 = vpack.c.bf16 %v646, %v646
    %vm655 = vcmask 60416
    %656 = vst.msk [vmem:[%s6] sm:$0xf] %vm655, %v647
    %657 = vst.msk [vmem:[%s6 + $0x4] sm:$0xf] %vm655, %v648
    %658 = vst.msk [vmem:[%s6 + $0x8] sm:$0xf] %vm655, %v649
    %659 = vst.msk [vmem:[%s6 + $0xc] sm:$0xf] %vm655, %v650
    %660 = vst.msk [vmem:[%s6 + $0x10] sm:$0xf] %vm655, %v651
    %661 = vst.msk [vmem:[%s6 + $0x14] sm:$0xf] %vm655, %v652
    %662 = vst.msk [vmem:[%s6 + $0x18] sm:$0xf] %vm655, %v653
    %663 = vst.msk [vmem:[%s6 + $0x1c] sm:$0xf] %vm655, %v654
    %664 = vrot.lane.b32.xlu0 %v138, 64
    %v665 = vpop.permute.xlu0 %664
    %v667 = vsel %vm149, %v647, 0
    %vm669 = vcmask 1043456
    %v671 = vsel %vm669, %v665, 0
    %673 = vmatprep.subr.bf16.mxu0 0
    %674 = vmatpush1.bf16.msra.mxu0 %v671
    %675 = vmatprep.subr.bf16.mxu0 0
    %676 = vmatpush1.bf16.msra.mxu0 0
    %677 = vmatprep.subr.bf16.mxu0 0
    %678 = vmatpush1.bf16.msra.mxu0 0
    %679 = vmatprep.subr.bf16.mxu0 0
    %680 = vmatpush1.bf16.msra.mxu0 0
    %681 = vmatprep.subr.bf16.mxu0 0
    %682 = vmatpush1.bf16.msra.mxu0 0
    %683 = vmatprep.subr.bf16.mxu0 0
    %684 = vmatpush1.bf16.msra.mxu0 0
    %685 = vmatprep.subr.bf16.mxu0 0
    %686 = vmatpush1.bf16.msra.mxu0 0
    %687 = vmatprep.subr.bf16.mxu0 0
    %688 = vmatpush1.bf16.msra.mxu0 0
    %689 = vmatprep.subr.bf16.mxu0 0
    %690 = vmatpush1.bf16.msra.mxu0 0
    %691 = vmatprep.subr.bf16.mxu0 0
    %692 = vmatpush1.bf16.msra.mxu0 0
    %693 = vmatprep.subr.bf16.mxu0 0
    %694 = vmatpush1.bf16.msra.mxu0 0
    %695 = vmatprep.subr.bf16.mxu0 0
    %696 = vmatpush1.bf16.msra.mxu0 0
    %697 = vmatprep.subr.bf16.mxu0 0
    %698 = vmatpush1.bf16.msra.mxu0 0
    %699 = vmatprep.subr.bf16.mxu0 0
    %700 = vmatpush1.bf16.msra.mxu0 0
    %701 = vmatprep.subr.bf16.mxu0 0
    %702 = vmatpush1.bf16.msra.mxu0 0
    %703 = vmatprep.subr.bf16.mxu0 0
    %704 = vmatpush1.bf16.msra.mxu0 0
    %705 = vmatprep.mubr.bf16.mxu0 0
    %706 = vmatmul.mubr.bf16.gmra.mrb[0].mxu0 %v667
    %v707 = vpop.f32.mrb[0].mxu0
    %v708 = vadd.f32 0.0, %v707
    %v709 = vpop.f32.mrb[0].mxu0
    %v710 = vpop.f32.mrb[0].mxu0
    %v711 = vpop.f32.mrb[0].mxu0
    %712 = vdwg.mxu0
    %713 = vrot.lane.b32.xlu0 %v139, 64
    %v714 = vpop.permute.xlu0 %713
    %v716 = vsel %vm149, %v648, 0
    %v719 = vsel %vm669, %v714, 0
    %721 = vmatprep.subr.bf16.mxu0 0
    %722 = vmatpush1.bf16.msra.mxu0 %v719
    %723 = vmatprep.subr.bf16.mxu0 0
    %724 = vmatpush1.bf16.msra.mxu0 0
    %725 = vmatprep.subr.bf16.mxu0 0
    %726 = vmatpush1.bf16.msra.mxu0 0
    %727 = vmatprep.subr.bf16.mxu0 0
    %728 = vmatpush1.bf16.msra.mxu0 0
    %729 = vmatprep.subr.bf16.mxu0 0
    %730 = vmatpush1.bf16.msra.mxu0 0
    %731 = vmatprep.subr.bf16.mxu0 0
    %732 = vmatpush1.bf16.msra.mxu0 0
    %733 = vmatprep.subr.bf16.mxu0 0
    %734 = vmatpush1.bf16.msra.mxu0 0
    %735 = vmatprep.subr.bf16.mxu0 0
    %736 = vmatpush1.bf16.msra.mxu0 0
    %737 = vmatprep.subr.bf16.mxu0 0
    %738 = vmatpush1.bf16.msra.mxu0 0
    %739 = vmatprep.subr.bf16.mxu0 0
    %740 = vmatpush1.bf16.msra.mxu0 0
    %741 = vmatprep.subr.bf16.mxu0 0
    %742 = vmatpush1.bf16.msra.mxu0 0
    %743 = vmatprep.subr.bf16.mxu0 0
    %744 = vmatpush1.bf16.msra.mxu0 0
    %745 = vmatprep.subr.bf16.mxu0 0
    %746 = vmatpush1.bf16.msra.mxu0 0
    %747 = vmatprep.subr.bf16.mxu0 0
    %748 = vmatpush1.bf16.msra.mxu0 0
    %749 = vmatprep.subr.bf16.mxu0 0
    %750 = vmatpush1.bf16.msra.mxu0 0
    %751 = vmatprep.subr.bf16.mxu0 0
    %752 = vmatpush1.bf16.msra.mxu0 0
    %753 = vmatprep.mubr.bf16.mxu0 0
    %754 = vmatmul.mubr.bf16.gmra.mrb[0].mxu0 %v716
    %v755 = vpop.f32.mrb[0].mxu0
    %v756 = vadd.f32 0.0, %v755
    %v757 = vpop.f32.mrb[0].mxu0
    %v758 = vpop.f32.mrb[0].mxu0
    %v759 = vpop.f32.mrb[0].mxu0
    %760 = vdwg.mxu0
    %761 = vrot.lane.b32.xlu0 %v140, 64
    %v762 = vpop.permute.xlu0 %761
    %v764 = vsel %vm149, %v649, 0
    %v767 = vsel %vm669, %v762, 0
    %769 = vmatprep.subr.bf16.mxu0 0
    %770 = vmatpush1.bf16.msra.mxu0 %v767
    %771 = vmatprep.subr.bf16.mxu0 0
    %772 = vmatpush1.bf16.msra.mxu0 0
    %773 = vmatprep.subr.bf16.mxu0 0
    %774 = vmatpush1.bf16.msra.mxu0 0
    %775 = vmatprep.subr.bf16.mxu0 0
    %776 = vmatpush1.bf16.msra.mxu0 0
    %777 = vmatprep.subr.bf16.mxu0 0
    %778 = vmatpush1.bf16.msra.mxu0 0
    %779 = vmatprep.subr.bf16.mxu0 0
    %780 = vmatpush1.bf16.msra.mxu0 0
    %781 = vmatprep.subr.bf16.mxu0 0
    %782 = vmatpush1.bf16.msra.mxu0 0
    %783 = vmatprep.subr.bf16.mxu0 0
    %784 = vmatpush1.bf16.msra.mxu0 0
    %785 = vmatprep.subr.bf16.mxu0 0
    %786 = vmatpush1.bf16.msra.mxu0 0
    %787 = vmatprep.subr.bf16.mxu0 0
    %788 = vmatpush1.bf16.msra.mxu0 0
    %789 = vmatprep.subr.bf16.mxu0 0
    %790 = vmatpush1.bf16.msra.mxu0 0
    %791 = vmatprep.subr.bf16.mxu0 0
    %792 = vmatpush1.bf16.msra.mxu0 0
    %793 = vmatprep.subr.bf16.mxu0 0
    %794 = vmatpush1.bf16.msra.mxu0 0
    %795 = vmatprep.subr.bf16.mxu0 0
    %796 = vmatpush1.bf16.msra.mxu0 0
    %797 = vmatprep.subr.bf16.mxu0 0
    %798 = vmatpush1.bf16.msra.mxu0 0
    %799 = vmatprep.subr.bf16.mxu0 0
    %800 = vmatpush1.bf16.msra.mxu0 0
    %801 = vmatprep.mubr.bf16.mxu0 0
    %802 = vmatmul.mubr.bf16.gmra.mrb[0].mxu0 %v764
    %v803 = vpop.f32.mrb[0].mxu0
    %v804 = vadd.f32 0.0, %v803
    %v805 = vpop.f32.mrb[0].mxu0
    %v806 = vpop.f32.mrb[0].mxu0
    %v807 = vpop.f32.mrb[0].mxu0
    %808 = vdwg.mxu0
    %809 = vrot.lane.b32.xlu0 %v141, 64
    %v810 = vpop.permute.xlu0 %809
    %v812 = vsel %vm149, %v650, 0
    %v815 = vsel %vm669, %v810, 0
    %817 = vmatprep.subr.bf16.mxu0 0
    %818 = vmatpush1.bf16.msra.mxu0 %v815
    %819 = vmatprep.subr.bf16.mxu0 0
    %820 = vmatpush1.bf16.msra.mxu0 0
    %821 = vmatprep.subr.bf16.mxu0 0
    %822 = vmatpush1.bf16.msra.mxu0 0
    %823 = vmatprep.subr.bf16.mxu0 0
    %824 = vmatpush1.bf16.msra.mxu0 0
    %825 = vmatprep.subr.bf16.mxu0 0
    %826 = vmatpush1.bf16.msra.mxu0 0
    %827 = vmatprep.subr.bf16.mxu0 0
    %828 = vmatpush1.bf16.msra.mxu0 0
    %829 = vmatprep.subr.bf16.mxu0 0
    %830 = vmatpush1.bf16.msra.mxu0 0
    %831 = vmatprep.subr.bf16.mxu0 0
    %832 = vmatpush1.bf16.msra.mxu0 0
    %833 = vmatprep.subr.bf16.mxu0 0
    %834 = vmatpush1.bf16.msra.mxu0 0
    %835 = vmatprep.subr.bf16.mxu0 0
    %836 = vmatpush1.bf16.msra.mxu0 0
    %837 = vmatprep.subr.bf16.mxu0 0
    %838 = vmatpush1.bf16.msra.mxu0 0
    %839 = vmatprep.subr.bf16.mxu0 0
    %840 = vmatpush1.bf16.msra.mxu0 0
    %841 = vmatprep.subr.bf16.mxu0 0
    %842 = vmatpush1.bf16.msra.mxu0 0
    %843 = vmatprep.subr.bf16.mxu0 0
    %844 = vmatpush1.bf16.msra.mxu0 0
    %845 = vmatprep.subr.bf16.mxu0 0
    %846 = vmatpush1.bf16.msra.mxu0 0
    %847 = vmatprep.subr.bf16.mxu0 0
    %848 = vmatpush1.bf16.msra.mxu0 0
    %849 = vmatprep.mubr.bf16.mxu0 0
    %850 = vmatmul.mubr.bf16.gmra.mrb[0].mxu0 %v812
    %v851 = vpop.f32.mrb[0].mxu0
    %v852 = vadd.f32 0.0, %v851
    %v853 = vpop.f32.mrb[0].mxu0
    %v854 = vpop.f32.mrb[0].mxu0
    %v855 = vpop.f32.mrb[0].mxu0
    %856 = vdwg.mxu0
    %857 = vrot.lane.b32.xlu0 %v142, 64
    %v858 = vpop.permute.xlu0 %857
    %v860 = vsel %vm149, %v651, 0
    %v863 = vsel %vm669, %v858, 0
    %865 = vmatprep.subr.bf16.mxu0 0
    %866 = vmatpush1.bf16.msra.mxu0 %v863
    %867 = vmatprep.subr.bf16.mxu0 0
    %868 = vmatpush1.bf16.msra.mxu0 0
    %869 = vmatprep.subr.bf16.mxu0 0
    %870 = vmatpush1.bf16.msra.mxu0 0
    %871 = vmatprep.subr.bf16.mxu0 0
    %872 = vmatpush1.bf16.msra.mxu0 0
    %873 = vmatprep.subr.bf16.mxu0 0
    %874 = vmatpush1.bf16.msra.mxu0 0
    %875 = vmatprep.subr.bf16.mxu0 0
    %876 = vmatpush1.bf16.msra.mxu0 0
    %877 = vmatprep.subr.bf16.mxu0 0
    %878 = vmatpush1.bf16.msra.mxu0 0
    %879 = vmatprep.subr.bf16.mxu0 0
    %880 = vmatpush1.bf16.msra.mxu0 0
    %881 = vmatprep.subr.bf16.mxu0 0
    %882 = vmatpush1.bf16.msra.mxu0 0
    %883 = vmatprep.subr.bf16.mxu0 0
    %884 = vmatpush1.bf16.msra.mxu0 0
    %885 = vmatprep.subr.bf16.mxu0 0
    %886 = vmatpush1.bf16.msra.mxu0 0
    %887 = vmatprep.subr.bf16.mxu0 0
    %888 = vmatpush1.bf16.msra.mxu0 0
    %889 = vmatprep.subr.bf16.mxu0 0
    %890 = vmatpush1.bf16.msra.mxu0 0
    %891 = vmatprep.subr.bf16.mxu0 0
    %892 = vmatpush1.bf16.msra.mxu0 0
    %893 = vmatprep.subr.bf16.mxu0 0
    %894 = vmatpush1.bf16.msra.mxu0 0
    %895 = vmatprep.subr.bf16.mxu0 0
    %896 = vmatpush1.bf16.msra.mxu0 0
    %897 = vmatprep.mubr.bf16.mxu0 0
    %898 = vmatmul.mubr.bf16.gmra.mrb[0].mxu0 %v860
    %v899 = vpop.f32.mrb[0].mxu0
    %v900 = vadd.f32 0.0, %v899
    %v901 = vpop.f32.mrb[0].mxu0
    %v902 = vpop.f32.mrb[0].mxu0
    %v903 = vpop.f32.mrb[0].mxu0
    %904 = vdwg.mxu0
    %905 = vrot.lane.b32.xlu0 %v143, 64
    %v906 = vpop.permute.xlu0 %905
    %v908 = vsel %vm149, %v652, 0
    %v911 = vsel %vm669, %v906, 0
    %913 = vmatprep.subr.bf16.mxu0 0
    %914 = vmatpush1.bf16.msra.mxu0 %v911
    %915 = vmatprep.subr.bf16.mxu0 0
    %916 = vmatpush1.bf16.msra.mxu0 0
    %917 = vmatprep.subr.bf16.mxu0 0
    %918 = vmatpush1.bf16.msra.mxu0 0
    %919 = vmatprep.subr.bf16.mxu0 0
    %920 = vmatpush1.bf16.msra.mxu0 0
    %921 = vmatprep.subr.bf16.mxu0 0
    %922 = vmatpush1.bf16.msra.mxu0 0
    %923 = vmatprep.subr.bf16.mxu0 0
    %924 = vmatpush1.bf16.msra.mxu0 0
    %925 = vmatprep.subr.bf16.mxu0 0
    %926 = vmatpush1.bf16.msra.mxu0 0
    %927 = vmatprep.subr.bf16.mxu0 0
    %928 = vmatpush1.bf16.msra.mxu0 0
    %929 = vmatprep.subr.bf16.mxu0 0
    %930 = vmatpush1.bf16.msra.mxu0 0
    %931 = vmatprep.subr.bf16.mxu0 0
    %932 = vmatpush1.bf16.msra.mxu0 0
    %933 = vmatprep.subr.bf16.mxu0 0
    %934 = vmatpush1.bf16.msra.mxu0 0
    %935 = vmatprep.subr.bf16.mxu0 0
    %936 = vmatpush1.bf16.msra.mxu0 0
    %937 = vmatprep.subr.bf16.mxu0 0
    %938 = vmatpush1.bf16.msra.mxu0 0
    %939 = vmatprep.subr.bf16.mxu0 0
    %940 = vmatpush1.bf16.msra.mxu0 0
    %941 = vmatprep.subr.bf16.mxu0 0
    %942 = vmatpush1.bf16.msra.mxu0 0
    %943 = vmatprep.subr.bf16.mxu0 0
    %944 = vmatpush1.bf16.msra.mxu0 0
    %945 = vmatprep.mubr.bf16.mxu0 0
    %946 = vmatmul.mubr.bf16.gmra.mrb[0].mxu0 %v908
    %v947 = vpop.f32.mrb[0].mxu0
    %v948 = vadd.f32 0.0, %v947
    %v949 = vpop.f32.mrb[0].mxu0
    %v950 = vpop.f32.mrb[0].mxu0
    %v951 = vpop.f32.mrb[0].mxu0
    %952 = vdwg.mxu0
    %953 = vrot.lane.b32.xlu0 %v144, 64
    %v954 = vpop.permute.xlu0 %953
    %v956 = vsel %vm149, %v653, 0
    %v959 = vsel %vm669, %v954, 0
    %961 = vmatprep.subr.bf16.mxu0 0
    %962 = vmatpush1.bf16.msra.mxu0 %v959
    %963 = vmatprep.subr.bf16.mxu0 0
    %964 = vmatpush1.bf16.msra.mxu0 0
    %965 = vmatprep.subr.bf16.mxu0 0
    %966 = vmatpush1.bf16.msra.mxu0 0
    %967 = vmatprep.subr.bf16.mxu0 0
    %968 = vmatpush1.bf16.msra.mxu0 0
    %969 = vmatprep.subr.bf16.mxu0 0
    %970 = vmatpush1.bf16.msra.mxu0 0
    %971 = vmatprep.subr.bf16.mxu0 0
    %972 = vmatpush1.bf16.msra.mxu0 0
    %973 = vmatprep.subr.bf16.mxu0 0
    %974 = vmatpush1.bf16.msra.mxu0 0
    %975 = vmatprep.subr.bf16.mxu0 0
    %976 = vmatpush1.bf16.msra.mxu0 0
    %977 = vmatprep.subr.bf16.mxu0 0
    %978 = vmatpush1.bf16.msra.mxu0 0
    %979 = vmatprep.subr.bf16.mxu0 0
    %980 = vmatpush1.bf16.msra.mxu0 0
    %981 = vmatprep.subr.bf16.mxu0 0
    %982 = vmatpush1.bf16.msra.mxu0 0
    %983 = vmatprep.subr.bf16.mxu0 0
    %984 = vmatpush1.bf16.msra.mxu0 0
    %985 = vmatprep.subr.bf16.mxu0 0
    %986 = vmatpush1.bf16.msra.mxu0 0
    %987 = vmatprep.subr.bf16.mxu0 0
    %988 = vmatpush1.bf16.msra.mxu0 0
    %989 = vmatprep.subr.bf16.mxu0 0
    %990 = vmatpush1.bf16.msra.mxu0 0
    %991 = vmatprep.subr.bf16.mxu0 0
    %992 = vmatpush1.bf16.msra.mxu0 0
    %993 = vmatprep.mubr.bf16.mxu0 0
    %994 = vmatmul.mubr.bf16.gmra.mrb[0].mxu0 %v956
    %v995 = vpop.f32.mrb[0].mxu0
    %v996 = vadd.f32 0.0, %v995
    %v997 = vpop.f32.mrb[0].mxu0
    %v998 = vpop.f32.mrb[0].mxu0
    %v999 = vpop.f32.mrb[0].mxu0
    %1000 = vdwg.mxu0
    %1001 = vrot.lane.b32.xlu0 %v145, 64
    %v1002 = vpop.permute.xlu0 %1001
    %v1004 = vsel %vm149, %v654, 0
    %v1007 = vsel %vm669, %v1002, 0
    %1009 = vmatprep.subr.bf16.mxu0 0
    %1010 = vmatpush1.bf16.msra.mxu0 %v1007
    %1011 = vmatprep.subr.bf16.mxu0 0
    %1012 = vmatpush1.bf16.msra.mxu0 0
    %1013 = vmatprep.subr.bf16.mxu0 0
    %1014 = vmatpush1.bf16.msra.mxu0 0
    %1015 = vmatprep.subr.bf16.mxu0 0
    %1016 = vmatpush1.bf16.msra.mxu0 0
    %1017 = vmatprep.subr.bf16.mxu0 0
    %1018 = vmatpush1.bf16.msra.mxu0 0
    %1019 = vmatprep.subr.bf16.mxu0 0
    %1020 = vmatpush1.bf16.msra.mxu0 0
    %1021 = vmatprep.subr.bf16.mxu0 0
    %1022 = vmatpush1.bf16.msra.mxu0 0
    %1023 = vmatprep.subr.bf16.mxu0 0
    %1024 = vmatpush1.bf16.msra.mxu0 0
    %1025 = vmatprep.subr.bf16.mxu0 0
    %1026 = vmatpush1.bf16.msra.mxu0 0
    %1027 = vmatprep.subr.bf16.mxu0 0
    %1028 = vmatpush1.bf16.msra.mxu0 0
    %1029 = vmatprep.subr.bf16.mxu0 0
    %1030 = vmatpush1.bf16.msra.mxu0 0
    %1031 = vmatprep.subr.bf16.mxu0 0
    %1032 = vmatpush1.bf16.msra.mxu0 0
    %1033 = vmatprep.subr.bf16.mxu0 0
    %1034 = vmatpush1.bf16.msra.mxu0 0
    %1035 = vmatprep.subr.bf16.mxu0 0
    %1036 = vmatpush1.bf16.msra.mxu0 0
    %1037 = vmatprep.subr.bf16.mxu0 0
    %1038 = vmatpush1.bf16.msra.mxu0 0
    %1039 = vmatprep.subr.bf16.mxu0 0
    %1040 = vmatpush1.bf16.msra.mxu0 0
    %1041 = vmatprep.mubr.bf16.mxu0 0
    %1042 = vmatmul.mubr.bf16.gmra.mrb[0].mxu0 %v1004
    %v1043 = vpop.f32.mrb[0].mxu0
    %v1044 = vadd.f32 0.0, %v1043
    %v1045 = vpop.f32.mrb[0].mxu0
    %v1046 = vpop.f32.mrb[0].mxu0
    %v1047 = vpop.f32.mrb[0].mxu0
    %1048 = vdwg.mxu0
    %1051 = vrot.lane.b32.xlu0 %v804, 8
    %v1052 = vpop.permute.xlu0 %1051
    %1053 = vrot.lane.b32.xlu0 %v852, 8
    %v1054 = vpop.permute.xlu0 %1053
    %1059 = vrot.lane.b32.xlu0 %v900, 16
    %v1060 = vpop.permute.xlu0 %1059
    %1061 = vrot.lane.b32.xlu0 %v948, 16
    %v1062 = vpop.permute.xlu0 %1061
    %1067 = vrot.lane.b32.xlu0 %v996, 24
    %v1068 = vpop.permute.xlu0 %1067
    %1069 = vrot.lane.b32.xlu0 %v1044, 24
    %v1070 = vpop.permute.xlu0 %1069
    %v1073 = vsel %vm149, %v708, %v1052
    %v1074 = vsel %vm149, %v756, %v1054
    %vm1075 = vcmask 130048
    %v1076 = vsel %vm1075, %v1073, %v1060
    %v1077 = vsel %vm1075, %v1074, %v1062
    %vm1078 = vcmask 195584
    %v1079 = vsel %vm1078, %v1076, %v1068
    %v1080 = vsel %vm1078, %v1077, %v1070
    %v1081 = vpack.c.bf16 %v1080, %v1079
    %1082 = vrot.lane.b32.xlu0 %v69, 32
    %v1083 = vpop.permute.xlu0 %1082
    %1084 = vrot.lane.b32.xlu0 %v70, 32
    %v1085 = vpop.permute.xlu0 %1084
    %v1089 = vsel %vm73, %v1081, 0
    %1091 = vmatprep.subr.bf16.mxu0 0
    %1092 = vmatpush1.bf16.msra.mxu0 %v1083
    %1093 = vmatprep.subr.bf16.mxu0 0
    %1094 = vmatpush1.bf16.msra.mxu0 %v1085
    %1095 = vmatprep.subr.bf16.mxu0 0
    %1096 = vmatpush1.bf16.msra.mxu0 0
    %1097 = vmatprep.subr.bf16.mxu0 0
    %1098 = vmatpush1.bf16.msra.mxu0 0
    %1099 = vmatprep.subr.bf16.mxu0 0
    %1100 = vmatpush1.bf16.msra.mxu0 0
    %1101 = vmatprep.subr.bf16.mxu0 0
    %1102 = vmatpush1.bf16.msra.mxu0 0
    %1103 = vmatprep.subr.bf16.mxu0 0
    %1104 = vmatpush1.bf16.msra.mxu0 0
    %1105 = vmatprep.subr.bf16.mxu0 0
    %1106 = vmatpush1.bf16.msra.mxu0 0
    %1107 = vmatprep.subr.bf16.mxu0 0
    %1108 = vmatpush1.bf16.msra.mxu0 0
    %1109 = vmatprep.subr.bf16.mxu0 0
    %1110 = vmatpush1.bf16.msra.mxu0 0
    %1111 = vmatprep.subr.bf16.mxu0 0
    %1112 = vmatpush1.bf16.msra.mxu0 0
    %1113 = vmatprep.subr.bf16.mxu0 0
    %1114 = vmatpush1.bf16.msra.mxu0 0
    %1115 = vmatprep.subr.bf16.mxu0 0
    %1116 = vmatpush1.bf16.msra.mxu0 0
    %1117 = vmatprep.subr.bf16.mxu0 0
    %1118 = vmatpush1.bf16.msra.mxu0 0
    %1119 = vmatprep.subr.bf16.mxu0 0
    %1120 = vmatpush1.bf16.msra.mxu0 0
    %1121 = vmatprep.subr.bf16.mxu0 0
    %1122 = vmatpush1.bf16.msra.mxu0 0
    %1123 = vmatprep.mubr.bf16.mxu0 0
    %1124 = vmatmul.mubr.bf16.gmra.mrb[0].mxu0 %v1089
    %v1125 = vpop.f32.mrb[0].mxu0
    %v1126 = vadd.f32 0.0, %v1125
    %v1127 = vpop.f32.mrb[0].mxu0
    %v1128 = vpop.f32.mrb[0].mxu0
    %v1129 = vadd.f32 0.0, %v1128
    %v1130 = vpop.f32.mrb[0].mxu0
    %1131 = vdwg.mxu0
    %v1132 = vlaneseq
    %v1133 = vshrl.u32 %v1132, 7
    %v1134 = vsub.s32 1, %v1133
    %v1135 = vrot.slane %v55, %v1134
    %v1136 = vadd.f32 %v1126, %v1135
    %v1137 = vadd.f32 %v1129, %v1135
    %v1138 = vadd.f32 %v1136, %v25
    %v1139 = vadd.f32 %v1137, %v28
    %v1140 = vsel %vm73, %v1138, 0.0
    %1141 = vadd.xlane.f32.xlu0 %v1140
    %v1142 = vpop.xlane.xlu0 %1141
    %v1143 = vsel %vm73, %v1139, 0.0
    %1144 = vadd.xlane.f32.xlu0 %v1143
    %v1145 = vpop.xlane.xlu0 %1144
    %v1146 = vrcp.pop 32.0
    %v1147 = vmul.f32 %v1142, %v1146
    %v1148 = vmul.f32 %v1145, %v1146
    %v1149 = vsub.f32 %v1138, %v1147
    %v1150 = vsub.f32 %v1139, %v1148
    %v1151 = vmul.f32 %v1149, %v1149
    %v1152 = vmul.f32 %v1150, %v1150
    %v1153 = vsel %vm73, %v1151, 0.0
    %1154 = vadd.xlane.f32.xlu0 %v1153
    %v1155 = vpop.xlane.xlu0 %1154
    %v1156 = vsel %vm73, %v1152, 0.0
    %1157 = vadd.xlane.f32.xlu0 %v1156
    %v1158 = vpop.xlane.xlu0 %1157
    %v1159 = vmul.f32 %v1155, %v1146
    %v1160 = vmul.f32 %v1158, %v1146
    %v1161 = vadd.f32 %v1159, 1e-05
    %v1162 = vadd.f32 %v1160, 1e-05
    %v1163 = vrsqrt.pop %v1161
    %v1164 = vrsqrt.pop %v1162
    %v1165 = vmul.f32 %v1149, %v1163
    %v1166 = vmul.f32 %v1150, %v1164
    %1168 = vrot.lane.b32.xlu0 %v1135, 96
    %v1169 = vpop.permute.xlu0 %1168
    %v1171 = vmul.f32 %v1165, %v1169
    %v1172 = vmul.f32 %v1166, %v1169
    %1173 = vrot.lane.b32.xlu0 %v1135, 64
    %v1174 = vpop.permute.xlu0 %1173
    %v1176 = vadd.f32 %v1171, %v1174
    %v1177 = vadd.f32 %v1172, %v1174
    %v1178 = vpack.c.bf16 %v1177, %v1176
    %v1179 = vpack.c.bf16 %v27, %v26
    %v1180 = vpack.c.bf16 %v30, %v29
    %v1181 = vlaneseq
    %v1182 = vshrl.u32 %v1181, 7
    %v1183 = vsub.s32 2, %v1182
    %v1184 = vrot.slane %v55, %v1183
    %v1189 = vunpack.c.l.b16 %v39
    %v1190 = vunpack.c.l.b16 %v40
    %v1191 = vunpack.c.l.b16 %v41
    %v1192 = vunpack.c.l.b16 %v42
    %v1193 = vpack.c.b16 %v1190, %v1189
    %v1194 = vpack.c.b16 %v1192, %v1191
    %v1198 = vsel %vm73, %v1178, 0
    %1200 = vmatprep.subr.bf16.mxu0 0
    %1201 = vmatpush1.bf16.msra.mxu0 %v1193
    %1202 = vmatprep.subr.bf16.mxu0 0
    %1203 = vmatpush1.bf16.msra.mxu0 %v1194
    %1204 = vmatprep.subr.bf16.mxu0 0
    %1205 = vmatpush1.bf16.msra.mxu0 0
    %1206 = vmatprep.subr.bf16.mxu0 0
    %1207 = vmatpush1.bf16.msra.mxu0 0
    %1208 = vmatprep.subr.bf16.mxu0 0
    %1209 = vmatpush1.bf16.msra.mxu0 0
    %1210 = vmatprep.subr.bf16.mxu0 0
    %1211 = vmatpush1.bf16.msra.mxu0 0
    %1212 = vmatprep.subr.bf16.mxu0 0
    %1213 = vmatpush1.bf16.msra.mxu0 0
    %1214 = vmatprep.subr.bf16.mxu0 0
    %1215 = vmatpush1.bf16.msra.mxu0 0
    %1216 = vmatprep.subr.bf16.mxu0 0
    %1217 = vmatpush1.bf16.msra.mxu0 0
    %1218 = vmatprep.subr.bf16.mxu0 0
    %1219 = vmatpush1.bf16.msra.mxu0 0
    %1220 = vmatprep.subr.bf16.mxu0 0
    %1221 = vmatpush1.bf16.msra.mxu0 0
    %1222 = vmatprep.subr.bf16.mxu0 0
    %1223 = vmatpush1.bf16.msra.mxu0 0
    %1224 = vmatprep.subr.bf16.mxu0 0
    %1225 = vmatpush1.bf16.msra.mxu0 0
    %1226 = vmatprep.subr.bf16.mxu0 0
    %1227 = vmatpush1.bf16.msra.mxu0 0
    %1228 = vmatprep.subr.bf16.mxu0 0
    %1229 = vmatpush1.bf16.msra.mxu0 0
    %1230 = vmatprep.subr.bf16.mxu0 0
    %1231 = vmatpush1.bf16.msra.mxu0 0
    %1232 = vmatprep.mubr.bf16.mxu0 0
    %1233 = vmatmul.mubr.bf16.gmra.mrb[0].mxu0 %v1198
    %v1234 = vpop.f32.mrb[0].mxu0
    %v1235 = vadd.f32 %v1184, %v1234
    %v1236 = vpop.f32.mrb[0].mxu0
    %v1237 = vpop.f32.mrb[0].mxu0
    %v1238 = vadd.f32 %v1184, %v1237
    %v1239 = vpop.f32.mrb[0].mxu0
    %1240 = vdwg.mxu0
    %1241 = vrot.lane.b32.xlu0 %v1193, 96
    %v1242 = vpop.permute.xlu0 %1241
    %1243 = vrot.lane.b32.xlu0 %v1194, 96
    %v1244 = vpop.permute.xlu0 %1243
    %1248 = vrot.lane.b32.xlu0 %v1184, 96
    %v1249 = vpop.permute.xlu0 %1248
    %v1252 = vsel %vm73, %v1179, 0
    %v1255 = vsel %vm73, %v1180, 0
    %1257 = vmatprep.subr.bf16.mxu0 0
    %1258 = vmatpush1.bf16.msra.mxu0 %v1242
    %1259 = vmatprep.subr.bf16.mxu0 0
    %1260 = vmatpush1.bf16.msra.mxu0 %v1244
    %1261 = vmatprep.subr.bf16.mxu0 0
    %1262 = vmatpush1.bf16.msra.mxu0 0
    %1263 = vmatprep.subr.bf16.mxu0 0
    %1264 = vmatpush1.bf16.msra.mxu0 0
    %1265 = vmatprep.subr.bf16.mxu0 0
    %1266 = vmatpush1.bf16.msra.mxu0 0
    %1267 = vmatprep.subr.bf16.mxu0 0
    %1268 = vmatpush1.bf16.msra.mxu0 0
    %1269 = vmatprep.subr.bf16.mxu0 0
    %1270 = vmatpush1.bf16.msra.mxu0 0
    %1271 = vmatprep.subr.bf16.mxu0 0
    %1272 = vmatpush1.bf16.msra.mxu0 0
    %1273 = vmatprep.subr.bf16.mxu0 0
    %1274 = vmatpush1.bf16.msra.mxu0 0
    %1275 = vmatprep.subr.bf16.mxu0 0
    %1276 = vmatpush1.bf16.msra.mxu0 0
    %1277 = vmatprep.subr.bf16.mxu0 0
    %1278 = vmatpush1.bf16.msra.mxu0 0
    %1279 = vmatprep.subr.bf16.mxu0 0
    %1280 = vmatpush1.bf16.msra.mxu0 0
    %1281 = vmatprep.subr.bf16.mxu0 0
    %1282 = vmatpush1.bf16.msra.mxu0 0
    %1283 = vmatprep.subr.bf16.mxu0 0
    %1284 = vmatpush1.bf16.msra.mxu0 0
    %1285 = vmatprep.subr.bf16.mxu0 0
    %1286 = vmatpush1.bf16.msra.mxu0 0
    %1287 = vmatprep.subr.bf16.mxu0 0
    %1288 = vmatpush1.bf16.msra.mxu0 0
    %1289 = vmatprep.mubr.bf16.mxu0 0
    %1290 = vmatmul.mubr.bf16.gmra.mrb[0].mxu0 %v1252
    %v1291 = vpop.f32.mrb[0].mxu0
    %v1292 = vadd.f32 %v1249, %v1291
    %v1293 = vpop.f32.mrb[0].mxu0
    %v1294 = vpop.f32.mrb[0].mxu0
    %v1295 = vadd.f32 %v1249, %v1294
    %v1296 = vpop.f32.mrb[0].mxu0
    %1297 = vmatprep.mubr.bf16.mxu0 0
    %1298 = vmatmul.mubr.bf16.gmra.mrb[0].mxu0 %v1255
    %v1299 = vpop.f32.mrb[0].mxu0
    %v1300 = vadd.f32 %v1249, %v1299
    %v1301 = vpop.f32.mrb[0].mxu0
    %v1302 = vpop.f32.mrb[0].mxu0
    %v1303 = vadd.f32 %v1249, %v1302
    %v1304 = vpop.f32.mrb[0].mxu0
    %1305 = vdwg.mxu0
    %1308 = vrot.lane.b32.xlu0 %v1235, 120
    %v1309 = vpop.permute.xlu0 %1308
    %1310 = vrot.lane.b32.xlu0 %v1238, 120
    %v1311 = vpop.permute.xlu0 %1310
    %1314 = vrot.lane.b32.xlu0 %v1235, 112
    %v1315 = vpop.permute.xlu0 %1314
    %1316 = vrot.lane.b32.xlu0 %v1238, 112
    %v1317 = vpop.permute.xlu0 %1316
    %1320 = vrot.lane.b32.xlu0 %v1235, 104
    %v1321 = vpop.permute.xlu0 %1320
    %1322 = vrot.lane.b32.xlu0 %v1238, 104
    %v1323 = vpop.permute.xlu0 %1322
    %1330 = vrot.lane.b32.xlu0 %v1292, 120
    %v1331 = vpop.permute.xlu0 %1330
    %1332 = vrot.lane.b32.xlu0 %v1295, 120
    %v1333 = vpop.permute.xlu0 %1332
    %1334 = vrot.lane.b32.xlu0 %v1300, 120
    %v1335 = vpop.permute.xlu0 %1334
    %1336 = vrot.lane.b32.xlu0 %v1303, 120
    %v1337 = vpop.permute.xlu0 %1336
    %1342 = vrot.lane.b32.xlu0 %v1292, 112
    %v1343 = vpop.permute.xlu0 %1342
    %1344 = vrot.lane.b32.xlu0 %v1295, 112
    %v1345 = vpop.permute.xlu0 %1344
    %1346 = vrot.lane.b32.xlu0 %v1300, 112
    %v1347 = vpop.permute.xlu0 %1346
    %1348 = vrot.lane.b32.xlu0 %v1303, 112
    %v1349 = vpop.permute.xlu0 %1348
    %1354 = vrot.lane.b32.xlu0 %v1292, 104
    %v1355 = vpop.permute.xlu0 %1354
    %1356 = vrot.lane.b32.xlu0 %v1295, 104
    %v1357 = vpop.permute.xlu0 %1356
    %1358 = vrot.lane.b32.xlu0 %v1300, 104
    %v1359 = vpop.permute.xlu0 %1358
    %1360 = vrot.lane.b32.xlu0 %v1303, 104
    %v1361 = vpop.permute.xlu0 %1360
    %v1366 = vpack.c.bf16 %v1235, %v1235
    %v1367 = vpack.c.bf16 %v1238, %v1238
    %v1368 = vpack.c.bf16 %v1309, %v1309
    %v1369 = vpack.c.bf16 %v1311, %v1311
    %v1370 = vpack.c.bf16 %v1315, %v1315
    %v1371 = vpack.c.bf16 %v1317, %v1317
    %v1372 = vpack.c.bf16 %v1321, %v1321
    %v1373 = vpack.c.bf16 %v1323, %v1323
    %v1374 = vpack.c.bf16 %v1295, %v1292
    %v1375 = vpack.c.bf16 %v1303, %v1300
    %v1376 = vpack.c.bf16 %v1333, %v1331
    %v1377 = vpack.c.bf16 %v1337, %v1335
    %v1378 = vpack.c.bf16 %v1345, %v1343
    %v1379 = vpack.c.bf16 %v1349, %v1347
    %v1380 = vpack.c.bf16 %v1357, %v1355
    %v1381 = vpack.c.bf16 %v1361, %v1359
    %v1383 = vsel %vm149, %v1366, 0
    %v1386 = vsel %vm149, %v1374, 0
    %1388 = vmatprep.subr.bf16.mxu0 0
    %1389 = vmatpush1.bf16.xpose.msra.mxu0 %v1386
    %1390 = vmatprep.subr.bf16.mxu0 0
    %1391 = vmatpush1.bf16.xpose.msra.mxu0 0
    %1392 = vmatprep.subr.bf16.mxu0 0
    %1393 = vmatpush1.bf16.xpose.msra.mxu0 0
    %1394 = vmatprep.subr.bf16.mxu0 0
    %1395 = vmatpush1.bf16.xpose.msra.mxu0 0
    %1396 = vmatprep.subr.bf16.mxu0 0
    %1397 = vmatpush1.bf16.xpose.msra.mxu0 0
    %1398 = vmatprep.subr.bf16.mxu0 0
    %1399 = vmatpush1.bf16.xpose.msra.mxu0 0
    %1400 = vmatprep.subr.bf16.mxu0 0
    %1401 = vmatpush1.bf16.xpose.msra.mxu0 0
    %1402 = vmatprep.subr.bf16.mxu0 0
    %1403 = vmatpush1.bf16.xpose.msra.mxu0 0
    %1404 = vmatprep.subr.bf16.mxu0 0
    %1405 = vmatpush1.bf16.xpose.msra.mxu0 0
    %1406 = vmatprep.subr.bf16.mxu0 0
    %1407 = vmatpush1.bf16.xpose.msra.mxu0 0
    %1408 = vmatprep.subr.bf16.mxu0 0
    %1409 = vmatpush1.bf16.xpose.msra.mxu0 0
    %1410 = vmatprep.subr.bf16.mxu0 0
    %1411 = vmatpush1.bf16.xpose.msra.mxu0 0
    %1412 = vmatprep.subr.bf16.mxu0 0
    %1413 = vmatpush1.bf16.xpose.msra.mxu0 0
    %1414 = vmatprep.subr.bf16.mxu0 0
    %1415 = vmatpush1.bf16.xpose.msra.mxu0 0
    %1416 = vmatprep.subr.bf16.mxu0 0
    %1417 = vmatpush1.bf16.xpose.msra.mxu0 0
    %1418 = vmatprep.subr.bf16.mxu0 0
    %1419 = vmatpush1.bf16.xpose.msra.mxu0 0
    %1420 = vmatprep.mubr.bf16.mxu0 0
    %1421 = vmatmul.mubr.bf16.gmra.mrb[0].mxu0 %v1383
    %v1422 = vpop.f32.mrb[0].mxu0
    %v1423 = vadd.f32 0.0, %v1422
    %v1424 = vpop.f32.mrb[0].mxu0
    %v1425 = vpop.f32.mrb[0].mxu0
    %v1426 = vpop.f32.mrb[0].mxu0
    %1427 = vdwg.mxu0
    %v1429 = vsel %vm149, %v1367, 0
    %v1432 = vsel %vm149, %v1375, 0
    %1434 = vmatprep.subr.bf16.mxu0 0
    %1435 = vmatpush1.bf16.xpose.msra.mxu0 %v1432
    %1436 = vmatprep.subr.bf16.mxu0 0
    %1437 = vmatpush1.bf16.xpose.msra.mxu0 0
    %1438 = vmatprep.subr.bf16.mxu0 0
    %1439 = vmatpush1.bf16.xpose.msra.mxu0 0
    %1440 = vmatprep.subr.bf16.mxu0 0
    %1441 = vmatpush1.bf16.xpose.msra.mxu0 0
    %1442 = vmatprep.subr.bf16.mxu0 0
    %1443 = vmatpush1.bf16.xpose.msra.mxu0 0
    %1444 = vmatprep.subr.bf16.mxu0 0
    %1445 = vmatpush1.bf16.xpose.msra.mxu0 0
    %1446 = vmatprep.subr.bf16.mxu0 0
    %1447 = vmatpush1.bf16.xpose.msra.mxu0 0
    %1448 = vmatprep.subr.bf16.mxu0 0
    %1449 = vmatpush1.bf16.xpose.msra.mxu0 0
    %1450 = vmatprep.subr.bf16.mxu0 0
    %1451 = vmatpush1.bf16.xpose.msra.mxu0 0
    %1452 = vmatprep.subr.bf16.mxu0 0
    %1453 = vmatpush1.bf16.xpose.msra.mxu0 0
    %1454 = vmatprep.subr.bf16.mxu0 0
    %1455 = vmatpush1.bf16.xpose.msra.mxu0 0
    %1456 = vmatprep.subr.bf16.mxu0 0
    %1457 = vmatpush1.bf16.xpose.msra.mxu0 0
    %1458 = vmatprep.subr.bf16.mxu0 0
    %1459 = vmatpush1.bf16.xpose.msra.mxu0 0
    %1460 = vmatprep.subr.bf16.mxu0 0
    %1461 = vmatpush1.bf16.xpose.msra.mxu0 0
    %1462 = vmatprep.subr.bf16.mxu0 0
    %1463 = vmatpush1.bf16.xpose.msra.mxu0 0
    %1464 = vmatprep.subr.bf16.mxu0 0
    %1465 = vmatpush1.bf16.xpose.msra.mxu0 0
    %1466 = vmatprep.mubr.bf16.mxu0 0
    %1467 = vmatmul.mubr.bf16.gmra.mrb[0].mxu0 %v1429
    %v1468 = vpop.f32.mrb[0].mxu0
    %v1469 = vadd.f32 0.0, %v1468
    %v1470 = vpop.f32.mrb[0].mxu0
    %v1471 = vpop.f32.mrb[0].mxu0
    %v1472 = vpop.f32.mrb[0].mxu0
    %1473 = vdwg.mxu0
    %v1475 = vsel %vm149, %v1368, 0
    %v1478 = vsel %vm149, %v1376, 0
    %1480 = vmatprep.subr.bf16.mxu0 0
    %1481 = vmatpush1.bf16.xpose.msra.mxu0 %v1478
    %1482 = vmatprep.subr.bf16.mxu0 0
    %1483 = vmatpush1.bf16.xpose.msra.mxu0 0
    %1484 = vmatprep.subr.bf16.mxu0 0
    %1485 = vmatpush1.bf16.xpose.msra.mxu0 0
    %1486 = vmatprep.subr.bf16.mxu0 0
    %1487 = vmatpush1.bf16.xpose.msra.mxu0 0
    %1488 = vmatprep.subr.bf16.mxu0 0
    %1489 = vmatpush1.bf16.xpose.msra.mxu0 0
    %1490 = vmatprep.subr.bf16.mxu0 0
    %1491 = vmatpush1.bf16.xpose.msra.mxu0 0
    %1492 = vmatprep.subr.bf16.mxu0 0
    %1493 = vmatpush1.bf16.xpose.msra.mxu0 0
    %1494 = vmatprep.subr.bf16.mxu0 0
    %1495 = vmatpush1.bf16.xpose.msra.mxu0 0
    %1496 = vmatprep.subr.bf16.mxu0 0
    %1497 = vmatpush1.bf16.xpose.msra.mxu0 0
    %1498 = vmatprep.subr.bf16.mxu0 0
    %1499 = vmatpush1.bf16.xpose.msra.mxu0 0
    %1500 = vmatprep.subr.bf16.mxu0 0
    %1501 = vmatpush1.bf16.xpose.msra.mxu0 0
    %1502 = vmatprep.subr.bf16.mxu0 0
    %1503 = vmatpush1.bf16.xpose.msra.mxu0 0
    %1504 = vmatprep.subr.bf16.mxu0 0
    %1505 = vmatpush1.bf16.xpose.msra.mxu0 0
    %1506 = vmatprep.subr.bf16.mxu0 0
    %1507 = vmatpush1.bf16.xpose.msra.mxu0 0
    %1508 = vmatprep.subr.bf16.mxu0 0
    %1509 = vmatpush1.bf16.xpose.msra.mxu0 0
    %1510 = vmatprep.subr.bf16.mxu0 0
    %1511 = vmatpush1.bf16.xpose.msra.mxu0 0
    %1512 = vmatprep.mubr.bf16.mxu0 0
    %1513 = vmatmul.mubr.bf16.gmra.mrb[0].mxu0 %v1475
    %v1514 = vpop.f32.mrb[0].mxu0
    %v1515 = vadd.f32 0.0, %v1514
    %v1516 = vpop.f32.mrb[0].mxu0
    %v1517 = vpop.f32.mrb[0].mxu0
    %v1518 = vpop.f32.mrb[0].mxu0
    %1519 = vdwg.mxu0
    %v1521 = vsel %vm149, %v1369, 0
    %v1524 = vsel %vm149, %v1377, 0
    %1526 = vmatprep.subr.bf16.mxu0 0
    %1527 = vmatpush1.bf16.xpose.msra.mxu0 %v1524
    %1528 = vmatprep.subr.bf16.mxu0 0
    %1529 = vmatpush1.bf16.xpose.msra.mxu0 0
    %1530 = vmatprep.subr.bf16.mxu0 0
    %1531 = vmatpush1.bf16.xpose.msra.mxu0 0
    %1532 = vmatprep.subr.bf16.mxu0 0
    %1533 = vmatpush1.bf16.xpose.msra.mxu0 0
    %1534 = vmatprep.subr.bf16.mxu0 0
    %1535 = vmatpush1.bf16.xpose.msra.mxu0 0
    %1536 = vmatprep.subr.bf16.mxu0 0
    %1537 = vmatpush1.bf16.xpose.msra.mxu0 0
    %1538 = vmatprep.subr.bf16.mxu0 0
    %1539 = vmatpush1.bf16.xpose.msra.mxu0 0
    %1540 = vmatprep.subr.bf16.mxu0 0
    %1541 = vmatpush1.bf16.xpose.msra.mxu0 0
    %1542 = vmatprep.subr.bf16.mxu0 0
    %1543 = vmatpush1.bf16.xpose.msra.mxu0 0
    %1544 = vmatprep.subr.bf16.mxu0 0
    %1545 = vmatpush1.bf16.xpose.msra.mxu0 0
    %1546 = vmatprep.subr.bf16.mxu0 0
    %1547 = vmatpush1.bf16.xpose.msra.mxu0 0
    %1548 = vmatprep.subr.bf16.mxu0 0
    %1549 = vmatpush1.bf16.xpose.msra.mxu0 0
    %1550 = vmatprep.subr.bf16.mxu0 0
    %1551 = vmatpush1.bf16.xpose.msra.mxu0 0
    %1552 = vmatprep.subr.bf16.mxu0 0
    %1553 = vmatpush1.bf16.xpose.msra.mxu0 0
    %1554 = vmatprep.subr.bf16.mxu0 0
    %1555 = vmatpush1.bf16.xpose.msra.mxu0 0
    %1556 = vmatprep.subr.bf16.mxu0 0
    %1557 = vmatpush1.bf16.xpose.msra.mxu0 0
    %1558 = vmatprep.mubr.bf16.mxu0 0
    %1559 = vmatmul.mubr.bf16.gmra.mrb[0].mxu0 %v1521
    %v1560 = vpop.f32.mrb[0].mxu0
    %v1561 = vadd.f32 0.0, %v1560
    %v1562 = vpop.f32.mrb[0].mxu0
    %v1563 = vpop.f32.mrb[0].mxu0
    %v1564 = vpop.f32.mrb[0].mxu0
    %1565 = vdwg.mxu0
    %v1567 = vsel %vm149, %v1370, 0
    %v1570 = vsel %vm149, %v1378, 0
    %1572 = vmatprep.subr.bf16.mxu0 0
    %1573 = vmatpush1.bf16.xpose.msra.mxu0 %v1570
    %1574 = vmatprep.subr.bf16.mxu0 0
    %1575 = vmatpush1.bf16.xpose.msra.mxu0 0
    %1576 = vmatprep.subr.bf16.mxu0 0
    %1577 = vmatpush1.bf16.xpose.msra.mxu0 0
    %1578 = vmatprep.subr.bf16.mxu0 0
    %1579 = vmatpush1.bf16.xpose.msra.mxu0 0
    %1580 = vmatprep.subr.bf16.mxu0 0
    %1581 = vmatpush1.bf16.xpose.msra.mxu0 0
    %1582 = vmatprep.subr.bf16.mxu0 0
    %1583 = vmatpush1.bf16.xpose.msra.mxu0 0
    %1584 = vmatprep.subr.bf16.mxu0 0
    %1585 = vmatpush1.bf16.xpose.msra.mxu0 0
    %1586 = vmatprep.subr.bf16.mxu0 0
    %1587 = vmatpush1.bf16.xpose.msra.mxu0 0
    %1588 = vmatprep.subr.bf16.mxu0 0
    %1589 = vmatpush1.bf16.xpose.msra.mxu0 0
    %1590 = vmatprep.subr.bf16.mxu0 0
    %1591 = vmatpush1.bf16.xpose.msra.mxu0 0
    %1592 = vmatprep.subr.bf16.mxu0 0
    %1593 = vmatpush1.bf16.xpose.msra.mxu0 0
    %1594 = vmatprep.subr.bf16.mxu0 0
    %1595 = vmatpush1.bf16.xpose.msra.mxu0 0
    %1596 = vmatprep.subr.bf16.mxu0 0
    %1597 = vmatpush1.bf16.xpose.msra.mxu0 0
    %1598 = vmatprep.subr.bf16.mxu0 0
    %1599 = vmatpush1.bf16.xpose.msra.mxu0 0
    %1600 = vmatprep.subr.bf16.mxu0 0
    %1601 = vmatpush1.bf16.xpose.msra.mxu0 0
    %1602 = vmatprep.subr.bf16.mxu0 0
    %1603 = vmatpush1.bf16.xpose.msra.mxu0 0
    %1604 = vmatprep.mubr.bf16.mxu0 0
    %1605 = vmatmul.mubr.bf16.gmra.mrb[0].mxu0 %v1567
    %v1606 = vpop.f32.mrb[0].mxu0
    %v1607 = vadd.f32 0.0, %v1606
    %v1608 = vpop.f32.mrb[0].mxu0
    %v1609 = vpop.f32.mrb[0].mxu0
    %v1610 = vpop.f32.mrb[0].mxu0
    %1611 = vdwg.mxu0
    %v1613 = vsel %vm149, %v1371, 0
    %v1616 = vsel %vm149, %v1379, 0
    %1618 = vmatprep.subr.bf16.mxu0 0
    %1619 = vmatpush1.bf16.xpose.msra.mxu0 %v1616
    %1620 = vmatprep.subr.bf16.mxu0 0
    %1621 = vmatpush1.bf16.xpose.msra.mxu0 0
    %1622 = vmatprep.subr.bf16.mxu0 0
    %1623 = vmatpush1.bf16.xpose.msra.mxu0 0
    %1624 = vmatprep.subr.bf16.mxu0 0
    %1625 = vmatpush1.bf16.xpose.msra.mxu0 0
    %1626 = vmatprep.subr.bf16.mxu0 0
    %1627 = vmatpush1.bf16.xpose.msra.mxu0 0
    %1628 = vmatprep.subr.bf16.mxu0 0
    %1629 = vmatpush1.bf16.xpose.msra.mxu0 0
    %1630 = vmatprep.subr.bf16.mxu0 0
    %1631 = vmatpush1.bf16.xpose.msra.mxu0 0
    %1632 = vmatprep.subr.bf16.mxu0 0
    %1633 = vmatpush1.bf16.xpose.msra.mxu0 0
    %1634 = vmatprep.subr.bf16.mxu0 0
    %1635 = vmatpush1.bf16.xpose.msra.mxu0 0
    %1636 = vmatprep.subr.bf16.mxu0 0
    %1637 = vmatpush1.bf16.xpose.msra.mxu0 0
    %1638 = vmatprep.subr.bf16.mxu0 0
    %1639 = vmatpush1.bf16.xpose.msra.mxu0 0
    %1640 = vmatprep.subr.bf16.mxu0 0
    %1641 = vmatpush1.bf16.xpose.msra.mxu0 0
    %1642 = vmatprep.subr.bf16.mxu0 0
    %1643 = vmatpush1.bf16.xpose.msra.mxu0 0
    %1644 = vmatprep.subr.bf16.mxu0 0
    %1645 = vmatpush1.bf16.xpose.msra.mxu0 0
    %1646 = vmatprep.subr.bf16.mxu0 0
    %1647 = vmatpush1.bf16.xpose.msra.mxu0 0
    %1648 = vmatprep.subr.bf16.mxu0 0
    %1649 = vmatpush1.bf16.xpose.msra.mxu0 0
    %1650 = vmatprep.mubr.bf16.mxu0 0
    %1651 = vmatmul.mubr.bf16.gmra.mrb[0].mxu0 %v1613
    %v1652 = vpop.f32.mrb[0].mxu0
    %v1653 = vadd.f32 0.0, %v1652
    %v1654 = vpop.f32.mrb[0].mxu0
    %v1655 = vpop.f32.mrb[0].mxu0
    %v1656 = vpop.f32.mrb[0].mxu0
    %1657 = vdwg.mxu0
    %v1659 = vsel %vm149, %v1372, 0
    %v1662 = vsel %vm149, %v1380, 0
    %1664 = vmatprep.subr.bf16.mxu0 0
    %1665 = vmatpush1.bf16.xpose.msra.mxu0 %v1662
    %1666 = vmatprep.subr.bf16.mxu0 0
    %1667 = vmatpush1.bf16.xpose.msra.mxu0 0
    %1668 = vmatprep.subr.bf16.mxu0 0
    %1669 = vmatpush1.bf16.xpose.msra.mxu0 0
    %1670 = vmatprep.subr.bf16.mxu0 0
    %1671 = vmatpush1.bf16.xpose.msra.mxu0 0
    %1672 = vmatprep.subr.bf16.mxu0 0
    %1673 = vmatpush1.bf16.xpose.msra.mxu0 0
    %1674 = vmatprep.subr.bf16.mxu0 0
    %1675 = vmatpush1.bf16.xpose.msra.mxu0 0
    %1676 = vmatprep.subr.bf16.mxu0 0
    %1677 = vmatpush1.bf16.xpose.msra.mxu0 0
    %1678 = vmatprep.subr.bf16.mxu0 0
    %1679 = vmatpush1.bf16.xpose.msra.mxu0 0
    %1680 = vmatprep.subr.bf16.mxu0 0
    %1681 = vmatpush1.bf16.xpose.msra.mxu0 0
    %1682 = vmatprep.subr.bf16.mxu0 0
    %1683 = vmatpush1.bf16.xpose.msra.mxu0 0
    %1684 = vmatprep.subr.bf16.mxu0 0
    %1685 = vmatpush1.bf16.xpose.msra.mxu0 0
    %1686 = vmatprep.subr.bf16.mxu0 0
    %1687 = vmatpush1.bf16.xpose.msra.mxu0 0
    %1688 = vmatprep.subr.bf16.mxu0 0
    %1689 = vmatpush1.bf16.xpose.msra.mxu0 0
    %1690 = vmatprep.subr.bf16.mxu0 0
    %1691 = vmatpush1.bf16.xpose.msra.mxu0 0
    %1692 = vmatprep.subr.bf16.mxu0 0
    %1693 = vmatpush1.bf16.xpose.msra.mxu0 0
    %1694 = vmatprep.subr.bf16.mxu0 0
    %1695 = vmatpush1.bf16.xpose.msra.mxu0 0
    %1696 = vmatprep.mubr.bf16.mxu0 0
    %1697 = vmatmul.mubr.bf16.gmra.mrb[0].mxu0 %v1659
    %v1698 = vpop.f32.mrb[0].mxu0
    %v1699 = vadd.f32 0.0, %v1698
    %v1700 = vpop.f32.mrb[0].mxu0
    %v1701 = vpop.f32.mrb[0].mxu0
    %v1702 = vpop.f32.mrb[0].mxu0
    %1703 = vdwg.mxu0
    %v1705 = vsel %vm149, %v1373, 0
    %v1708 = vsel %vm149, %v1381, 0
    %1710 = vmatprep.subr.bf16.mxu0 0
    %1711 = vmatpush1.bf16.xpose.msra.mxu0 %v1708
    %1712 = vmatprep.subr.bf16.mxu0 0
    %1713 = vmatpush1.bf16.xpose.msra.mxu0 0
    %1714 = vmatprep.subr.bf16.mxu0 0
    %1715 = vmatpush1.bf16.xpose.msra.mxu0 0
    %1716 = vmatprep.subr.bf16.mxu0 0
    %1717 = vmatpush1.bf16.xpose.msra.mxu0 0
    %1718 = vmatprep.subr.bf16.mxu0 0
    %1719 = vmatpush1.bf16.xpose.msra.mxu0 0
    %1720 = vmatprep.subr.bf16.mxu0 0
    %1721 = vmatpush1.bf16.xpose.msra.mxu0 0
    %1722 = vmatprep.subr.bf16.mxu0 0
    %1723 = vmatpush1.bf16.xpose.msra.mxu0 0
    %1724 = vmatprep.subr.bf16.mxu0 0
    %1725 = vmatpush1.bf16.xpose.msra.mxu0 0
    %1726 = vmatprep.subr.bf16.mxu0 0
    %1727 = vmatpush1.bf16.xpose.msra.mxu0 0
    %1728 = vmatprep.subr.bf16.mxu0 0
    %1729 = vmatpush1.bf16.xpose.msra.mxu0 0
    %1730 = vmatprep.subr.bf16.mxu0 0
    %1731 = vmatpush1.bf16.xpose.msra.mxu0 0
    %1732 = vmatprep.subr.bf16.mxu0 0
    %1733 = vmatpush1.bf16.xpose.msra.mxu0 0
    %1734 = vmatprep.subr.bf16.mxu0 0
    %1735 = vmatpush1.bf16.xpose.msra.mxu0 0
    %1736 = vmatprep.subr.bf16.mxu0 0
    %1737 = vmatpush1.bf16.xpose.msra.mxu0 0
    %1738 = vmatprep.subr.bf16.mxu0 0
    %1739 = vmatpush1.bf16.xpose.msra.mxu0 0
    %1740 = vmatprep.subr.bf16.mxu0 0
    %1741 = vmatpush1.bf16.xpose.msra.mxu0 0
    %1742 = vmatprep.mubr.bf16.mxu0 0
    %1743 = vmatmul.mubr.bf16.gmra.mrb[0].mxu0 %v1705
    %v1744 = vpop.f32.mrb[0].mxu0
    %v1745 = vadd.f32 0.0, %v1744
    %v1746 = vpop.f32.mrb[0].mxu0
    %v1747 = vpop.f32.mrb[0].mxu0
    %v1748 = vpop.f32.mrb[0].mxu0
    %1749 = vdwg.mxu0
    %v1750 = vmul.f32 %v1423, 0.35355338
    %v1751 = vmul.f32 %v1469, 0.35355338
    %v1752 = vmul.f32 %v1515, 0.35355338
    %v1753 = vmul.f32 %v1561, 0.35355338
    %v1754 = vmul.f32 %v1607, 0.35355338
    %v1755 = vmul.f32 %v1653, 0.35355338
    %v1756 = vmul.f32 %v1699, 0.35355338
    %v1757 = vmul.f32 %v1745, 0.35355338
    %1766 = vrot.lane.b32.xlu0 %v1750, 8
    %v1767 = vpop.permute.xlu0 %1766
    %1768 = vrot.lane.b32.xlu0 %v1751, 8
    %v1769 = vpop.permute.xlu0 %1768
    %1770 = vrot.lane.b32.xlu0 %v1752, 8
    %v1771 = vpop.permute.xlu0 %1770
    %1772 = vrot.lane.b32.xlu0 %v1753, 8
    %v1773 = vpop.permute.xlu0 %1772
    %1774 = vrot.lane.b32.xlu0 %v1754, 8
    %v1775 = vpop.permute.xlu0 %1774
    %1776 = vrot.lane.b32.xlu0 %v1755, 8
    %v1777 = vpop.permute.xlu0 %1776
    %1778 = vrot.lane.b32.xlu0 %v1756, 8
    %v1779 = vpop.permute.xlu0 %1778
    %1780 = vrot.lane.b32.xlu0 %v1757, 8
    %v1781 = vpop.permute.xlu0 %1780
    %v1790 = vsel %vm549, -1e+09, %v1767
    %v1791 = vsel %vm550, -1e+09, %v1769
    %v1792 = vsel %vm549, -1e+09, %v1771
    %v1793 = vsel %vm550, -1e+09, %v1773
    %v1794 = vsel %vm549, -1e+09, %v1775
    %v1795 = vsel %vm550, -1e+09, %v1777
    %v1796 = vsel %vm549, -1e+09, %v1779
    %v1797 = vsel %vm550, -1e+09, %v1781
    %vm1798 = vcmask 195648
    %v1799 = vsel %vm1798, %v1790, -inf
    %1800 = vmax.xlane.f32.xlu0 %v1799
    %v1801 = vpop.xlane.xlu0 %1800
    %v1802 = vsel %vm1798, %v1791, -inf
    %1803 = vmax.xlane.f32.xlu0 %v1802
    %v1804 = vpop.xlane.xlu0 %1803
    %v1805 = vsel %vm1798, %v1792, -inf
    %1806 = vmax.xlane.f32.xlu0 %v1805
    %v1807 = vpop.xlane.xlu0 %1806
    %v1808 = vsel %vm1798, %v1793, -inf
    %1809 = vmax.xlane.f32.xlu0 %v1808
    %v1810 = vpop.xlane.xlu0 %1809
    %v1811 = vsel %vm1798, %v1794, -inf
    %1812 = vmax.xlane.f32.xlu0 %v1811
    %v1813 = vpop.xlane.xlu0 %1812
    %v1814 = vsel %vm1798, %v1795, -inf
    %1815 = vmax.xlane.f32.xlu0 %v1814
    %v1816 = vpop.xlane.xlu0 %1815
    %v1817 = vsel %vm1798, %v1796, -inf
    %1818 = vmax.xlane.f32.xlu0 %v1817
    %v1819 = vpop.xlane.xlu0 %1818
    %v1820 = vsel %vm1798, %v1797, -inf
    %1821 = vmax.xlane.f32.xlu0 %v1820
    %v1822 = vpop.xlane.xlu0 %1821
    %v1823 = vsub.f32 %v1790, %v1801
    %v1824 = vsub.f32 %v1791, %v1804
    %v1825 = vsub.f32 %v1792, %v1807
    %v1826 = vsub.f32 %v1793, %v1810
    %v1827 = vsub.f32 %v1794, %v1813
    %v1828 = vsub.f32 %v1795, %v1816
    %v1829 = vsub.f32 %v1796, %v1819
    %v1830 = vsub.f32 %v1797, %v1822
    %v1831 = vmul.f32 %v1823, 1.442695
    %v1832 = vpow.pop %v1831
    %v1833 = vmul.f32 %v1824, 1.442695
    %v1834 = vpow.pop %v1833
    %v1835 = vmul.f32 %v1825, 1.442695
    %v1836 = vpow.pop %v1835
    %v1837 = vmul.f32 %v1826, 1.442695
    %v1838 = vpow.pop %v1837
    %v1839 = vmul.f32 %v1827, 1.442695
    %v1840 = vpow.pop %v1839
    %v1841 = vmul.f32 %v1828, 1.442695
    %v1842 = vpow.pop %v1841
    %v1843 = vmul.f32 %v1829, 1.442695
    %v1844 = vpow.pop %v1843
    %v1845 = vmul.f32 %v1830, 1.442695
    %v1846 = vpow.pop %v1845
    %1855 = vrot.lane.b32.xlu0 %v1832, 120
    %v1856 = vpop.permute.xlu0 %1855
    %1857 = vrot.lane.b32.xlu0 %v1834, 120
    %v1858 = vpop.permute.xlu0 %1857
    %1859 = vrot.lane.b32.xlu0 %v1836, 120
    %v1860 = vpop.permute.xlu0 %1859
    %1861 = vrot.lane.b32.xlu0 %v1838, 120
    %v1862 = vpop.permute.xlu0 %1861
    %1863 = vrot.lane.b32.xlu0 %v1840, 120
    %v1864 = vpop.permute.xlu0 %1863
    %1865 = vrot.lane.b32.xlu0 %v1842, 120
    %v1866 = vpop.permute.xlu0 %1865
    %1867 = vrot.lane.b32.xlu0 %v1844, 120
    %v1868 = vpop.permute.xlu0 %1867
    %1869 = vrot.lane.b32.xlu0 %v1846, 120
    %v1870 = vpop.permute.xlu0 %1869
    %v1879 = vsel %vm1075, %v1856, 0.0
    %1880 = vadd.xlane.f32.xlu0 %v1879
    %v1881 = vpop.xlane.xlu0 %1880
    %v1882 = vsel %vm1075, %v1858, 0.0
    %1883 = vadd.xlane.f32.xlu0 %v1882
    %v1884 = vpop.xlane.xlu0 %1883
    %v1885 = vsel %vm1075, %v1860, 0.0
    %1886 = vadd.xlane.f32.xlu0 %v1885
    %v1887 = vpop.xlane.xlu0 %1886
    %v1888 = vsel %vm1075, %v1862, 0.0
    %1889 = vadd.xlane.f32.xlu0 %v1888
    %v1890 = vpop.xlane.xlu0 %1889
    %v1891 = vsel %vm1075, %v1864, 0.0
    %1892 = vadd.xlane.f32.xlu0 %v1891
    %v1893 = vpop.xlane.xlu0 %1892
    %v1894 = vsel %vm1075, %v1866, 0.0
    %1895 = vadd.xlane.f32.xlu0 %v1894
    %v1896 = vpop.xlane.xlu0 %1895
    %v1897 = vsel %vm1075, %v1868, 0.0
    %1898 = vadd.xlane.f32.xlu0 %v1897
    %v1899 = vpop.xlane.xlu0 %1898
    %v1900 = vsel %vm1075, %v1870, 0.0
    %1901 = vadd.xlane.f32.xlu0 %v1900
    %v1902 = vpop.xlane.xlu0 %1901
    %v1903 = vrcp.pop %v1881
    %v1904 = vrcp.pop %v1884
    %v1905 = vrcp.pop %v1887
    %v1906 = vrcp.pop %v1890
    %v1907 = vrcp.pop %v1893
    %v1908 = vrcp.pop %v1896
    %v1909 = vrcp.pop %v1899
    %v1910 = vrcp.pop %v1902
    %v1911 = vmul.f32 %v1832, %v1903
    %v1912 = vmul.f32 %v1834, %v1904
    %v1913 = vmul.f32 %v1836, %v1905
    %v1914 = vmul.f32 %v1838, %v1906
    %v1915 = vmul.f32 %v1840, %v1907
    %v1916 = vmul.f32 %v1842, %v1908
    %v1917 = vmul.f32 %v1844, %v1909
    %v1918 = vmul.f32 %v1846, %v1910
    %v1919 = vpack.c.bf16 %v1911, %v1911
    %v1920 = vpack.c.bf16 %v1912, %v1912
    %v1921 = vpack.c.bf16 %v1913, %v1913
    %v1922 = vpack.c.bf16 %v1914, %v1914
    %v1923 = vpack.c.bf16 %v1915, %v1915
    %v1924 = vpack.c.bf16 %v1916, %v1916
    %v1925 = vpack.c.bf16 %v1917, %v1917
    %v1926 = vpack.c.bf16 %v1918, %v1918
    %v1935 = vunpack.c.l.b16 %v1919
    %v1936 = vunpack.c.l.b16 %v1920
    %v1937 = vunpack.c.l.b16 %v1921
    %v1938 = vunpack.c.l.b16 %v1922
    %v1939 = vunpack.c.l.b16 %v1923
    %v1940 = vunpack.c.l.b16 %v1924
    %v1941 = vunpack.c.l.b16 %v1925
    %v1942 = vunpack.c.l.b16 %v1926
    %v1943 = vpack.c.b16 %v1935, %v1935
    %v1944 = vpack.c.b16 %v1936, %v1936
    %v1945 = vpack.c.b16 %v1937, %v1937
    %v1946 = vpack.c.b16 %v1938, %v1938
    %v1947 = vpack.c.b16 %v1939, %v1939
    %v1948 = vpack.c.b16 %v1940, %v1940
    %v1949 = vpack.c.b16 %v1941, %v1941
    %v1950 = vpack.c.b16 %v1942, %v1942
    %1951 = vrot.lane.b32.xlu0 %v1943, 120
    %v1952 = vpop.permute.xlu0 %1951
    %1953 = vrot.lane.b32.xlu0 %v1944, 120
    %v1954 = vpop.permute.xlu0 %1953
    %1955 = vrot.lane.b32.xlu0 %v1945, 120
    %v1956 = vpop.permute.xlu0 %1955
    %1957 = vrot.lane.b32.xlu0 %v1946, 120
    %v1958 = vpop.permute.xlu0 %1957
    %1959 = vrot.lane.b32.xlu0 %v1947, 120
    %v1960 = vpop.permute.xlu0 %1959
    %1961 = vrot.lane.b32.xlu0 %v1948, 120
    %v1962 = vpop.permute.xlu0 %1961
    %1963 = vrot.lane.b32.xlu0 %v1949, 120
    %v1964 = vpop.permute.xlu0 %1963
    %1965 = vrot.lane.b32.xlu0 %v1950, 120
    %v1966 = vpop.permute.xlu0 %1965
    %vm1975 = vcmask 125952
    %1976 = vst.msk [vmem:[%s7] sm:$0xf] %vm1975, %v1952
    %1977 = vst.msk [vmem:[%s7 + $0x4] sm:$0xf] %vm1975, %v1954
    %1978 = vst.msk [vmem:[%s7 + $0x8] sm:$0xf] %vm1975, %v1956
    %1979 = vst.msk [vmem:[%s7 + $0xc] sm:$0xf] %vm1975, %v1958
    %1980 = vst.msk [vmem:[%s7 + $0x10] sm:$0xf] %vm1975, %v1960
    %1981 = vst.msk [vmem:[%s7 + $0x14] sm:$0xf] %vm1975, %v1962
    %1982 = vst.msk [vmem:[%s7 + $0x18] sm:$0xf] %vm1975, %v1964
    %1983 = vst.msk [vmem:[%s7 + $0x1c] sm:$0xf] %vm1975, %v1966
    %1984 = vrot.lane.b32.xlu0 %v1919, 120
    %v1985 = vpop.permute.xlu0 %1984
    %1987 = vrot.lane.b32.xlu0 %v1374, 96
    %v1988 = vpop.permute.xlu0 %1987
    %v1991 = vsel %vm1075, %v1985, 0
    %1993 = vmatprep.subr.bf16.mxu0 0
    %1994 = vmatpush1.bf16.msra.mxu0 %v1988
    %1995 = vmatprep.subr.bf16.mxu0 0
    %1996 = vmatpush1.bf16.msra.mxu0 0
    %1997 = vmatprep.subr.bf16.mxu0 0
    %1998 = vmatpush1.bf16.msra.mxu0 0
    %1999 = vmatprep.subr.bf16.mxu0 0
    %2000 = vmatpush1.bf16.msra.mxu0 0
    %2001 = vmatprep.subr.bf16.mxu0 0
    %2002 = vmatpush1.bf16.msra.mxu0 0
    %2003 = vmatprep.subr.bf16.mxu0 0
    %2004 = vmatpush1.bf16.msra.mxu0 0
    %2005 = vmatprep.subr.bf16.mxu0 0
    %2006 = vmatpush1.bf16.msra.mxu0 0
    %2007 = vmatprep.subr.bf16.mxu0 0
    %2008 = vmatpush1.bf16.msra.mxu0 0
    %2009 = vmatprep.subr.bf16.mxu0 0
    %2010 = vmatpush1.bf16.msra.mxu0 0
    %2011 = vmatprep.subr.bf16.mxu0 0
    %2012 = vmatpush1.bf16.msra.mxu0 0
    %2013 = vmatprep.subr.bf16.mxu0 0
    %2014 = vmatpush1.bf16.msra.mxu0 0
    %2015 = vmatprep.subr.bf16.mxu0 0
    %2016 = vmatpush1.bf16.msra.mxu0 0
    %2017 = vmatprep.subr.bf16.mxu0 0
    %2018 = vmatpush1.bf16.msra.mxu0 0
    %2019 = vmatprep.subr.bf16.mxu0 0
    %2020 = vmatpush1.bf16.msra.mxu0 0
    %2021 = vmatprep.subr.bf16.mxu0 0
    %2022 = vmatpush1.bf16.msra.mxu0 0
    %2023 = vmatprep.subr.bf16.mxu0 0
    %2024 = vmatpush1.bf16.msra.mxu0 0
    %2025 = vmatprep.mubr.bf16.mxu0 0
    %2026 = vmatmul.mubr.bf16.gmra.mrb[0].mxu0 %v1991
    %v2027 = vpop.f32.mrb[0].mxu0
    %v2028 = vadd.f32 0.0, %v2027
    %v2029 = vpop.f32.mrb[0].mxu0
    %v2030 = vpop.f32.mrb[0].mxu0
    %v2031 = vpop.f32.mrb[0].mxu0
    %2032 = vdwg.mxu0
    %2033 = vrot.lane.b32.xlu0 %v1920, 120
    %v2034 = vpop.permute.xlu0 %2033
    %2036 = vrot.lane.b32.xlu0 %v1375, 96
    %v2037 = vpop.permute.xlu0 %2036
    %v2040 = vsel %vm1075, %v2034, 0
    %2042 = vmatprep.subr.bf16.mxu0 0
    %2043 = vmatpush1.bf16.msra.mxu0 %v2037
    %2044 = vmatprep.subr.bf16.mxu0 0
    %2045 = vmatpush1.bf16.msra.mxu0 0
    %2046 = vmatprep.subr.bf16.mxu0 0
    %2047 = vmatpush1.bf16.msra.mxu0 0
    %2048 = vmatprep.subr.bf16.mxu0 0
    %2049 = vmatpush1.bf16.msra.mxu0 0
    %2050 = vmatprep.subr.bf16.mxu0 0
    %2051 = vmatpush1.bf16.msra.mxu0 0
    %2052 = vmatprep.subr.bf16.mxu0 0
    %2053 = vmatpush1.bf16.msra.mxu0 0
    %2054 = vmatprep.subr.bf16.mxu0 0
    %2055 = vmatpush1.bf16.msra.mxu0 0
    %2056 = vmatprep.subr.bf16.mxu0 0
    %2057 = vmatpush1.bf16.msra.mxu0 0
    %2058 = vmatprep.subr.bf16.mxu0 0
    %2059 = vmatpush1.bf16.msra.mxu0 0
    %2060 = vmatprep.subr.bf16.mxu0 0
    %2061 = vmatpush1.bf16.msra.mxu0 0
    %2062 = vmatprep.subr.bf16.mxu0 0
    %2063 = vmatpush1.bf16.msra.mxu0 0
    %2064 = vmatprep.subr.bf16.mxu0 0
    %2065 = vmatpush1.bf16.msra.mxu0 0
    %2066 = vmatprep.subr.bf16.mxu0 0
    %2067 = vmatpush1.bf16.msra.mxu0 0
    %2068 = vmatprep.subr.bf16.mxu0 0
    %2069 = vmatpush1.bf16.msra.mxu0 0
    %2070 = vmatprep.subr.bf16.mxu0 0
    %2071 = vmatpush1.bf16.msra.mxu0 0
    %2072 = vmatprep.subr.bf16.mxu0 0
    %2073 = vmatpush1.bf16.msra.mxu0 0
    %2074 = vmatprep.mubr.bf16.mxu0 0
    %2075 = vmatmul.mubr.bf16.gmra.mrb[0].mxu0 %v2040
    %v2076 = vpop.f32.mrb[0].mxu0
    %v2077 = vadd.f32 0.0, %v2076
    %v2078 = vpop.f32.mrb[0].mxu0
    %v2079 = vpop.f32.mrb[0].mxu0
    %v2080 = vpop.f32.mrb[0].mxu0
    %2081 = vdwg.mxu0
    %2082 = vrot.lane.b32.xlu0 %v1921, 120
    %v2083 = vpop.permute.xlu0 %2082
    %2085 = vrot.lane.b32.xlu0 %v1376, 96
    %v2086 = vpop.permute.xlu0 %2085
    %v2089 = vsel %vm1075, %v2083, 0
    %2091 = vmatprep.subr.bf16.mxu0 0
    %2092 = vmatpush1.bf16.msra.mxu0 %v2086
    %2093 = vmatprep.subr.bf16.mxu0 0
    %2094 = vmatpush1.bf16.msra.mxu0 0
    %2095 = vmatprep.subr.bf16.mxu0 0
    %2096 = vmatpush1.bf16.msra.mxu0 0
    %2097 = vmatprep.subr.bf16.mxu0 0
    %2098 = vmatpush1.bf16.msra.mxu0 0
    %2099 = vmatprep.subr.bf16.mxu0 0
    %2100 = vmatpush1.bf16.msra.mxu0 0
    %2101 = vmatprep.subr.bf16.mxu0 0
    %2102 = vmatpush1.bf16.msra.mxu0 0
    %2103 = vmatprep.subr.bf16.mxu0 0
    %2104 = vmatpush1.bf16.msra.mxu0 0
    %2105 = vmatprep.subr.bf16.mxu0 0
    %2106 = vmatpush1.bf16.msra.mxu0 0
    %2107 = vmatprep.subr.bf16.mxu0 0
    %2108 = vmatpush1.bf16.msra.mxu0 0
    %2109 = vmatprep.subr.bf16.mxu0 0
    %2110 = vmatpush1.bf16.msra.mxu0 0
    %2111 = vmatprep.subr.bf16.mxu0 0
    %2112 = vmatpush1.bf16.msra.mxu0 0
    %2113 = vmatprep.subr.bf16.mxu0 0
    %2114 = vmatpush1.bf16.msra.mxu0 0
    %2115 = vmatprep.subr.bf16.mxu0 0
    %2116 = vmatpush1.bf16.msra.mxu0 0
    %2117 = vmatprep.subr.bf16.mxu0 0
    %2118 = vmatpush1.bf16.msra.mxu0 0
    %2119 = vmatprep.subr.bf16.mxu0 0
    %2120 = vmatpush1.bf16.msra.mxu0 0
    %2121 = vmatprep.subr.bf16.mxu0 0
    %2122 = vmatpush1.bf16.msra.mxu0 0
    %2123 = vmatprep.mubr.bf16.mxu0 0
    %2124 = vmatmul.mubr.bf16.gmra.mrb[0].mxu0 %v2089
    %v2125 = vpop.f32.mrb[0].mxu0
    %v2126 = vadd.f32 0.0, %v2125
    %v2127 = vpop.f32.mrb[0].mxu0
    %v2128 = vpop.f32.mrb[0].mxu0
    %v2129 = vpop.f32.mrb[0].mxu0
    %2130 = vdwg.mxu0
    %2131 = vrot.lane.b32.xlu0 %v1922, 120
    %v2132 = vpop.permute.xlu0 %2131
    %2134 = vrot.lane.b32.xlu0 %v1377, 96
    %v2135 = vpop.permute.xlu0 %2134
    %v2138 = vsel %vm1075, %v2132, 0
    %2140 = vmatprep.subr.bf16.mxu0 0
    %2141 = vmatpush1.bf16.msra.mxu0 %v2135
    %2142 = vmatprep.subr.bf16.mxu0 0
    %2143 = vmatpush1.bf16.msra.mxu0 0
    %2144 = vmatprep.subr.bf16.mxu0 0
    %2145 = vmatpush1.bf16.msra.mxu0 0
    %2146 = vmatprep.subr.bf16.mxu0 0
    %2147 = vmatpush1.bf16.msra.mxu0 0
    %2148 = vmatprep.subr.bf16.mxu0 0
    %2149 = vmatpush1.bf16.msra.mxu0 0
    %2150 = vmatprep.subr.bf16.mxu0 0
    %2151 = vmatpush1.bf16.msra.mxu0 0
    %2152 = vmatprep.subr.bf16.mxu0 0
    %2153 = vmatpush1.bf16.msra.mxu0 0
    %2154 = vmatprep.subr.bf16.mxu0 0
    %2155 = vmatpush1.bf16.msra.mxu0 0
    %2156 = vmatprep.subr.bf16.mxu0 0
    %2157 = vmatpush1.bf16.msra.mxu0 0
    %2158 = vmatprep.subr.bf16.mxu0 0
    %2159 = vmatpush1.bf16.msra.mxu0 0
    %2160 = vmatprep.subr.bf16.mxu0 0
    %2161 = vmatpush1.bf16.msra.mxu0 0
    %2162 = vmatprep.subr.bf16.mxu0 0
    %2163 = vmatpush1.bf16.msra.mxu0 0
    %2164 = vmatprep.subr.bf16.mxu0 0
    %2165 = vmatpush1.bf16.msra.mxu0 0
    %2166 = vmatprep.subr.bf16.mxu0 0
    %2167 = vmatpush1.bf16.msra.mxu0 0
    %2168 = vmatprep.subr.bf16.mxu0 0
    %2169 = vmatpush1.bf16.msra.mxu0 0
    %2170 = vmatprep.subr.bf16.mxu0 0
    %2171 = vmatpush1.bf16.msra.mxu0 0
    %2172 = vmatprep.mubr.bf16.mxu0 0
    %2173 = vmatmul.mubr.bf16.gmra.mrb[0].mxu0 %v2138
    %v2174 = vpop.f32.mrb[0].mxu0
    %v2175 = vadd.f32 0.0, %v2174
    %v2176 = vpop.f32.mrb[0].mxu0
    %v2177 = vpop.f32.mrb[0].mxu0
    %v2178 = vpop.f32.mrb[0].mxu0
    %2179 = vdwg.mxu0
    %2180 = vrot.lane.b32.xlu0 %v1923, 120
    %v2181 = vpop.permute.xlu0 %2180
    %2183 = vrot.lane.b32.xlu0 %v1378, 96
    %v2184 = vpop.permute.xlu0 %2183
    %v2187 = vsel %vm1075, %v2181, 0
    %2189 = vmatprep.subr.bf16.mxu0 0
    %2190 = vmatpush1.bf16.msra.mxu0 %v2184
    %2191 = vmatprep.subr.bf16.mxu0 0
    %2192 = vmatpush1.bf16.msra.mxu0 0
    %2193 = vmatprep.subr.bf16.mxu0 0
    %2194 = vmatpush1.bf16.msra.mxu0 0
    %2195 = vmatprep.subr.bf16.mxu0 0
    %2196 = vmatpush1.bf16.msra.mxu0 0
    %2197 = vmatprep.subr.bf16.mxu0 0
    %2198 = vmatpush1.bf16.msra.mxu0 0
    %2199 = vmatprep.subr.bf16.mxu0 0
    %2200 = vmatpush1.bf16.msra.mxu0 0
    %2201 = vmatprep.subr.bf16.mxu0 0
    %2202 = vmatpush1.bf16.msra.mxu0 0
    %2203 = vmatprep.subr.bf16.mxu0 0
    %2204 = vmatpush1.bf16.msra.mxu0 0
    %2205 = vmatprep.subr.bf16.mxu0 0
    %2206 = vmatpush1.bf16.msra.mxu0 0
    %2207 = vmatprep.subr.bf16.mxu0 0
    %2208 = vmatpush1.bf16.msra.mxu0 0
    %2209 = vmatprep.subr.bf16.mxu0 0
    %2210 = vmatpush1.bf16.msra.mxu0 0
    %2211 = vmatprep.subr.bf16.mxu0 0
    %2212 = vmatpush1.bf16.msra.mxu0 0
    %2213 = vmatprep.subr.bf16.mxu0 0
    %2214 = vmatpush1.bf16.msra.mxu0 0
    %2215 = vmatprep.subr.bf16.mxu0 0
    %2216 = vmatpush1.bf16.msra.mxu0 0
    %2217 = vmatprep.subr.bf16.mxu0 0
    %2218 = vmatpush1.bf16.msra.mxu0 0
    %2219 = vmatprep.subr.bf16.mxu0 0
    %2220 = vmatpush1.bf16.msra.mxu0 0
    %2221 = vmatprep.mubr.bf16.mxu0 0
    %2222 = vmatmul.mubr.bf16.gmra.mrb[0].mxu0 %v2187
    %v2223 = vpop.f32.mrb[0].mxu0
    %v2224 = vadd.f32 0.0, %v2223
    %v2225 = vpop.f32.mrb[0].mxu0
    %v2226 = vpop.f32.mrb[0].mxu0
    %v2227 = vpop.f32.mrb[0].mxu0
    %2228 = vdwg.mxu0
    %2229 = vrot.lane.b32.xlu0 %v1924, 120
    %v2230 = vpop.permute.xlu0 %2229
    %2232 = vrot.lane.b32.xlu0 %v1379, 96
    %v2233 = vpop.permute.xlu0 %2232
    %v2236 = vsel %vm1075, %v2230, 0
    %2238 = vmatprep.subr.bf16.mxu0 0
    %2239 = vmatpush1.bf16.msra.mxu0 %v2233
    %2240 = vmatprep.subr.bf16.mxu0 0
    %2241 = vmatpush1.bf16.msra.mxu0 0
    %2242 = vmatprep.subr.bf16.mxu0 0
    %2243 = vmatpush1.bf16.msra.mxu0 0
    %2244 = vmatprep.subr.bf16.mxu0 0
    %2245 = vmatpush1.bf16.msra.mxu0 0
    %2246 = vmatprep.subr.bf16.mxu0 0
    %2247 = vmatpush1.bf16.msra.mxu0 0
    %2248 = vmatprep.subr.bf16.mxu0 0
    %2249 = vmatpush1.bf16.msra.mxu0 0
    %2250 = vmatprep.subr.bf16.mxu0 0
    %2251 = vmatpush1.bf16.msra.mxu0 0
    %2252 = vmatprep.subr.bf16.mxu0 0
    %2253 = vmatpush1.bf16.msra.mxu0 0
    %2254 = vmatprep.subr.bf16.mxu0 0
    %2255 = vmatpush1.bf16.msra.mxu0 0
    %2256 = vmatprep.subr.bf16.mxu0 0
    %2257 = vmatpush1.bf16.msra.mxu0 0
    %2258 = vmatprep.subr.bf16.mxu0 0
    %2259 = vmatpush1.bf16.msra.mxu0 0
    %2260 = vmatprep.subr.bf16.mxu0 0
    %2261 = vmatpush1.bf16.msra.mxu0 0
    %2262 = vmatprep.subr.bf16.mxu0 0
    %2263 = vmatpush1.bf16.msra.mxu0 0
    %2264 = vmatprep.subr.bf16.mxu0 0
    %2265 = vmatpush1.bf16.msra.mxu0 0
    %2266 = vmatprep.subr.bf16.mxu0 0
    %2267 = vmatpush1.bf16.msra.mxu0 0
    %2268 = vmatprep.subr.bf16.mxu0 0
    %2269 = vmatpush1.bf16.msra.mxu0 0
    %2270 = vmatprep.mubr.bf16.mxu0 0
    %2271 = vmatmul.mubr.bf16.gmra.mrb[0].mxu0 %v2236
    %v2272 = vpop.f32.mrb[0].mxu0
    %v2273 = vadd.f32 0.0, %v2272
    %v2274 = vpop.f32.mrb[0].mxu0
    %v2275 = vpop.f32.mrb[0].mxu0
    %v2276 = vpop.f32.mrb[0].mxu0
    %2277 = vdwg.mxu0
    %2278 = vrot.lane.b32.xlu0 %v1925, 120
    %v2279 = vpop.permute.xlu0 %2278
    %2281 = vrot.lane.b32.xlu0 %v1380, 96
    %v2282 = vpop.permute.xlu0 %2281
    %v2285 = vsel %vm1075, %v2279, 0
    %2287 = vmatprep.subr.bf16.mxu0 0
    %2288 = vmatpush1.bf16.msra.mxu0 %v2282
    %2289 = vmatprep.subr.bf16.mxu0 0
    %2290 = vmatpush1.bf16.msra.mxu0 0
    %2291 = vmatprep.subr.bf16.mxu0 0
    %2292 = vmatpush1.bf16.msra.mxu0 0
    %2293 = vmatprep.subr.bf16.mxu0 0
    %2294 = vmatpush1.bf16.msra.mxu0 0
    %2295 = vmatprep.subr.bf16.mxu0 0
    %2296 = vmatpush1.bf16.msra.mxu0 0
    %2297 = vmatprep.subr.bf16.mxu0 0
    %2298 = vmatpush1.bf16.msra.mxu0 0
    %2299 = vmatprep.subr.bf16.mxu0 0
    %2300 = vmatpush1.bf16.msra.mxu0 0
    %2301 = vmatprep.subr.bf16.mxu0 0
    %2302 = vmatpush1.bf16.msra.mxu0 0
    %2303 = vmatprep.subr.bf16.mxu0 0
    %2304 = vmatpush1.bf16.msra.mxu0 0
    %2305 = vmatprep.subr.bf16.mxu0 0
    %2306 = vmatpush1.bf16.msra.mxu0 0
    %2307 = vmatprep.subr.bf16.mxu0 0
    %2308 = vmatpush1.bf16.msra.mxu0 0
    %2309 = vmatprep.subr.bf16.mxu0 0
    %2310 = vmatpush1.bf16.msra.mxu0 0
    %2311 = vmatprep.subr.bf16.mxu0 0
    %2312 = vmatpush1.bf16.msra.mxu0 0
    %2313 = vmatprep.subr.bf16.mxu0 0
    %2314 = vmatpush1.bf16.msra.mxu0 0
    %2315 = vmatprep.subr.bf16.mxu0 0
    %2316 = vmatpush1.bf16.msra.mxu0 0
    %2317 = vmatprep.subr.bf16.mxu0 0
    %2318 = vmatpush1.bf16.msra.mxu0 0
    %2319 = vmatprep.mubr.bf16.mxu0 0
    %2320 = vmatmul.mubr.bf16.gmra.mrb[0].mxu0 %v2285
    %v2321 = vpop.f32.mrb[0].mxu0
    %v2322 = vadd.f32 0.0, %v2321
    %v2323 = vpop.f32.mrb[0].mxu0
    %v2324 = vpop.f32.mrb[0].mxu0
    %v2325 = vpop.f32.mrb[0].mxu0
    %2326 = vdwg.mxu0
    %2327 = vrot.lane.b32.xlu0 %v1926, 120
    %v2328 = vpop.permute.xlu0 %2327
    %2330 = vrot.lane.b32.xlu0 %v1381, 96
    %v2331 = vpop.permute.xlu0 %2330
    %v2334 = vsel %vm1075, %v2328, 0
    %2336 = vmatprep.subr.bf16.mxu0 0
    %2337 = vmatpush1.bf16.msra.mxu0 %v2331
    %2338 = vmatprep.subr.bf16.mxu0 0
    %2339 = vmatpush1.bf16.msra.mxu0 0
    %2340 = vmatprep.subr.bf16.mxu0 0
    %2341 = vmatpush1.bf16.msra.mxu0 0
    %2342 = vmatprep.subr.bf16.mxu0 0
    %2343 = vmatpush1.bf16.msra.mxu0 0
    %2344 = vmatprep.subr.bf16.mxu0 0
    %2345 = vmatpush1.bf16.msra.mxu0 0
    %2346 = vmatprep.subr.bf16.mxu0 0
    %2347 = vmatpush1.bf16.msra.mxu0 0
    %2348 = vmatprep.subr.bf16.mxu0 0
    %2349 = vmatpush1.bf16.msra.mxu0 0
    %2350 = vmatprep.subr.bf16.mxu0 0
    %2351 = vmatpush1.bf16.msra.mxu0 0
    %2352 = vmatprep.subr.bf16.mxu0 0
    %2353 = vmatpush1.bf16.msra.mxu0 0
    %2354 = vmatprep.subr.bf16.mxu0 0
    %2355 = vmatpush1.bf16.msra.mxu0 0
    %2356 = vmatprep.subr.bf16.mxu0 0
    %2357 = vmatpush1.bf16.msra.mxu0 0
    %2358 = vmatprep.subr.bf16.mxu0 0
    %2359 = vmatpush1.bf16.msra.mxu0 0
    %2360 = vmatprep.subr.bf16.mxu0 0
    %2361 = vmatpush1.bf16.msra.mxu0 0
    %2362 = vmatprep.subr.bf16.mxu0 0
    %2363 = vmatpush1.bf16.msra.mxu0 0
    %2364 = vmatprep.subr.bf16.mxu0 0
    %2365 = vmatpush1.bf16.msra.mxu0 0
    %2366 = vmatprep.subr.bf16.mxu0 0
    %2367 = vmatpush1.bf16.msra.mxu0 0
    %2368 = vmatprep.mubr.bf16.mxu0 0
    %2369 = vmatmul.mubr.bf16.gmra.mrb[0].mxu0 %v2334
    %v2370 = vpop.f32.mrb[0].mxu0
    %v2371 = vadd.f32 0.0, %v2370
    %v2372 = vpop.f32.mrb[0].mxu0
    %v2373 = vpop.f32.mrb[0].mxu0
    %v2374 = vpop.f32.mrb[0].mxu0
    %2375 = vdwg.mxu0
    %2378 = vrot.lane.b32.xlu0 %v2126, 8
    %v2379 = vpop.permute.xlu0 %2378
    %2380 = vrot.lane.b32.xlu0 %v2175, 8
    %v2381 = vpop.permute.xlu0 %2380
    %2386 = vrot.lane.b32.xlu0 %v2224, 16
    %v2387 = vpop.permute.xlu0 %2386
    %2388 = vrot.lane.b32.xlu0 %v2273, 16
    %v2389 = vpop.permute.xlu0 %2388
    %2394 = vrot.lane.b32.xlu0 %v2322, 24
    %v2395 = vpop.permute.xlu0 %2394
    %2396 = vrot.lane.b32.xlu0 %v2371, 24
    %v2397 = vpop.permute.xlu0 %2396
    %v2400 = vsel %vm149, %v2028, %v2379
    %v2401 = vsel %vm149, %v2077, %v2381
    %v2402 = vsel %vm1075, %v2400, %v2387
    %v2403 = vsel %vm1075, %v2401, %v2389
    %v2404 = vsel %vm1078, %v2402, %v2395
    %v2405 = vsel %vm1078, %v2403, %v2397
    %v2406 = vpack.c.bf16 %v2405, %v2404
    %2407 = vrot.lane.b32.xlu0 %v1193, 32
    %v2408 = vpop.permute.xlu0 %2407
    %2409 = vrot.lane.b32.xlu0 %v1194, 32
    %v2410 = vpop.permute.xlu0 %2409
    %v2414 = vsel %vm73, %v2406, 0
    %2416 = vmatprep.subr.bf16.mxu0 0
    %2417 = vmatpush1.bf16.msra.mxu0 %v2408
    %2418 = vmatprep.subr.bf16.mxu0 0
    %2419 = vmatpush1.bf16.msra.mxu0 %v2410
    %2420 = vmatprep.subr.bf16.mxu0 0
    %2421 = vmatpush1.bf16.msra.mxu0 0
    %2422 = vmatprep.subr.bf16.mxu0 0
    %2423 = vmatpush1.bf16.msra.mxu0 0
    %2424 = vmatprep.subr.bf16.mxu0 0
    %2425 = vmatpush1.bf16.msra.mxu0 0
    %2426 = vmatprep.subr.bf16.mxu0 0
    %2427 = vmatpush1.bf16.msra.mxu0 0
    %2428 = vmatprep.subr.bf16.mxu0 0
    %2429 = vmatpush1.bf16.msra.mxu0 0
    %2430 = vmatprep.subr.bf16.mxu0 0
    %2431 = vmatpush1.bf16.msra.mxu0 0
    %2432 = vmatprep.subr.bf16.mxu0 0
    %2433 = vmatpush1.bf16.msra.mxu0 0
    %2434 = vmatprep.subr.bf16.mxu0 0
    %2435 = vmatpush1.bf16.msra.mxu0 0
    %2436 = vmatprep.subr.bf16.mxu0 0
    %2437 = vmatpush1.bf16.msra.mxu0 0
    %2438 = vmatprep.subr.bf16.mxu0 0
    %2439 = vmatpush1.bf16.msra.mxu0 0
    %2440 = vmatprep.subr.bf16.mxu0 0
    %2441 = vmatpush1.bf16.msra.mxu0 0
    %2442 = vmatprep.subr.bf16.mxu0 0
    %2443 = vmatpush1.bf16.msra.mxu0 0
    %2444 = vmatprep.subr.bf16.mxu0 0
    %2445 = vmatpush1.bf16.msra.mxu0 0
    %2446 = vmatprep.subr.bf16.mxu0 0
    %2447 = vmatpush1.bf16.msra.mxu0 0
    %2448 = vmatprep.mubr.bf16.mxu0 0
    %2449 = vmatmul.mubr.bf16.gmra.mrb[0].mxu0 %v2414
    %v2450 = vpop.f32.mrb[0].mxu0
    %v2451 = vadd.f32 0.0, %v2450
    %v2452 = vpop.f32.mrb[0].mxu0
    %v2453 = vpop.f32.mrb[0].mxu0
    %v2454 = vadd.f32 0.0, %v2453
    %v2455 = vpop.f32.mrb[0].mxu0
    %2456 = vdwg.mxu0
    %v2457 = vlaneseq
    %v2458 = vshrl.u32 %v2457, 7
    %v2459 = vsub.s32 3, %v2458
    %v2460 = vrot.slane %v55, %v2459
    %v2461 = vadd.f32 %v2451, %v2460
    %v2462 = vadd.f32 %v2454, %v2460
    %v2463 = vadd.f32 %v2461, %v1176
    %v2464 = vadd.f32 %v2462, %v1177
    %v2465 = vsel %vm73, %v2463, 0.0
    %2466 = vadd.xlane.f32.xlu0 %v2465
    %v2467 = vpop.xlane.xlu0 %2466
    %v2468 = vsel %vm73, %v2464, 0.0
    %2469 = vadd.xlane.f32.xlu0 %v2468
    %v2470 = vpop.xlane.xlu0 %2469
    %v2471 = vmul.f32 %v2467, %v1146
    %v2472 = vmul.f32 %v2470, %v1146
    %v2473 = vsub.f32 %v2463, %v2471
    %v2474 = vsub.f32 %v2464, %v2472
    %v2475 = vmul.f32 %v2473, %v2473
    %v2476 = vmul.f32 %v2474, %v2474
    %v2477 = vsel %vm73, %v2475, 0.0
    %2478 = vadd.xlane.f32.xlu0 %v2477
    %v2479 = vpop.xlane.xlu0 %2478
    %v2480 = vsel %vm73, %v2476, 0.0
    %2481 = vadd.xlane.f32.xlu0 %v2480
    %v2482 = vpop.xlane.xlu0 %2481
    %v2483 = vmul.f32 %v2479, %v1146
    %v2484 = vmul.f32 %v2482, %v1146
    %v2485 = vadd.f32 %v2483, 1e-05
    %v2486 = vadd.f32 %v2484, 1e-05
    %v2487 = vrsqrt.pop %v2485
    %v2488 = vrsqrt.pop %v2486
    %v2489 = vmul.f32 %v2473, %v2487
    %v2490 = vmul.f32 %v2474, %v2488
    %2492 = vrot.lane.b32.xlu0 %v2460, 96
    %v2493 = vpop.permute.xlu0 %2492
    %v2495 = vmul.f32 %v2489, %v2493
    %v2496 = vmul.f32 %v2490, %v2493
    %2497 = vrot.lane.b32.xlu0 %v2460, 64
    %v2498 = vpop.permute.xlu0 %2497
    %v2500 = vadd.f32 %v2495, %v2498
    %v2501 = vadd.f32 %v2496, %v2498
    %v2502 = vpack.c.bf16 %v2501, %v2500
    %v2503 = vlaneseq
    %v2504 = vshrl.u32 %v2503, 7
    %v2505 = vsub.s32 4, %v2504
    %v2506 = vrot.slane %v55, %v2505
    %v2511 = vunpack.c.l.b16 %v43
    %v2512 = vunpack.c.l.b16 %v44
    %v2513 = vunpack.c.l.b16 %v45
    %v2514 = vunpack.c.l.b16 %v46
    %v2515 = vpack.c.b16 %v2512, %v2511
    %v2516 = vpack.c.b16 %v2514, %v2513
    %v2520 = vsel %vm73, %v2502, 0
    %2522 = vmatprep.subr.bf16.mxu0 0
    %2523 = vmatpush1.bf16.msra.mxu0 %v2515
    %2524 = vmatprep.subr.bf16.mxu0 0
    %2525 = vmatpush1.bf16.msra.mxu0 %v2516
    %2526 = vmatprep.subr.bf16.mxu0 0
    %2527 = vmatpush1.bf16.msra.mxu0 0
    %2528 = vmatprep.subr.bf16.mxu0 0
    %2529 = vmatpush1.bf16.msra.mxu0 0
    %2530 = vmatprep.subr.bf16.mxu0 0
    %2531 = vmatpush1.bf16.msra.mxu0 0
    %2532 = vmatprep.subr.bf16.mxu0 0
    %2533 = vmatpush1.bf16.msra.mxu0 0
    %2534 = vmatprep.subr.bf16.mxu0 0
    %2535 = vmatpush1.bf16.msra.mxu0 0
    %2536 = vmatprep.subr.bf16.mxu0 0
    %2537 = vmatpush1.bf16.msra.mxu0 0
    %2538 = vmatprep.subr.bf16.mxu0 0
    %2539 = vmatpush1.bf16.msra.mxu0 0
    %2540 = vmatprep.subr.bf16.mxu0 0
    %2541 = vmatpush1.bf16.msra.mxu0 0
    %2542 = vmatprep.subr.bf16.mxu0 0
    %2543 = vmatpush1.bf16.msra.mxu0 0
    %2544 = vmatprep.subr.bf16.mxu0 0
    %2545 = vmatpush1.bf16.msra.mxu0 0
    %2546 = vmatprep.subr.bf16.mxu0 0
    %2547 = vmatpush1.bf16.msra.mxu0 0
    %2548 = vmatprep.subr.bf16.mxu0 0
    %2549 = vmatpush1.bf16.msra.mxu0 0
    %2550 = vmatprep.subr.bf16.mxu0 0
    %2551 = vmatpush1.bf16.msra.mxu0 0
    %2552 = vmatprep.subr.bf16.mxu0 0
    %2553 = vmatpush1.bf16.msra.mxu0 0
    %2554 = vmatprep.mubr.bf16.mxu0 0
    %2555 = vmatmul.mubr.bf16.gmra.mrb[0].mxu0 %v2520
    %v2556 = vpop.f32.mrb[0].mxu0
    %v2557 = vadd.f32 %v2506, %v2556
    %v2558 = vpop.f32.mrb[0].mxu0
    %v2559 = vpop.f32.mrb[0].mxu0
    %v2560 = vadd.f32 %v2506, %v2559
    %v2561 = vpop.f32.mrb[0].mxu0
    %2562 = vdwg.mxu0
    %v2563 = vmax.f32 %v2557, 0.0
    %v2564 = vmax.f32 %v2560, 0.0
    %v2565 = vpack.c.bf16 %v2564, %v2563
    %v2574 = vunpack.c.l.b16 %v47
    %v2575 = vunpack.c.l.b16 %v48
    %v2576 = vunpack.c.l.b16 %v49
    %v2577 = vunpack.c.l.b16 %v50
    %v2578 = vunpack.c.l.b16 %v51
    %v2579 = vunpack.c.l.b16 %v52
    %v2580 = vunpack.c.l.b16 %v53
    %v2581 = vunpack.c.l.b16 %v54
    %v2582 = vpack.c.b16 %v2575, %v2574
    %v2583 = vpack.c.b16 %v2577, %v2576
    %v2584 = vpack.c.b16 %v2579, %v2578
    %v2585 = vpack.c.b16 %v2581, %v2580
    %2591 = vrot.lane.b32.xlu0 %v2506, 64
    %v2592 = vpop.permute.xlu0 %2591
    %vm2594 = vcmask 523264
    %v2596 = vsel %vm2594, %v2565, 0
    %2598 = vmatprep.subr.bf16.mxu0 0
    %2599 = vmatpush1.bf16.msra.mxu0 %v2582
    %2600 = vmatprep.subr.bf16.mxu0 0
    %2601 = vmatpush1.bf16.msra.mxu0 %v2583
    %2602 = vmatprep.subr.bf16.mxu0 0
    %2603 = vmatpush1.bf16.msra.mxu0 %v2584
    %2604 = vmatprep.subr.bf16.mxu0 0
    %2605 = vmatpush1.bf16.msra.mxu0 %v2585
    %2606 = vmatprep.subr.bf16.mxu0 0
    %2607 = vmatpush1.bf16.msra.mxu0 0
    %2608 = vmatprep.subr.bf16.mxu0 0
    %2609 = vmatpush1.bf16.msra.mxu0 0
    %2610 = vmatprep.subr.bf16.mxu0 0
    %2611 = vmatpush1.bf16.msra.mxu0 0
    %2612 = vmatprep.subr.bf16.mxu0 0
    %2613 = vmatpush1.bf16.msra.mxu0 0
    %2614 = vmatprep.subr.bf16.mxu0 0
    %2615 = vmatpush1.bf16.msra.mxu0 0
    %2616 = vmatprep.subr.bf16.mxu0 0
    %2617 = vmatpush1.bf16.msra.mxu0 0
    %2618 = vmatprep.subr.bf16.mxu0 0
    %2619 = vmatpush1.bf16.msra.mxu0 0
    %2620 = vmatprep.subr.bf16.mxu0 0
    %2621 = vmatpush1.bf16.msra.mxu0 0
    %2622 = vmatprep.subr.bf16.mxu0 0
    %2623 = vmatpush1.bf16.msra.mxu0 0
    %2624 = vmatprep.subr.bf16.mxu0 0
    %2625 = vmatpush1.bf16.msra.mxu0 0
    %2626 = vmatprep.subr.bf16.mxu0 0
    %2627 = vmatpush1.bf16.msra.mxu0 0
    %2628 = vmatprep.subr.bf16.mxu0 0
    %2629 = vmatpush1.bf16.msra.mxu0 0
    %2630 = vmatprep.mubr.bf16.mxu0 0
    %2631 = vmatmul.mubr.bf16.gmra.mrb[0].mxu0 %v2596
    %v2632 = vpop.f32.mrb[0].mxu0
    %v2633 = vadd.f32 %v2592, %v2632
    %v2634 = vpop.f32.mrb[0].mxu0
    %v2635 = vpop.f32.mrb[0].mxu0
    %v2636 = vadd.f32 %v2592, %v2635
    %v2637 = vpop.f32.mrb[0].mxu0
    %2638 = vdwg.mxu0
    %v2639 = vadd.f32 %v2633, %v2500
    %v2640 = vadd.f32 %v2636, %v2501
    %v2641 = vsel %vm73, %v2639, 0.0
    %2642 = vadd.xlane.f32.xlu0 %v2641
    %v2643 = vpop.xlane.xlu0 %2642
    %v2644 = vsel %vm73, %v2640, 0.0
    %2645 = vadd.xlane.f32.xlu0 %v2644
    %v2646 = vpop.xlane.xlu0 %2645
    %v2647 = vmul.f32 %v2643, %v1146
    %v2648 = vmul.f32 %v2646, %v1146
    %v2649 = vsub.f32 %v2639, %v2647
    %v2650 = vsub.f32 %v2640, %v2648
    %v2651 = vmul.f32 %v2649, %v2649
    %v2652 = vmul.f32 %v2650, %v2650
    %v2653 = vsel %vm73, %v2651, 0.0
    %2654 = vadd.xlane.f32.xlu0 %v2653
    %v2655 = vpop.xlane.xlu0 %2654
    %v2656 = vsel %vm73, %v2652, 0.0
    %2657 = vadd.xlane.f32.xlu0 %v2656
    %v2658 = vpop.xlane.xlu0 %2657
    %v2659 = vmul.f32 %v2655, %v1146
    %v2660 = vmul.f32 %v2658, %v1146
    %v2661 = vadd.f32 %v2659, 1e-05
    %v2662 = vadd.f32 %v2660, 1e-05
    %v2663 = vrsqrt.pop %v2661
    %v2664 = vrsqrt.pop %v2662
    %v2665 = vmul.f32 %v2649, %v2663
    %v2666 = vmul.f32 %v2650, %v2664
    %v2667 = vlaneseq
    %v2668 = vshrl.u32 %v2667, 7
    %v2669 = vsub.s32 5, %v2668
    %v2670 = vrot.slane %v55, %v2669
    %v2671 = vmul.f32 %v2665, %v2670
    %v2672 = vmul.f32 %v2666, %v2670
    %2674 = vrot.lane.b32.xlu0 %v2670, 96
    %v2675 = vpop.permute.xlu0 %2674
    %v2677 = vadd.f32 %v2671, %v2675
    %v2678 = vadd.f32 %v2672, %v2675
    %2679 = vst.msk [vmem:[#allocation2] sm:$0xff] %vm73, %v2677
    %2680 = vst.msk [vmem:[#allocation2 + $0x8] sm:$0xff] %vm73, %v2678
    // Predicated region
    $region22: #{decoder_layer.1} parent=1 // pred_check
      _
    $region23: #{decoder_layer.1} parent=1 // pred_check_branch
      %2682 = sbr.rel (0) target = $region25
    $region24: #{decoder_layer.1} parent=1 // pred_region
      %s2684 = ssub.s32 256, 256
      %2685 = vsyncadd [#allocation3], %s2684
      %s2686 = sshll.u32 [#allocation2], 4
      %s2687 = int_to_ptr.vmem [resolvable:$true] %s2686
      %2692 = dma.vmem_to_hbm [thread:$0]  %s2687, 256, %s5, [#allocation3], 128, 128, 8
    $region25: #{decoder_layer.1} parent=1 // pred_fallthru
      _
    // Predicated region
    $region26: #{decoder_layer.1} parent=1 // pred_check
      _
    $region27: #{decoder_layer.1} parent=1 // pred_check_branch
      %2694 = sbr.rel (0) target = $region29
    $region28: #{decoder_layer.1} parent=1 // pred_region
      _
    $region29: #{decoder_layer.1} parent=1 // pred_fallthru
      _
    // Predicated region
    $region30: #{decoder_layer.1} parent=1 // pred_check
      _
    $region31: #{decoder_layer.1} parent=1 // pred_check_branch
      %2696 = sbr.rel (0) target = $region33
    $region32: #{decoder_layer.1} parent=1 // pred_region
      _
    $region33: #{decoder_layer.1} parent=1 // pred_fallthru
      _
    // Predicated region
    $region34: #{decoder_layer.1} parent=1 // pred_check
      _
    $region35: #{decoder_layer.1} parent=1 // pred_check_branch
      %2698 = sbr.rel (0) target = $region37
    $region36: #{decoder_layer.1} parent=1 // pred_region
      %2699 = dma.done [#allocation3], 256
    $region37: #{decoder_layer.1} parent=1 // pred_fallthru
      _
    // Predicated region
    $region38: #{decoder_layer.1} parent=1 // pred_check
      _
    $region39: #{decoder_layer.1} parent=1 // pred_check_branch
      %2701 = sbr.rel (0) target = $region41
    $region40: #{decoder_layer.1} parent=1 // pred_region
      _
    $region41: #{decoder_layer.1} parent=1 // pred_fallthru
      _
    // Predicated region
    $region42: #{decoder_layer.1} parent=1 // pred_check
      _
    $region43: #{decoder_layer.1} parent=1 // pred_check_branch
      %2703 = sbr.rel (0) target = $region45
    $region44: #{decoder_layer.1} parent=1 // pred_region
      _
    $region45: #{decoder_layer.1} parent=1 // pred_fallthru
      _
    %2704 = vsyncpa [#allocation3], 1

</llo_original>
